<compile_context>
chip_gen: v7x
topology: tpu7x:2x2x1
jax: 0.10.0
libtpu: 0.0.40
codegen_flags: <defaults>
</compile_context>

<pallas_src>
import functools

import jax
import jax.numpy as jnp
from jax.experimental import pallas as pl
from jax.experimental.pallas import tpu as pltpu


_RESIDENT_ORDER = ("ln1_w", "ln1_b", "in_w", "in_b", "out_w", "out_b",
                   "ln2_w", "ln2_b", "dn_b")
_STREAMED_ORDER = ("up_w", "up_b", "dn_w")

# Flipped to False (once) if this jax version rejects pipeline_mode=pl.Buffered(1).
_BUFFERED_WEIGHTS_OK = [True]


# --------------------------------------------------------------------------------------
# Kernel
# --------------------------------------------------------------------------------------
def _layernorm(x, w, b, eps=1e-12):
    # TF-style LayerNorm as defined in the PyTorch module: eps INSIDE the sqrt, eps=1e-12,
    # biased variance.  (Deliberately not nn.LayerNorm's eps=1e-5.)
    u = jnp.mean(x, axis=-1, keepdims=True)
    c = x - u
    s = jnp.mean(c * c, axis=-1, keepdims=True)
    return c * jax.lax.rsqrt(s + eps) * w + b


def _block_kernel(
    x_ref,                               # (TB, Lp, D) f32   current batch block
    ln1_w_ref, ln1_b_ref,                # (1, D) f32
    in_w_ref, in_b_ref,                  # (D, 3D) cdt, (1, 3D) f32   qkv projection
    out_w_ref, out_b_ref,                # (D, D)  cdt, (1, D)  f32   attn output projection
    ln2_w_ref, ln2_b_ref,                # (1, D) f32
    dn_b_ref,                            # (1, D) f32                 fused MoTE fc_dn bias
    up_w_ref, up_b_ref,                  # (D, tn) cdt, (1, tn) f32   streamed fc_up chunk
    dn_w_ref,                            # (tn, D) cdt                streamed fc_dn chunk
    o_ref,                               # (TB, Lp, D)
    x1_sc,                               # (TB*Lp, D) f32   residual after attention
    h2_sc,                               # (TB*Lp, D) cdt   ln_2(x1), matmul-ready
    acc_sc,                              # (TB*Lp, D) f32   attn heads / FFN accumulator
    *, num_heads, compute_dtype, true_len,
):
    c = pl.program_id(1)
    TB, Lp, D = x_ref.shape
    hd = D // num_heads
    scale = 1.0 / float(hd) ** 0.5
    approx = jnp.dtype(compute_dtype) != jnp.dtype(jnp.float32)

    # ---------------- chunk 0: x1 = x + attn(ln_1(x)), stash x1 / ln_2(x1) ----------------
    @pl.when(c == 0)
    def _attention():
        xf = x_ref[...].astype(jnp.float32).reshape(TB * Lp, D)
        h = _layernorm(xf, ln1_w_ref[...], ln1_b_ref[...])
        qkv = jnp.dot(h.astype(compute_dtype), in_w_ref[...],
                      preferred_element_type=jnp.float32) + in_b_ref[...]      # (TB*Lp, 3D)
        qkv = qkv.astype(compute_dtype).reshape(TB, Lp, 3 * D)
        q, k, v = qkv[..., :D], qkv[..., D:2 * D], qkv[..., 2 * D:]

        # TB-batched per-head attention; each head's output is stored straight into the
        # f32 scratch at its lane offset (no jnp.concatenate relayout at the end).
        for hidx in range(num_heads):
            sl = slice(hidx * hd, (hidx + 1) * hd)
            qh, kh, vh = q[..., sl], k[..., sl], v[..., sl]                    # (TB, Lp, hd)
            s = jnp.einsum("bqd,bkd->bqk", qh, kh,
                           preferred_element_type=jnp.float32) * scale        # (TB, Lp, Lp)
            if true_len < Lp:              # static: only traced when L was padded
                key_idx = jax.lax.broadcasted_iota(jnp.int32, s.shape, 2)
                s = jnp.where(key_idx < true_len, s, -1e30)
            s = s - jnp.max(s, axis=-1, keepdims=True)
            p = jnp.exp(s)
            p = p * pl.reciprocal(jnp.sum(p, axis=-1, keepdims=True), approx=approx)
            oh = jnp.einsum("bqk,bkd->bqd", p.astype(compute_dtype), vh,
                            preferred_element_type=jnp.float32)               # (TB, Lp, hd)
            acc_sc[:, sl] = oh.reshape(TB * Lp, hd)

        attn = jnp.dot(acc_sc[...].astype(compute_dtype), out_w_ref[...],
                       preferred_element_type=jnp.float32) + out_b_ref[...]
        x1 = xf + attn
        x1_sc[...] = x1
        h2_sc[...] = _layernorm(x1, ln2_w_ref[...], ln2_b_ref[...]).astype(compute_dtype)
        acc_sc[...] = jnp.zeros_like(acc_sc)

    # ---------------- streamed MoTE FFN chunk: up -> QuickGELU -> dn (accumulate) ----------
    up = jnp.dot(h2_sc[...], up_w_ref[...],
                 preferred_element_type=jnp.float32) + up_b_ref[...]           # (TB*Lp, tn)
    g = up * jax.nn.sigmoid(1.702 * up)                                        # QuickGELU (f32)
    acc_sc[...] += jnp.dot(g.astype(compute_dtype), dn_w_ref[...],
                           preferred_element_type=jnp.float32)

    @pl.when(c == pl.num_programs(1) - 1)
    def _finalize():
        out = x1_sc[...] + acc_sc[...] + dn_b_ref[...]
        o_ref[...] = out.reshape(TB, Lp, D).astype(o_ref.dtype)


# --------------------------------------------------------------------------------------
# Wrappers / tiling heuristics
# --------------------------------------------------------------------------------------
def _prepare_params(params, compute_dtype):
    """Cast weight matrices to the MXU compute dtype; vectors lane-major (1, N) f32."""
    out = {}
    for name in _RESIDENT_ORDER + _STREAMED_ORDER:
        a = params[name]
        if a.ndim == 1:
            out[name] = a.reshape(1, -1).astype(jnp.float32)
        else:
            out[name] = a.astype(compute_dtype)
    return out


def _choose_ffn_chunk(hidden):
    """Chunk width for streaming the FFN hidden dim: lane-aligned, >=2 chunks for big D."""
    for tn in (1024, 512, 256, 128):
        if hidden % tn == 0:
            return tn
    return hidden          # small / unaligned hidden: single full-width chunk


def _vmem_budget():
    """~85% of the actual per-core VMEM (v7x has only 64 MiB; don't assume 128)."""
    try:
        cap = int(pltpu.get_tpu_info().vmem_capacity_bytes)
    except Exception:
        cap = 64 << 20     # conservative fallback = v7x per-core VMEM
    return int(cap * 0.85)


def _vmem_estimate(rows, D, tn, wsize):
    act_io = 2 * 2 * rows * D * 4                     # double-buffered x-in / o-out (f32)
    resident = 4 * D * D * wsize + 16 * D * 4          # in_w + out_w (+ LN / bias vectors)
    streamed = 2 * (2 * D * tn * wsize + tn * 4)        # up_w/dn_w chunks (x2 buffers) + up_b
    scratch = rows * D * (8 + wsize)                    # x1(f32) + acc(f32) + h2(cdt)
    working = 2 * rows * (3 * D + tn) * 4               # qkv / up / gelu f32 live values
    return act_io + resident + streamed + scratch + working + (4 << 20)


def _choose_batch_block(B, Lp, fits):
    """Largest batch block that fits VMEM, keeping >=2 grid steps (megacore) and
    targeting ~512 matmul rows per step."""
    divs = [d for d in range(1, B + 1) if B % d == 0]
    ok = [d for d in divs if fits(d)] or [1]
    multi = [d for d in ok if B // d >= 2]
    pool = multi if multi else ok
    for d in pool:                      # ascending: smallest block reaching the row target
        if d * Lp >= 512:
            return d
    return pool[-1]


def residual_attention_block(x_bld, params, num_heads, *, compute_dtype=jnp.bfloat16,
                             batch_block=None, ffn_chunk=None):
    """One ResidualAttentionBlock (eval semantics). x_bld: [B, L, D] f32 -> [B, L, D]."""
    B, L, D = x_bld.shape
    assert D % num_heads == 0, "d_model must be divisible by n_head"
    # Best layouts want D % 128 == 0; L is sublane-padded (and masked) below.  A
    # non-128-multiple D still runs correctly, just with masked lane slices.
    Lp = ((L + 7) // 8) * 8
    x_in = x_bld if Lp == L else jnp.pad(x_bld, ((0, 0), (0, Lp - L), (0, 0)))

    prepped = _prepare_params(params, compute_dtype)
    resident = [prepped[n] for n in _RESIDENT_ORDER]
    up_w, up_b, dn_w = (prepped[n] for n in _STREAMED_ORDER)

    hidden = 4 * D
    tn = ffn_chunk if ffn_chunk is not None else _choose_ffn_chunk(hidden)
    assert hidden % tn == 0, f"ffn chunk {tn} must divide hidden dim {hidden}"
    n_chunks = hidden // tn

    wsize = jnp.dtype(compute_dtype).itemsize
    budget = _vmem_budget()
    fits = lambda d: _vmem_estimate(d * Lp, D, tn, wsize) <= budget
    tb = batch_block if batch_block is not None else _choose_batch_block(B, Lp, fits)
    assert B % tb == 0, f"batch block {tb} must divide batch {B}"
    vmem_limit = int(min(budget, max(_vmem_estimate(tb * Lp, D, tn, wsize), 32 << 20)))

    kernel = functools.partial(_block_kernel, num_heads=num_heads,
                               compute_dtype=compute_dtype, true_len=L)

    def build(buffered_weights):
        def const_spec(a):
            idx = lambda b, c, _nd=a.ndim: (0,) * _nd
            if buffered_weights:
                # Constant index map -> a single resident copy suffices; halves weight VMEM.
                return pl.BlockSpec(a.shape, idx, pipeline_mode=pl.Buffered(buffer_count=1))
            return pl.BlockSpec(a.shape, idx)

        in_specs = ([pl.BlockSpec((tb, Lp, D), lambda b, c: (b, 0, 0))]
                    + [const_spec(a) for a in resident]
                    + [pl.BlockSpec((D, tn), lambda b, c: (0, c)),      # up_w chunk
                       pl.BlockSpec((1, tn), lambda b, c: (0, c)),      # up_b chunk
                       pl.BlockSpec((tn, D), lambda b, c: (c, 0))])     # dn_w chunk

        return pl.pallas_call(
            kernel,
            out_shape=jax.ShapeDtypeStruct((B, Lp, D), x_bld.dtype),
            grid=(B // tb, n_chunks),
            in_specs=in_specs,
            out_specs=pl.BlockSpec((tb, Lp, D), lambda b, c: (b, 0, 0)),
            scratch_shapes=[
                pltpu.VMEM((tb * Lp, D), jnp.float32),    # x1 (post-attention residual)
                pltpu.VMEM((tb * Lp, D), compute_dtype),  # ln_2(x1), matmul-ready
                pltpu.VMEM((tb * Lp, D), jnp.float32),    # attn heads / FFN accumulator
            ],
            compiler_params=pltpu.CompilerParams(
                dimension_semantics=("parallel", "arbitrary"),
                vmem_limit_bytes=vmem_limit,
            ),
        )

    args = (x_in, *resident, up_w, up_b, dn_w)
    if _BUFFERED_WEIGHTS_OK[0]:
        try:
            out = build(True)(*args)
        except Exception:
            _BUFFERED_WEIGHTS_OK[0] = False      # Buffered(1) unsupported: double-buffer weights
            out = build(False)(*args)
    else:
        out = build(False)(*args)

    return out if Lp == L else out[:, :L, :]


def temporal_transformer(x_lbd, layer_params, num_heads, regularization=False,
                         compute_dtype=jnp.bfloat16):
    """Forward of TemporalTransformer (eval semantics). x_lbd: [L, B, D] seq-first."""
    del regularization  # eval-mode MoTE path ignores it (see PyTorch MoTE.forward)
    x = jnp.transpose(x_lbd, (1, 0, 2))            # -> [B, L, D] kernel layout
    for p in layer_params:
        x = residual_attention_block(x, p, num_heads, compute_dtype=compute_dtype)
    return jnp.transpose(x, (1, 0, 2))             # back to [L, B, D]


# --------------------------------------------------------------------------------------
# Deterministic parameter initialization (synthetic, not a checkpoint load)
# --------------------------------------------------------------------------------------
def init_layer_params(key, d_model, num_experts):
    ks = jax.random.split(key, 12)
    D = d_model
    # nn.MultiheadAttention params (torch layout (out, in); stored pre-transposed below)
    in_proj_w = jax.random.normal(ks[0], (3 * D, D), jnp.float32) * 0.02
    in_proj_b = jax.random.normal(ks[1], (3 * D,), jnp.float32) * 0.02
    out_proj_w = jax.random.normal(ks[2], (D, D), jnp.float32) * 0.02
    out_proj_b = jax.random.normal(ks[3], (D,), jnp.float32) * 0.02
    # MoTE experts -> eval-mode fusion with softmax(zeros) = uniform average
    up_ws = jax.random.normal(ks[4], (num_experts, 4 * D, D), jnp.float32) * 0.02
    up_bs = jax.random.normal(ks[5], (num_experts, 4 * D), jnp.float32) * 0.02
    dn_ws = jax.random.normal(ks[6], (num_experts, D, 4 * D), jnp.float32) * 0.02
    dn_bs = jax.random.normal(ks[7], (num_experts, D), jnp.float32) * 0.02
    fuse = jax.nn.softmax(jnp.zeros((num_experts,), jnp.float32))
    up_w = jnp.einsum("e,eij->ij", fuse, up_ws)
    up_b = jnp.einsum("e,ei->i", fuse, up_bs)
    dn_w = jnp.einsum("e,eij->ij", fuse, dn_ws)
    dn_b = jnp.einsum("e,ei->i", fuse, dn_bs)
    return {
        "ln1_w": jnp.ones((D,), jnp.float32), "ln1_b": jnp.zeros((D,), jnp.float32),
        "in_w": in_proj_w.T, "in_b": in_proj_b,          # pre-transposed -> (in, out)
        "out_w": out_proj_w.T, "out_b": out_proj_b,
        "ln2_w": jnp.ones((D,), jnp.float32), "ln2_b": jnp.zeros((D,), jnp.float32),
        "up_w": up_w.T, "up_b": up_b,
        "dn_w": dn_w.T, "dn_b": dn_b,
    }


# --------------------------------------------------------------------------------------
# Pure-JAX reference (same math, f32, no Pallas) for a correctness check
# --------------------------------------------------------------------------------------
def _ref_block(x_bld, p, num_heads):
    B, L, D = x_bld.shape
    hd = D // num_heads

    def ln(x, w, b):
        u = jnp.mean(x, -1, keepdims=True)
        s = jnp.mean((x - u) ** 2, -1, keepdims=True)
        return w * ((x - u) / jnp.sqrt(s + 1e-12)) + b

    h = ln(x_bld, p["ln1_w"], p["ln1_b"])
    qkv = h @ p["in_w"] + p["in_b"]
    q, k, v = qkv[..., :D], qkv[..., D:2 * D], qkv[..., 2 * D:]
    q = q.reshape(B, L, num_heads, hd).transpose(0, 2, 1, 3)
    k = k.reshape(B, L, num_heads, hd).transpose(0, 2, 1, 3)
    v = v.reshape(B, L, num_heads, hd).transpose(0, 2, 1, 3)
    s = jnp.einsum("bhqd,bhkd->bhqk", q, k) / (hd ** 0.5)
    a = jax.nn.softmax(s, axis=-1)
    o = jnp.einsum("bhqk,bhkd->bhqd", a, v).transpose(0, 2, 1, 3).reshape(B, L, D)
    o = o @ p["out_w"] + p["out_b"]
    x1 = x_bld + o
    h2 = ln(x1, p["ln2_w"], p["ln2_b"])
    up = h2 @ p["up_w"] + p["up_b"]
    g = up * jax.nn.sigmoid(1.702 * up)
    dn = g @ p["dn_w"] + p["dn_b"]
    return x1 + dn


def _ref_transformer(x_lbd, layer_params, num_heads):
    x = jnp.transpose(x_lbd, (1, 0, 2))
    for p in layer_params:
        x = _ref_block(x, p, num_heads)
    return jnp.transpose(x, (1, 0, 2))


# --------------------------------------------------------------------------------------
if __name__ == "__main__":
    L, B, D = 8, 2, 32          # seq, batch, width
    HEADS, LAYERS, EXPERTS = 4, 2, 4

    root = jax.random.PRNGKey(0)
    kx, *layer_keys = jax.random.split(root, LAYERS + 1)
    x = jax.random.normal(kx, (L, B, D), jnp.float32)   # seq-first, like PyTorch MHA input
    layer_params = [init_layer_params(k, D, EXPERTS) for k in layer_keys]

    ref = _ref_transformer(x, layer_params, HEADS)

    # f32 compute path: strict structural check against the pure-JAX reference
    # (uses exact reciprocal in the softmax on this path).
    out_f32 = temporal_transformer(x, layer_params, HEADS, regularization=False,
                                   compute_dtype=jnp.float32)
    out_f32 = jax.block_until_ready(out_f32)
    assert out_f32.shape == (L, B, D)
    assert jnp.allclose(out_f32, ref, rtol=5e-3, atol=5e-3), \
        "Pallas f32 output mismatch vs JAX reference"

    # bf16 compute path (default, MXU-friendly): looser tolerance.
    out_bf16 = temporal_transformer(x, layer_params, HEADS, regularization=False)
    out_bf16 = jax.block_until_ready(out_bf16)
    assert out_bf16.shape == (L, B, D)
    assert jnp.allclose(out_bf16, ref, rtol=3e-2, atol=3e-2), \
        "Pallas bf16 output mismatch vs JAX reference"

    print("KERNEL_OK")
</pallas_src>

<mosaic_0001>
module attributes {stable_mosaic.version = 11 : i64} {
  func.func @_block_kernel(%arg0: i32, %arg1: i32, %arg2: memref<1x8x32xf32, #tpu.memory_space<vmem>>, %arg3: memref<1x32xf32, #tpu.memory_space<vmem>>, %arg4: memref<1x32xf32, #tpu.memory_space<vmem>>, %arg5: memref<32x96xf32, #tpu.memory_space<vmem>>, %arg6: memref<1x96xf32, #tpu.memory_space<vmem>>, %arg7: memref<32x32xf32, #tpu.memory_space<vmem>>, %arg8: memref<1x32xf32, #tpu.memory_space<vmem>>, %arg9: memref<1x32xf32, #tpu.memory_space<vmem>>, %arg10: memref<1x32xf32, #tpu.memory_space<vmem>>, %arg11: memref<1x32xf32, #tpu.memory_space<vmem>>, %arg12: memref<32x128xf32, #tpu.memory_space<vmem>>, %arg13: memref<1x128xf32, #tpu.memory_space<vmem>>, %arg14: memref<128x32xf32, #tpu.memory_space<vmem>>, %arg15: memref<1x8x32xf32, #tpu.memory_space<vmem>>, %arg16: memref<8x32xf32, #tpu.memory_space<vmem>>, %arg17: memref<8x32xf32, #tpu.memory_space<vmem>>, %arg18: memref<8x32xf32, #tpu.memory_space<vmem>>) attributes {dimension_semantics = [#tpu.dimension_semantics<parallel>, #tpu.dimension_semantics<arbitrary>], iteration_bounds = array<i64: 2, 1>, scalar_prefetch = 0 : i64, scratch_operands = 3 : i64, tpu.core_type = #tpu.core_type<tc>, window_params = [{transform_indices = @transform_0, window_bounds = array<i64: 1, 8, 32>}, {pipeline_mode = #tpu.pipeline_mode<synchronous>, transform_indices = @transform_1, window_bounds = array<i64: 1, 32>}, {pipeline_mode = #tpu.pipeline_mode<synchronous>, transform_indices = @transform_2, window_bounds = array<i64: 1, 32>}, {pipeline_mode = #tpu.pipeline_mode<synchronous>, transform_indices = @transform_3, window_bounds = array<i64: 32, 96>}, {pipeline_mode = #tpu.pipeline_mode<synchronous>, transform_indices = @transform_4, window_bounds = array<i64: 1, 96>}, {pipeline_mode = #tpu.pipeline_mode<synchronous>, transform_indices = @transform_5, window_bounds = array<i64: 32, 32>}, {pipeline_mode = #tpu.pipeline_mode<synchronous>, transform_indices = @transform_6, window_bounds = array<i64: 1, 32>}, {pipeline_mode = #tpu.pipeline_mode<synchronous>, transform_indices = @transform_7, window_bounds = array<i64: 1, 32>}, {pipeline_mode = #tpu.pipeline_mode<synchronous>, transform_indices = @transform_8, window_bounds = array<i64: 1, 32>}, {pipeline_mode = #tpu.pipeline_mode<synchronous>, transform_indices = @transform_9, window_bounds = array<i64: 1, 32>}, {transform_indices = @transform_10, window_bounds = array<i64: 32, 128>}, {transform_indices = @transform_11, window_bounds = array<i64: 1, 128>}, {transform_indices = @transform_12, window_bounds = array<i64: 128, 32>}, {transform_indices = @transform_13, window_bounds = array<i64: 1, 8, 32>}]} {
    %c0_i32 = arith.constant 0 : i32
    %0 = arith.cmpi eq, %arg1, %c0_i32 : i32
    %1 = arith.extui %0 : i1 to i32
    %c0_i32_0 = arith.constant 0 : i32
    %2 = arith.cmpi ne, %1, %c0_i32_0 : i32
    scf.if %2 {
      %c0_17 = arith.constant 0 : index
      %c0_18 = arith.constant 0 : index
      %c0_19 = arith.constant 0 : index
      %25 = vector.load %arg2[%c0_17, %c0_18, %c0_19] : memref<1x8x32xf32, #tpu.memory_space<vmem>>, vector<1x8x32xf32>
      %26 = vector.shape_cast %25 : vector<1x8x32xf32> to vector<8x32xf32>
      %c0_20 = arith.constant 0 : index
      %c0_21 = arith.constant 0 : index
      %27 = vector.load %arg3[%c0_20, %c0_21] : memref<1x32xf32, #tpu.memory_space<vmem>>, vector<1x32xf32>
      %c0_22 = arith.constant 0 : index
      %c0_23 = arith.constant 0 : index
      %28 = vector.load %arg4[%c0_22, %c0_23] : memref<1x32xf32, #tpu.memory_space<vmem>>, vector<1x32xf32>
      %cst_24 = arith.constant dense<0.000000e+00> : vector<8xf32>
      %29 = vector.multi_reduction <add>, %26, %cst_24 [1] : vector<8x32xf32> to vector<8xf32>
      %30 = vector.shape_cast %29 : vector<8xf32> to vector<8x1xf32>
      %cst_25 = arith.constant 3.200000e+01 : f32
      %31 = vector.broadcast %cst_25 : f32 to vector<8x1xf32>
      %32 = arith.divf %30, %31 : vector<8x1xf32>
      %33 = vector.broadcast %32 : vector<8x1xf32> to vector<8x32xf32>
      %34 = arith.subf %26, %33 : vector<8x32xf32>
      %35 = arith.mulf %34, %34 : vector<8x32xf32>
      %cst_26 = arith.constant dense<0.000000e+00> : vector<8xf32>
      %36 = vector.multi_reduction <add>, %35, %cst_26 [1] : vector<8x32xf32> to vector<8xf32>
      %37 = vector.shape_cast %36 : vector<8xf32> to vector<8x1xf32>
      %cst_27 = arith.constant 3.200000e+01 : f32
      %38 = vector.broadcast %cst_27 : f32 to vector<8x1xf32>
      %39 = arith.divf %37, %38 : vector<8x1xf32>
      %cst_28 = arith.constant 9.99999996E-13 : f32
      %40 = vector.broadcast %cst_28 : f32 to vector<8x1xf32>
      %41 = arith.addf %39, %40 : vector<8x1xf32>
      %42 = math.rsqrt %41 : vector<8x1xf32>
      %43 = vector.broadcast %42 : vector<8x1xf32> to vector<8x32xf32>
      %44 = arith.mulf %34, %43 : vector<8x32xf32>
      %45 = vector.broadcast %27 : vector<1x32xf32> to vector<8x32xf32>
      %46 = arith.mulf %44, %45 : vector<8x32xf32>
      %47 = vector.broadcast %28 : vector<1x32xf32> to vector<8x32xf32>
      %48 = arith.addf %46, %47 : vector<8x32xf32>
      %c0_29 = arith.constant 0 : index
      %c0_30 = arith.constant 0 : index
      %49 = vector.load %arg5[%c0_29, %c0_30] : memref<32x96xf32, #tpu.memory_space<vmem>>, vector<32x96xf32>
      %cst_31 = arith.constant dense<0.000000e+00> : vector<8x96xf32>
      %50 = tpu.matmul %48, %49, %cst_31 {dimension_numbers = #tpu.dot_dimension_numbers<[1], [0], [0], [1], [0, 0, 1, 1], [], []>} : vector<8x32xf32>, vector<32x96xf32>, vector<8x96xf32> -> vector<8x96xf32>
      %c0_32 = arith.constant 0 : index
      %c0_33 = arith.constant 0 : index
      %51 = vector.load %arg6[%c0_32, %c0_33] : memref<1x96xf32, #tpu.memory_space<vmem>>, vector<1x96xf32>
      %52 = vector.broadcast %51 : vector<1x96xf32> to vector<8x96xf32>
      %53 = arith.addf %50, %52 : vector<8x96xf32>
      %54 = vector.shape_cast %53 : vector<8x96xf32> to vector<1x8x96xf32>
      %55 = vector.extract_strided_slice %54 {offsets = [0, 0, 0], sizes = [1, 8, 32], strides = [1, 1, 1]} : vector<1x8x96xf32> to vector<1x8x32xf32>
      %56 = vector.extract_strided_slice %54 {offsets = [0, 0, 32], sizes = [1, 8, 32], strides = [1, 1, 1]} : vector<1x8x96xf32> to vector<1x8x32xf32>
      %57 = vector.extract_strided_slice %54 {offsets = [0, 0, 64], sizes = [1, 8, 32], strides = [1, 1, 1]} : vector<1x8x96xf32> to vector<1x8x32xf32>
      %58 = vector.extract_strided_slice %55 {offsets = [0, 0, 0], sizes = [1, 8, 8], strides = [1, 1, 1]} : vector<1x8x32xf32> to vector<1x8x8xf32>
      %59 = vector.extract_strided_slice %56 {offsets = [0, 0, 0], sizes = [1, 8, 8], strides = [1, 1, 1]} : vector<1x8x32xf32> to vector<1x8x8xf32>
      %60 = vector.extract_strided_slice %57 {offsets = [0, 0, 0], sizes = [1, 8, 8], strides = [1, 1, 1]} : vector<1x8x32xf32> to vector<1x8x8xf32>
      "tpu.trace_start"() <{level = 10 : i32, message = "bqd,bkd->bqk"}> : () -> ()
      %cst_34 = arith.constant dense<0.000000e+00> : vector<1x8x8xf32>
      %61 = tpu.matmul %58, %59, %cst_34 {dimension_numbers = #tpu.dot_dimension_numbers<[2], [2], [1], [1], [0, 0, 0, 1, 1, 1], [0], [0]>} : vector<1x8x8xf32>, vector<1x8x8xf32>, vector<1x8x8xf32> -> vector<1x8x8xf32>
      "tpu.trace_stop"() : () -> ()
      %cst_35 = arith.constant 0.353553385 : f32
      %62 = vector.broadcast %cst_35 : f32 to vector<1x8x8xf32>
      %63 = arith.mulf %61, %62 : vector<1x8x8xf32>
      %cst_36 = arith.constant dense<0xFF800000> : vector<1x8xf32>
      %64 = vector.multi_reduction <maximumf>, %63, %cst_36 [2] : vector<1x8x8xf32> to vector<1x8xf32>
      %65 = vector.shape_cast %64 : vector<1x8xf32> to vector<1x8x1xf32>
      %66 = vector.broadcast %65 : vector<1x8x1xf32> to vector<1x8x8xf32>
      %67 = arith.subf %63, %66 : vector<1x8x8xf32>
      %68 = math.exp %67 : vector<1x8x8xf32>
      %cst_37 = arith.constant dense<0.000000e+00> : vector<1x8xf32>
      %69 = vector.multi_reduction <add>, %68, %cst_37 [2] : vector<1x8x8xf32> to vector<1x8xf32>
      %70 = vector.shape_cast %69 : vector<1x8xf32> to vector<1x8x1xf32>
      %71 = tpu.reciprocal %70 : vector<1x8x1xf32> -> vector<1x8x1xf32>
      %72 = vector.broadcast %71 : vector<1x8x1xf32> to vector<1x8x8xf32>
      %73 = arith.mulf %68, %72 : vector<1x8x8xf32>
      "tpu.trace_start"() <{level = 10 : i32, message = "bqk,bkd->bqd"}> : () -> ()
      %cst_38 = arith.constant dense<0.000000e+00> : vector<1x8x8xf32>
      %74 = tpu.matmul %73, %60, %cst_38 {dimension_numbers = #tpu.dot_dimension_numbers<[2], [1], [1], [2], [0, 0, 0, 1, 1, 2], [0], [0]>} : vector<1x8x8xf32>, vector<1x8x8xf32>, vector<1x8x8xf32> -> vector<1x8x8xf32>
      "tpu.trace_stop"() : () -> ()
      %75 = vector.shape_cast %74 : vector<1x8x8xf32> to vector<8x8xf32>
      %c0_39 = arith.constant 0 : index
      %c0_40 = arith.constant 0 : index
      %76 = vector.load %arg18[%c0_39, %c0_40] : memref<8x32xf32, #tpu.memory_space<vmem>>, vector<8x8xf32>
      tpu.vector_store %arg18[%c0_39, %c0_40], %75 {strides = array<i32>} : memref<8x32xf32, #tpu.memory_space<vmem>>, vector<8x8xf32>,
      %77 = vector.extract_strided_slice %55 {offsets = [0, 0, 8], sizes = [1, 8, 8], strides = [1, 1, 1]} : vector<1x8x32xf32> to vector<1x8x8xf32>
      %78 = vector.extract_strided_slice %56 {offsets = [0, 0, 8], sizes = [1, 8, 8], strides = [1, 1, 1]} : vector<1x8x32xf32> to vector<1x8x8xf32>
      %79 = vector.extract_strided_slice %57 {offsets = [0, 0, 8], sizes = [1, 8, 8], strides = [1, 1, 1]} : vector<1x8x32xf32> to vector<1x8x8xf32>
      "tpu.trace_start"() <{level = 10 : i32, message = "bqd,bkd->bqk"}> : () -> ()
      %cst_41 = arith.constant dense<0.000000e+00> : vector<1x8x8xf32>
      %80 = tpu.matmul %77, %78, %cst_41 {dimension_numbers = #tpu.dot_dimension_numbers<[2], [2], [1], [1], [0, 0, 0, 1, 1, 1], [0], [0]>} : vector<1x8x8xf32>, vector<1x8x8xf32>, vector<1x8x8xf32> -> vector<1x8x8xf32>
      "tpu.trace_stop"() : () -> ()
      %cst_42 = arith.constant 0.353553385 : f32
      %81 = vector.broadcast %cst_42 : f32 to vector<1x8x8xf32>
      %82 = arith.mulf %80, %81 : vector<1x8x8xf32>
      %cst_43 = arith.constant dense<0xFF800000> : vector<1x8xf32>
      %83 = vector.multi_reduction <maximumf>, %82, %cst_43 [2] : vector<1x8x8xf32> to vector<1x8xf32>
      %84 = vector.shape_cast %83 : vector<1x8xf32> to vector<1x8x1xf32>
      %85 = vector.broadcast %84 : vector<1x8x1xf32> to vector<1x8x8xf32>
      %86 = arith.subf %82, %85 : vector<1x8x8xf32>
      %87 = math.exp %86 : vector<1x8x8xf32>
      %cst_44 = arith.constant dense<0.000000e+00> : vector<1x8xf32>
      %88 = vector.multi_reduction <add>, %87, %cst_44 [2] : vector<1x8x8xf32> to vector<1x8xf32>
      %89 = vector.shape_cast %88 : vector<1x8xf32> to vector<1x8x1xf32>
      %90 = tpu.reciprocal %89 : vector<1x8x1xf32> -> vector<1x8x1xf32>
      %91 = vector.broadcast %90 : vector<1x8x1xf32> to vector<1x8x8xf32>
      %92 = arith.mulf %87, %91 : vector<1x8x8xf32>
      "tpu.trace_start"() <{level = 10 : i32, message = "bqk,bkd->bqd"}> : () -> ()
      %cst_45 = arith.constant dense<0.000000e+00> : vector<1x8x8xf32>
      %93 = tpu.matmul %92, %79, %cst_45 {dimension_numbers = #tpu.dot_dimension_numbers<[2], [1], [1], [2], [0, 0, 0, 1, 1, 2], [0], [0]>} : vector<1x8x8xf32>, vector<1x8x8xf32>, vector<1x8x8xf32> -> vector<1x8x8xf32>
      "tpu.trace_stop"() : () -> ()
      %94 = vector.shape_cast %93 : vector<1x8x8xf32> to vector<8x8xf32>
      %c0_46 = arith.constant 0 : index
      %c8 = arith.constant 8 : index
      %95 = vector.load %arg18[%c0_46, %c8] : memref<8x32xf32, #tpu.memory_space<vmem>>, vector<8x8xf32>
      tpu.vector_store %arg18[%c0_46, %c8], %94 {strides = array<i32>} : memref<8x32xf32, #tpu.memory_space<vmem>>, vector<8x8xf32>,
      %96 = vector.extract_strided_slice %55 {offsets = [0, 0, 16], sizes = [1, 8, 8], strides = [1, 1, 1]} : vector<1x8x32xf32> to vector<1x8x8xf32>
      %97 = vector.extract_strided_slice %56 {offsets = [0, 0, 16], sizes = [1, 8, 8], strides = [1, 1, 1]} : vector<1x8x32xf32> to vector<1x8x8xf32>
      %98 = vector.extract_strided_slice %57 {offsets = [0, 0, 16], sizes = [1, 8, 8], strides = [1, 1, 1]} : vector<1x8x32xf32> to vector<1x8x8xf32>
      "tpu.trace_start"() <{level = 10 : i32, message = "bqd,bkd->bqk"}> : () -> ()
      %cst_47 = arith.constant dense<0.000000e+00> : vector<1x8x8xf32>
      %99 = tpu.matmul %96, %97, %cst_47 {dimension_numbers = #tpu.dot_dimension_numbers<[2], [2], [1], [1], [0, 0, 0, 1, 1, 1], [0], [0]>} : vector<1x8x8xf32>, vector<1x8x8xf32>, vector<1x8x8xf32> -> vector<1x8x8xf32>
      "tpu.trace_stop"() : () -> ()
      %cst_48 = arith.constant 0.353553385 : f32
      %100 = vector.broadcast %cst_48 : f32 to vector<1x8x8xf32>
      %101 = arith.mulf %99, %100 : vector<1x8x8xf32>
      %cst_49 = arith.constant dense<0xFF800000> : vector<1x8xf32>
      %102 = vector.multi_reduction <maximumf>, %101, %cst_49 [2] : vector<1x8x8xf32> to vector<1x8xf32>
      %103 = vector.shape_cast %102 : vector<1x8xf32> to vector<1x8x1xf32>
      %104 = vector.broadcast %103 : vector<1x8x1xf32> to vector<1x8x8xf32>
      %105 = arith.subf %101, %104 : vector<1x8x8xf32>
      %106 = math.exp %105 : vector<1x8x8xf32>
      %cst_50 = arith.constant dense<0.000000e+00> : vector<1x8xf32>
      %107 = vector.multi_reduction <add>, %106, %cst_50 [2] : vector<1x8x8xf32> to vector<1x8xf32>
      %108 = vector.shape_cast %107 : vector<1x8xf32> to vector<1x8x1xf32>
      %109 = tpu.reciprocal %108 : vector<1x8x1xf32> -> vector<1x8x1xf32>
      %110 = vector.broadcast %109 : vector<1x8x1xf32> to vector<1x8x8xf32>
      %111 = arith.mulf %106, %110 : vector<1x8x8xf32>
      "tpu.trace_start"() <{level = 10 : i32, message = "bqk,bkd->bqd"}> : () -> ()
      %cst_51 = arith.constant dense<0.000000e+00> : vector<1x8x8xf32>
      %112 = tpu.matmul %111, %98, %cst_51 {dimension_numbers = #tpu.dot_dimension_numbers<[2], [1], [1], [2], [0, 0, 0, 1, 1, 2], [0], [0]>} : vector<1x8x8xf32>, vector<1x8x8xf32>, vector<1x8x8xf32> -> vector<1x8x8xf32>
      "tpu.trace_stop"() : () -> ()
      %113 = vector.shape_cast %112 : vector<1x8x8xf32> to vector<8x8xf32>
      %c0_52 = arith.constant 0 : index
      %c16 = arith.constant 16 : index
      %114 = vector.load %arg18[%c0_52, %c16] : memref<8x32xf32, #tpu.memory_space<vmem>>, vector<8x8xf32>
      tpu.vector_store %arg18[%c0_52, %c16], %113 {strides = array<i32>} : memref<8x32xf32, #tpu.memory_space<vmem>>, vector<8x8xf32>,
      %115 = vector.extract_strided_slice %55 {offsets = [0, 0, 24], sizes = [1, 8, 8], strides = [1, 1, 1]} : vector<1x8x32xf32> to vector<1x8x8xf32>
      %116 = vector.extract_strided_slice %56 {offsets = [0, 0, 24], sizes = [1, 8, 8], strides = [1, 1, 1]} : vector<1x8x32xf32> to vector<1x8x8xf32>
      %117 = vector.extract_strided_slice %57 {offsets = [0, 0, 24], sizes = [1, 8, 8], strides = [1, 1, 1]} : vector<1x8x32xf32> to vector<1x8x8xf32>
      "tpu.trace_start"() <{level = 10 : i32, message = "bqd,bkd->bqk"}> : () -> ()
      %cst_53 = arith.constant dense<0.000000e+00> : vector<1x8x8xf32>
      %118 = tpu.matmul %115, %116, %cst_53 {dimension_numbers = #tpu.dot_dimension_numbers<[2], [2], [1], [1], [0, 0, 0, 1, 1, 1], [0], [0]>} : vector<1x8x8xf32>, vector<1x8x8xf32>, vector<1x8x8xf32> -> vector<1x8x8xf32>
      "tpu.trace_stop"() : () -> ()
      %cst_54 = arith.constant 0.353553385 : f32
      %119 = vector.broadcast %cst_54 : f32 to vector<1x8x8xf32>
      %120 = arith.mulf %118, %119 : vector<1x8x8xf32>
      %cst_55 = arith.constant dense<0xFF800000> : vector<1x8xf32>
      %121 = vector.multi_reduction <maximumf>, %120, %cst_55 [2] : vector<1x8x8xf32> to vector<1x8xf32>
      %122 = vector.shape_cast %121 : vector<1x8xf32> to vector<1x8x1xf32>
      %123 = vector.broadcast %122 : vector<1x8x1xf32> to vector<1x8x8xf32>
      %124 = arith.subf %120, %123 : vector<1x8x8xf32>
      %125 = math.exp %124 : vector<1x8x8xf32>
      %cst_56 = arith.constant dense<0.000000e+00> : vector<1x8xf32>
      %126 = vector.multi_reduction <add>, %125, %cst_56 [2] : vector<1x8x8xf32> to vector<1x8xf32>
      %127 = vector.shape_cast %126 : vector<1x8xf32> to vector<1x8x1xf32>
      %128 = tpu.reciprocal %127 : vector<1x8x1xf32> -> vector<1x8x1xf32>
      %129 = vector.broadcast %128 : vector<1x8x1xf32> to vector<1x8x8xf32>
      %130 = arith.mulf %125, %129 : vector<1x8x8xf32>
      "tpu.trace_start"() <{level = 10 : i32, message = "bqk,bkd->bqd"}> : () -> ()
      %cst_57 = arith.constant dense<0.000000e+00> : vector<1x8x8xf32>
      %131 = tpu.matmul %130, %117, %cst_57 {dimension_numbers = #tpu.dot_dimension_numbers<[2], [1], [1], [2], [0, 0, 0, 1, 1, 2], [0], [0]>} : vector<1x8x8xf32>, vector<1x8x8xf32>, vector<1x8x8xf32> -> vector<1x8x8xf32>
      "tpu.trace_stop"() : () -> ()
      %132 = vector.shape_cast %131 : vector<1x8x8xf32> to vector<8x8xf32>
      %c0_58 = arith.constant 0 : index
      %c24 = arith.constant 24 : index
      %133 = vector.load %arg18[%c0_58, %c24] : memref<8x32xf32, #tpu.memory_space<vmem>>, vector<8x8xf32>
      tpu.vector_store %arg18[%c0_58, %c24], %132 {strides = array<i32>} : memref<8x32xf32, #tpu.memory_space<vmem>>, vector<8x8xf32>,
      %c0_59 = arith.constant 0 : index
      %c0_60 = arith.constant 0 : index
      %134 = vector.load %arg18[%c0_59, %c0_60] : memref<8x32xf32, #tpu.memory_space<vmem>>, vector<8x32xf32>
      %c0_61 = arith.constant 0 : index
      %c0_62 = arith.constant 0 : index
      %135 = vector.load %arg7[%c0_61, %c0_62] : memref<32x32xf32, #tpu.memory_space<vmem>>, vector<32x32xf32>
      %cst_63 = arith.constant dense<0.000000e+00> : vector<8x32xf32>
      %136 = tpu.matmul %134, %135, %cst_63 {dimension_numbers = #tpu.dot_dimension_numbers<[1], [0], [0], [1], [0, 0, 1, 1], [], []>} : vector<8x32xf32>, vector<32x32xf32>, vector<8x32xf32> -> vector<8x32xf32>
      %c0_64 = arith.constant 0 : index
      %c0_65 = arith.constant 0 : index
      %137 = vector.load %arg8[%c0_64, %c0_65] : memref<1x32xf32, #tpu.memory_space<vmem>>, vector<1x32xf32>
      %138 = vector.broadcast %137 : vector<1x32xf32> to vector<8x32xf32>
      %139 = arith.addf %136, %138 : vector<8x32xf32>
      %140 = arith.addf %26, %139 : vector<8x32xf32>
      %c0_66 = arith.constant 0 : index
      %c0_67 = arith.constant 0 : index
      %141 = vector.load %arg16[%c0_66, %c0_67] : memref<8x32xf32, #tpu.memory_space<vmem>>, vector<8x32xf32>
      tpu.vector_store %arg16[%c0_66, %c0_67], %140 {strides = array<i32>} : memref<8x32xf32, #tpu.memory_space<vmem>>, vector<8x32xf32>,
      %c0_68 = arith.constant 0 : index
      %c0_69 = arith.constant 0 : index
      %142 = vector.load %arg9[%c0_68, %c0_69] : memref<1x32xf32, #tpu.memory_space<vmem>>, vector<1x32xf32>
      %c0_70 = arith.constant 0 : index
      %c0_71 = arith.constant 0 : index
      %143 = vector.load %arg10[%c0_70, %c0_71] : memref<1x32xf32, #tpu.memory_space<vmem>>, vector<1x32xf32>
      %cst_72 = arith.constant dense<0.000000e+00> : vector<8xf32>
      %144 = vector.multi_reduction <add>, %140, %cst_72 [1] : vector<8x32xf32> to vector<8xf32>
      %145 = vector.shape_cast %144 : vector<8xf32> to vector<8x1xf32>
      %cst_73 = arith.constant 3.200000e+01 : f32
      %146 = vector.broadcast %cst_73 : f32 to vector<8x1xf32>
      %147 = arith.divf %145, %146 : vector<8x1xf32>
      %148 = vector.broadcast %147 : vector<8x1xf32> to vector<8x32xf32>
      %149 = arith.subf %140, %148 : vector<8x32xf32>
      %150 = arith.mulf %149, %149 : vector<8x32xf32>
      %cst_74 = arith.constant dense<0.000000e+00> : vector<8xf32>
      %151 = vector.multi_reduction <add>, %150, %cst_74 [1] : vector<8x32xf32> to vector<8xf32>
      %152 = vector.shape_cast %151 : vector<8xf32> to vector<8x1xf32>
      %cst_75 = arith.constant 3.200000e+01 : f32
      %153 = vector.broadcast %cst_75 : f32 to vector<8x1xf32>
      %154 = arith.divf %152, %153 : vector<8x1xf32>
      %cst_76 = arith.constant 9.99999996E-13 : f32
      %155 = vector.broadcast %cst_76 : f32 to vector<8x1xf32>
      %156 = arith.addf %154, %155 : vector<8x1xf32>
      %157 = math.rsqrt %156 : vector<8x1xf32>
      %158 = vector.broadcast %157 : vector<8x1xf32> to vector<8x32xf32>
      %159 = arith.mulf %149, %158 : vector<8x32xf32>
      %160 = vector.broadcast %142 : vector<1x32xf32> to vector<8x32xf32>
      %161 = arith.mulf %159, %160 : vector<8x32xf32>
      %162 = vector.broadcast %143 : vector<1x32xf32> to vector<8x32xf32>
      %163 = arith.addf %161, %162 : vector<8x32xf32>
      %c0_77 = arith.constant 0 : index
      %c0_78 = arith.constant 0 : index
      %164 = vector.load %arg17[%c0_77, %c0_78] : memref<8x32xf32, #tpu.memory_space<vmem>>, vector<8x32xf32>
      tpu.vector_store %arg17[%c0_77, %c0_78], %163 {strides = array<i32>} : memref<8x32xf32, #tpu.memory_space<vmem>>, vector<8x32xf32>,
      %cst_79 = arith.constant 0.000000e+00 : f32
      %165 = vector.broadcast %cst_79 : f32 to vector<8x32xf32>
      %c0_80 = arith.constant 0 : index
      %c0_81 = arith.constant 0 : index
      %166 = vector.load %arg18[%c0_80, %c0_81] : memref<8x32xf32, #tpu.memory_space<vmem>>, vector<8x32xf32>
      tpu.vector_store %arg18[%c0_80, %c0_81], %165 {strides = array<i32>} : memref<8x32xf32, #tpu.memory_space<vmem>>, vector<8x32xf32>,
    } else {
    }
    %c0 = arith.constant 0 : index
    %c0_1 = arith.constant 0 : index
    %3 = vector.load %arg17[%c0, %c0_1] : memref<8x32xf32, #tpu.memory_space<vmem>>, vector<8x32xf32>
    %c0_2 = arith.constant 0 : index
    %c0_3 = arith.constant 0 : index
    %4 = vector.load %arg12[%c0_2, %c0_3] : memref<32x128xf32, #tpu.memory_space<vmem>>, vector<32x128xf32>
    %cst = arith.constant dense<0.000000e+00> : vector<8x128xf32>
    %5 = tpu.matmul %3, %4, %cst {dimension_numbers = #tpu.dot_dimension_numbers<[1], [0], [0], [1], [0, 0, 1, 1], [], []>} : vector<8x32xf32>, vector<32x128xf32>, vector<8x128xf32> -> vector<8x128xf32>
    %c0_4 = arith.constant 0 : index
    %c0_5 = arith.constant 0 : index
    %6 = vector.load %arg13[%c0_4, %c0_5] : memref<1x128xf32, #tpu.memory_space<vmem>>, vector<1x128xf32>
    %7 = vector.broadcast %6 : vector<1x128xf32> to vector<8x128xf32>
    %8 = arith.addf %5, %7 : vector<8x128xf32>
    %cst_6 = arith.constant 1.702000e+00 : f32
    %9 = vector.broadcast %cst_6 : f32 to vector<8x128xf32>
    %10 = arith.mulf %9, %8 : vector<8x128xf32>
    %11 = arith.negf %10 : vector<8x128xf32>
    %12 = math.exp %11 : vector<8x128xf32>
    %cst_7 = arith.constant 1.000000e+00 : f32
    %13 = vector.broadcast %cst_7 : f32 to vector<8x128xf32>
    %14 = arith.addf %13, %12 : vector<8x128xf32>
    %15 = arith.divf %13, %14 : vector<8x128xf32>
    %16 = arith.mulf %8, %15 : vector<8x128xf32>
    %c0_8 = arith.constant 0 : index
    %c0_9 = arith.constant 0 : index
    %17 = vector.load %arg18[%c0_8, %c0_9] : memref<8x32xf32, #tpu.memory_space<vmem>>, vector<8x32xf32>
    %c0_10 = arith.constant 0 : index
    %c0_11 = arith.constant 0 : index
    %18 = vector.load %arg14[%c0_10, %c0_11] : memref<128x32xf32, #tpu.memory_space<vmem>>, vector<128x32xf32>
    %cst_12 = arith.constant dense<0.000000e+00> : vector<8x32xf32>
    %19 = tpu.matmul %16, %18, %cst_12 {dimension_numbers = #tpu.dot_dimension_numbers<[1], [0], [0], [1], [0, 0, 1, 1], [], []>} : vector<8x128xf32>, vector<128x32xf32>, vector<8x32xf32> -> vector<8x32xf32>
    %20 = arith.addf %17, %19 : vector<8x32xf32>
    %c0_13 = arith.constant 0 : index
    %c0_14 = arith.constant 0 : index
    %21 = vector.load %arg18[%c0_13, %c0_14] : memref<8x32xf32, #tpu.memory_space<vmem>>, vector<8x32xf32>
    tpu.vector_store %arg18[%c0_13, %c0_14], %20 {strides = array<i32>} : memref<8x32xf32, #tpu.memory_space<vmem>>, vector<8x32xf32>,
    %c0_i32_15 = arith.constant 0 : i32
    %22 = arith.cmpi eq, %arg1, %c0_i32_15 : i32
    %23 = arith.extui %22 : i1 to i32
    %c0_i32_16 = arith.constant 0 : i32
    %24 = arith.cmpi ne, %23, %c0_i32_16 : i32
    scf.if %24 {
      %c0_17 = arith.constant 0 : index
      %c0_18 = arith.constant 0 : index
      %25 = vector.load %arg16[%c0_17, %c0_18] : memref<8x32xf32, #tpu.memory_space<vmem>>, vector<8x32xf32>
      %c0_19 = arith.constant 0 : index
      %c0_20 = arith.constant 0 : index
      %26 = vector.load %arg18[%c0_19, %c0_20] : memref<8x32xf32, #tpu.memory_space<vmem>>, vector<8x32xf32>
      %27 = arith.addf %25, %26 : vector<8x32xf32>
      %c0_21 = arith.constant 0 : index
      %c0_22 = arith.constant 0 : index
      %28 = vector.load %arg11[%c0_21, %c0_22] : memref<1x32xf32, #tpu.memory_space<vmem>>, vector<1x32xf32>
      %29 = vector.broadcast %28 : vector<1x32xf32> to vector<8x32xf32>
      %30 = arith.addf %27, %29 : vector<8x32xf32>
      %31 = vector.shape_cast %30 : vector<8x32xf32> to vector<1x8x32xf32>
      %c0_23 = arith.constant 0 : index
      %c0_24 = arith.constant 0 : index
      %c0_25 = arith.constant 0 : index
      %32 = vector.load %arg15[%c0_23, %c0_24, %c0_25] : memref<1x8x32xf32, #tpu.memory_space<vmem>>, vector<1x8x32xf32>
      tpu.vector_store %arg15[%c0_23, %c0_24, %c0_25], %31 {strides = array<i32>} : memref<1x8x32xf32, #tpu.memory_space<vmem>>, vector<1x8x32xf32>,
    } else {
    }
    return
  }
  func.func @transform_0(%arg0: i32, %arg1: i32) -> (i32, i32, i32) {
    %c0_i32 = arith.constant 0 : i32
    %c0_i32_0 = arith.constant 0 : i32
    %c0_i32_1 = arith.constant 0 : i32
    return %arg0, %c0_i32, %c0_i32_0 : i32, i32, i32
  }
  func.func @transform_1(%arg0: i32, %arg1: i32) -> (i32, i32) {
    %c0_i32 = arith.constant 0 : i32
    %c0_i32_0 = arith.constant 0 : i32
    %c0_i32_1 = arith.constant 0 : i32
    return %c0_i32, %c0_i32_0 : i32, i32
  }
  func.func @transform_2(%arg0: i32, %arg1: i32) -> (i32, i32) {
    %c0_i32 = arith.constant 0 : i32
    %c0_i32_0 = arith.constant 0 : i32
    %c0_i32_1 = arith.constant 0 : i32
    return %c0_i32, %c0_i32_0 : i32, i32
  }
  func.func @transform_3(%arg0: i32, %arg1: i32) -> (i32, i32) {
    %c0_i32 = arith.constant 0 : i32
    %c0_i32_0 = arith.constant 0 : i32
    %c0_i32_1 = arith.constant 0 : i32
    return %c0_i32, %c0_i32_0 : i32, i32
  }
  func.func @transform_4(%arg0: i32, %arg1: i32) -> (i32, i32) {
    %c0_i32 = arith.constant 0 : i32
    %c0_i32_0 = arith.constant 0 : i32
    %c0_i32_1 = arith.constant 0 : i32
    return %c0_i32, %c0_i32_0 : i32, i32
  }
  func.func @transform_5(%arg0: i32, %arg1: i32) -> (i32, i32) {
    %c0_i32 = arith.constant 0 : i32
    %c0_i32_0 = arith.constant 0 : i32
    %c0_i32_1 = arith.constant 0 : i32
    return %c0_i32, %c0_i32_0 : i32, i32
  }
  func.func @transform_6(%arg0: i32, %arg1: i32) -> (i32, i32) {
    %c0_i32 = arith.constant 0 : i32
    %c0_i32_0 = arith.constant 0 : i32
    %c0_i32_1 = arith.constant 0 : i32
    return %c0_i32, %c0_i32_0 : i32, i32
  }
  func.func @transform_7(%arg0: i32, %arg1: i32) -> (i32, i32) {
    %c0_i32 = arith.constant 0 : i32
    %c0_i32_0 = arith.constant 0 : i32
    %c0_i32_1 = arith.constant 0 : i32
    return %c0_i32, %c0_i32_0 : i32, i32
  }
  func.func @transform_8(%arg0: i32, %arg1: i32) -> (i32, i32) {
    %c0_i32 = arith.constant 0 : i32
    %c0_i32_0 = arith.constant 0 : i32
    %c0_i32_1 = arith.constant 0 : i32
    return %c0_i32, %c0_i32_0 : i32, i32
  }
  func.func @transform_9(%arg0: i32, %arg1: i32) -> (i32, i32) {
    %c0_i32 = arith.constant 0 : i32
    %c0_i32_0 = arith.constant 0 : i32
    %c0_i32_1 = arith.constant 0 : i32
    return %c0_i32, %c0_i32_0 : i32, i32
  }
  func.func @transform_10(%arg0: i32, %arg1: i32) -> (i32, i32) {
    %c0_i32 = arith.constant 0 : i32
    %c0_i32_0 = arith.constant 0 : i32
    return %c0_i32, %arg1 : i32, i32
  }
  func.func @transform_11(%arg0: i32, %arg1: i32) -> (i32, i32) {
    %c0_i32 = arith.constant 0 : i32
    %c0_i32_0 = arith.constant 0 : i32
    return %c0_i32, %arg1 : i32, i32
  }
  func.func @transform_12(%arg0: i32, %arg1: i32) -> (i32, i32) {
    %c0_i32 = arith.constant 0 : i32
    %c0_i32_0 = arith.constant 0 : i32
    return %arg1, %c0_i32 : i32, i32
  }
  func.func @transform_13(%arg0: i32, %arg1: i32) -> (i32, i32, i32) {
    %c0_i32 = arith.constant 0 : i32
    %c0_i32_0 = arith.constant 0 : i32
    %c0_i32_1 = arith.constant 0 : i32
    return %arg0, %c0_i32, %c0_i32_0 : i32, i32, i32
  }
}

module attributes {stable_mosaic.version = 11 : i64} {
  func.func @_block_kernel(%arg0: i32, %arg1: i32, %arg2: memref<1x8x32xf32, #tpu.memory_space<vmem>>, %arg3: memref<1x32xf32, #tpu.memory_space<vmem>>, %arg4: memref<1x32xf32, #tpu.memory_space<vmem>>, %arg5: memref<32x96xf32, #tpu.memory_space<vmem>>, %arg6: memref<1x96xf32, #tpu.memory_space<vmem>>, %arg7: memref<32x32xf32, #tpu.memory_space<vmem>>, %arg8: memref<1x32xf32, #tpu.memory_space<vmem>>, %arg9: memref<1x32xf32, #tpu.memory_space<vmem>>, %arg10: memref<1x32xf32, #tpu.memory_space<vmem>>, %arg11: memref<1x32xf32, #tpu.memory_space<vmem>>, %arg12: memref<32x128xf32, #tpu.memory_space<vmem>>, %arg13: memref<1x128xf32, #tpu.memory_space<vmem>>, %arg14: memref<128x32xf32, #tpu.memory_space<vmem>>, %arg15: memref<1x8x32xf32, #tpu.memory_space<vmem>>, %arg16: memref<8x32xf32, #tpu.memory_space<vmem>>, %arg17: memref<8x32xf32, #tpu.memory_space<vmem>>, %arg18: memref<8x32xf32, #tpu.memory_space<vmem>>) attributes {dimension_semantics = [#tpu.dimension_semantics<parallel>, #tpu.dimension_semantics<arbitrary>], iteration_bounds = array<i64: 2, 1>, scalar_prefetch = 0 : i64, scratch_operands = 3 : i64, tpu.core_type = #tpu.core_type<tc>, window_params = [{transform_indices = @transform_0, window_bounds = array<i64: 1, 8, 32>}, {pipeline_mode = #tpu.pipeline_mode<synchronous>, transform_indices = @transform_1, window_bounds = array<i64: 1, 32>}, {pipeline_mode = #tpu.pipeline_mode<synchronous>, transform_indices = @transform_2, window_bounds = array<i64: 1, 32>}, {pipeline_mode = #tpu.pipeline_mode<synchronous>, transform_indices = @transform_3, window_bounds = array<i64: 32, 96>}, {pipeline_mode = #tpu.pipeline_mode<synchronous>, transform_indices = @transform_4, window_bounds = array<i64: 1, 96>}, {pipeline_mode = #tpu.pipeline_mode<synchronous>, transform_indices = @transform_5, window_bounds = array<i64: 32, 32>}, {pipeline_mode = #tpu.pipeline_mode<synchronous>, transform_indices = @transform_6, window_bounds = array<i64: 1, 32>}, {pipeline_mode = #tpu.pipeline_mode<synchronous>, transform_indices = @transform_7, window_bounds = array<i64: 1, 32>}, {pipeline_mode = #tpu.pipeline_mode<synchronous>, transform_indices = @transform_8, window_bounds = array<i64: 1, 32>}, {pipeline_mode = #tpu.pipeline_mode<synchronous>, transform_indices = @transform_9, window_bounds = array<i64: 1, 32>}, {transform_indices = @transform_10, window_bounds = array<i64: 32, 128>}, {transform_indices = @transform_11, window_bounds = array<i64: 1, 128>}, {transform_indices = @transform_12, window_bounds = array<i64: 128, 32>}, {transform_indices = @transform_13, window_bounds = array<i64: 1, 8, 32>}]} {
    %c0_i32 = arith.constant 0 : i32
    %0 = arith.cmpi eq, %arg1, %c0_i32 : i32
    %1 = arith.extui %0 : i1 to i32
    %c0_i32_0 = arith.constant 0 : i32
    %2 = arith.cmpi ne, %1, %c0_i32_0 : i32
    scf.if %2 {
      %c0_17 = arith.constant 0 : index
      %c0_18 = arith.constant 0 : index
      %c0_19 = arith.constant 0 : index
      %25 = vector.load %arg2[%c0_17, %c0_18, %c0_19] : memref<1x8x32xf32, #tpu.memory_space<vmem>>, vector<1x8x32xf32>
      %26 = vector.shape_cast %25 : vector<1x8x32xf32> to vector<8x32xf32>
      %c0_20 = arith.constant 0 : index
      %c0_21 = arith.constant 0 : index
      %27 = vector.load %arg3[%c0_20, %c0_21] : memref<1x32xf32, #tpu.memory_space<vmem>>, vector<1x32xf32>
      %c0_22 = arith.constant 0 : index
      %c0_23 = arith.constant 0 : index
      %28 = vector.load %arg4[%c0_22, %c0_23] : memref<1x32xf32, #tpu.memory_space<vmem>>, vector<1x32xf32>
      %cst_24 = arith.constant dense<0.000000e+00> : vector<8xf32>
      %29 = vector.multi_reduction <add>, %26, %cst_24 [1] : vector<8x32xf32> to vector<8xf32>
      %30 = vector.shape_cast %29 : vector<8xf32> to vector<8x1xf32>
      %cst_25 = arith.constant 3.200000e+01 : f32
      %31 = vector.broadcast %cst_25 : f32 to vector<8x1xf32>
      %32 = arith.divf %30, %31 : vector<8x1xf32>
      %33 = vector.broadcast %32 : vector<8x1xf32> to vector<8x32xf32>
      %34 = arith.subf %26, %33 : vector<8x32xf32>
      %35 = arith.mulf %34, %34 : vector<8x32xf32>
      %cst_26 = arith.constant dense<0.000000e+00> : vector<8xf32>
      %36 = vector.multi_reduction <add>, %35, %cst_26 [1] : vector<8x32xf32> to vector<8xf32>
      %37 = vector.shape_cast %36 : vector<8xf32> to vector<8x1xf32>
      %cst_27 = arith.constant 3.200000e+01 : f32
      %38 = vector.broadcast %cst_27 : f32 to vector<8x1xf32>
      %39 = arith.divf %37, %38 : vector<8x1xf32>
      %cst_28 = arith.constant 9.99999996E-13 : f32
      %40 = vector.broadcast %cst_28 : f32 to vector<8x1xf32>
      %41 = arith.addf %39, %40 : vector<8x1xf32>
      %42 = math.rsqrt %41 : vector<8x1xf32>
      %43 = vector.broadcast %42 : vector<8x1xf32> to vector<8x32xf32>
      %44 = arith.mulf %34, %43 : vector<8x32xf32>
      %45 = vector.broadcast %27 : vector<1x32xf32> to vector<8x32xf32>
      %46 = arith.mulf %44, %45 : vector<8x32xf32>
      %47 = vector.broadcast %28 : vector<1x32xf32> to vector<8x32xf32>
      %48 = arith.addf %46, %47 : vector<8x32xf32>
      %c0_29 = arith.constant 0 : index
      %c0_30 = arith.constant 0 : index
      %49 = vector.load %arg5[%c0_29, %c0_30] : memref<32x96xf32, #tpu.memory_space<vmem>>, vector<32x96xf32>
      %cst_31 = arith.constant dense<0.000000e+00> : vector<8x96xf32>
      %50 = tpu.matmul %48, %49, %cst_31 {dimension_numbers = #tpu.dot_dimension_numbers<[1], [0], [0], [1], [0, 0, 1, 1], [], []>} : vector<8x32xf32>, vector<32x96xf32>, vector<8x96xf32> -> vector<8x96xf32>
      %c0_32 = arith.constant 0 : index
      %c0_33 = arith.constant 0 : index
      %51 = vector.load %arg6[%c0_32, %c0_33] : memref<1x96xf32, #tpu.memory_space<vmem>>, vector<1x96xf32>
      %52 = vector.broadcast %51 : vector<1x96xf32> to vector<8x96xf32>
      %53 = arith.addf %50, %52 : vector<8x96xf32>
      %54 = vector.shape_cast %53 : vector<8x96xf32> to vector<1x8x96xf32>
      %55 = vector.extract_strided_slice %54 {offsets = [0, 0, 0], sizes = [1, 8, 32], strides = [1, 1, 1]} : vector<1x8x96xf32> to vector<1x8x32xf32>
      %56 = vector.extract_strided_slice %54 {offsets = [0, 0, 32], sizes = [1, 8, 32], strides = [1, 1, 1]} : vector<1x8x96xf32> to vector<1x8x32xf32>
      %57 = vector.extract_strided_slice %54 {offsets = [0, 0, 64], sizes = [1, 8, 32], strides = [1, 1, 1]} : vector<1x8x96xf32> to vector<1x8x32xf32>
      %58 = vector.extract_strided_slice %55 {offsets = [0, 0, 0], sizes = [1, 8, 8], strides = [1, 1, 1]} : vector<1x8x32xf32> to vector<1x8x8xf32>
      %59 = vector.extract_strided_slice %56 {offsets = [0, 0, 0], sizes = [1, 8, 8], strides = [1, 1, 1]} : vector<1x8x32xf32> to vector<1x8x8xf32>
      %60 = vector.extract_strided_slice %57 {offsets = [0, 0, 0], sizes = [1, 8, 8], strides = [1, 1, 1]} : vector<1x8x32xf32> to vector<1x8x8xf32>
      "tpu.trace_start"() <{level = 10 : i32, message = "bqd,bkd->bqk"}> : () -> ()
      %cst_34 = arith.constant dense<0.000000e+00> : vector<1x8x8xf32>
      %61 = tpu.matmul %58, %59, %cst_34 {dimension_numbers = #tpu.dot_dimension_numbers<[2], [2], [1], [1], [0, 0, 0, 1, 1, 1], [0], [0]>} : vector<1x8x8xf32>, vector<1x8x8xf32>, vector<1x8x8xf32> -> vector<1x8x8xf32>
      "tpu.trace_stop"() : () -> ()
      %cst_35 = arith.constant 0.353553385 : f32
      %62 = vector.broadcast %cst_35 : f32 to vector<1x8x8xf32>
      %63 = arith.mulf %61, %62 : vector<1x8x8xf32>
      %cst_36 = arith.constant dense<0xFF800000> : vector<1x8xf32>
      %64 = vector.multi_reduction <maximumf>, %63, %cst_36 [2] : vector<1x8x8xf32> to vector<1x8xf32>
      %65 = vector.shape_cast %64 : vector<1x8xf32> to vector<1x8x1xf32>
      %66 = vector.broadcast %65 : vector<1x8x1xf32> to vector<1x8x8xf32>
      %67 = arith.subf %63, %66 : vector<1x8x8xf32>
      %68 = math.exp %67 : vector<1x8x8xf32>
      %cst_37 = arith.constant dense<0.000000e+00> : vector<1x8xf32>
      %69 = vector.multi_reduction <add>, %68, %cst_37 [2] : vector<1x8x8xf32> to vector<1x8xf32>
      %70 = vector.shape_cast %69 : vector<1x8xf32> to vector<1x8x1xf32>
      %71 = tpu.reciprocal %70 : vector<1x8x1xf32> -> vector<1x8x1xf32>
      %72 = vector.broadcast %71 : vector<1x8x1xf32> to vector<1x8x8xf32>
      %73 = arith.mulf %68, %72 : vector<1x8x8xf32>
      "tpu.trace_start"() <{level = 10 : i32, message = "bqk,bkd->bqd"}> : () -> ()
      %cst_38 = arith.constant dense<0.000000e+00> : vector<1x8x8xf32>
      %74 = tpu.matmul %73, %60, %cst_38 {dimension_numbers = #tpu.dot_dimension_numbers<[2], [1], [1], [2], [0, 0, 0, 1, 1, 2], [0], [0]>} : vector<1x8x8xf32>, vector<1x8x8xf32>, vector<1x8x8xf32> -> vector<1x8x8xf32>
      "tpu.trace_stop"() : () -> ()
      %75 = vector.shape_cast %74 : vector<1x8x8xf32> to vector<8x8xf32>
      %c0_39 = arith.constant 0 : index
      %c0_40 = arith.constant 0 : index
      %76 = vector.load %arg18[%c0_39, %c0_40] : memref<8x32xf32, #tpu.memory_space<vmem>>, vector<8x8xf32>
      tpu.vector_store %arg18[%c0_39, %c0_40], %75 {strides = array<i32>} : memref<8x32xf32, #tpu.memory_space<vmem>>, vector<8x8xf32>,
      %77 = vector.extract_strided_slice %55 {offsets = [0, 0, 8], sizes = [1, 8, 8], strides = [1, 1, 1]} : vector<1x8x32xf32> to vector<1x8x8xf32>
      %78 = vector.extract_strided_slice %56 {offsets = [0, 0, 8], sizes = [1, 8, 8], strides = [1, 1, 1]} : vector<1x8x32xf32> to vector<1x8x8xf32>
      %79 = vector.extract_strided_slice %57 {offsets = [0, 0, 8], sizes = [1, 8, 8], strides = [1, 1, 1]} : vector<1x8x32xf32> to vector<1x8x8xf32>
      "tpu.trace_start"() <{level = 10 : i32, message = "bqd,bkd->bqk"}> : () -> ()
      %cst_41 = arith.constant dense<0.000000e+00> : vector<1x8x8xf32>
      %80 = tpu.matmul %77, %78, %cst_41 {dimension_numbers = #tpu.dot_dimension_numbers<[2], [2], [1], [1], [0, 0, 0, 1, 1, 1], [0], [0]>} : vector<1x8x8xf32>, vector<1x8x8xf32>, vector<1x8x8xf32> -> vector<1x8x8xf32>
      "tpu.trace_stop"() : () -> ()
      %cst_42 = arith.constant 0.353553385 : f32
      %81 = vector.broadcast %cst_42 : f32 to vector<1x8x8xf32>
      %82 = arith.mulf %80, %81 : vector<1x8x8xf32>
      %cst_43 = arith.constant dense<0xFF800000> : vector<1x8xf32>
      %83 = vector.multi_reduction <maximumf>, %82, %cst_43 [2] : vector<1x8x8xf32> to vector<1x8xf32>
      %84 = vector.shape_cast %83 : vector<1x8xf32> to vector<1x8x1xf32>
      %85 = vector.broadcast %84 : vector<1x8x1xf32> to vector<1x8x8xf32>
      %86 = arith.subf %82, %85 : vector<1x8x8xf32>
      %87 = math.exp %86 : vector<1x8x8xf32>
      %cst_44 = arith.constant dense<0.000000e+00> : vector<1x8xf32>
      %88 = vector.multi_reduction <add>, %87, %cst_44 [2] : vector<1x8x8xf32> to vector<1x8xf32>
      %89 = vector.shape_cast %88 : vector<1x8xf32> to vector<1x8x1xf32>
      %90 = tpu.reciprocal %89 : vector<1x8x1xf32> -> vector<1x8x1xf32>
      %91 = vector.broadcast %90 : vector<1x8x1xf32> to vector<1x8x8xf32>
      %92 = arith.mulf %87, %91 : vector<1x8x8xf32>
      "tpu.trace_start"() <{level = 10 : i32, message = "bqk,bkd->bqd"}> : () -> ()
      %cst_45 = arith.constant dense<0.000000e+00> : vector<1x8x8xf32>
      %93 = tpu.matmul %92, %79, %cst_45 {dimension_numbers = #tpu.dot_dimension_numbers<[2], [1], [1], [2], [0, 0, 0, 1, 1, 2], [0], [0]>} : vector<1x8x8xf32>, vector<1x8x8xf32>, vector<1x8x8xf32> -> vector<1x8x8xf32>
      "tpu.trace_stop"() : () -> ()
      %94 = vector.shape_cast %93 : vector<1x8x8xf32> to vector<8x8xf32>
      %c0_46 = arith.constant 0 : index
      %c8 = arith.constant 8 : index
      %95 = vector.load %arg18[%c0_46, %c8] : memref<8x32xf32, #tpu.memory_space<vmem>>, vector<8x8xf32>
      tpu.vector_store %arg18[%c0_46, %c8], %94 {strides = array<i32>} : memref<8x32xf32, #tpu.memory_space<vmem>>, vector<8x8xf32>,
      %96 = vector.extract_strided_slice %55 {offsets = [0, 0, 16], sizes = [1, 8, 8], strides = [1, 1, 1]} : vector<1x8x32xf32> to vector<1x8x8xf32>
      %97 = vector.extract_strided_slice %56 {offsets = [0, 0, 16], sizes = [1, 8, 8], strides = [1, 1, 1]} : vector<1x8x32xf32> to vector<1x8x8xf32>
      %98 = vector.extract_strided_slice %57 {offsets = [0, 0, 16], sizes = [1, 8, 8], strides = [1, 1, 1]} : vector<1x8x32xf32> to vector<1x8x8xf32>
      "tpu.trace_start"() <{level = 10 : i32, message = "bqd,bkd->bqk"}> : () -> ()
      %cst_47 = arith.constant dense<0.000000e+00> : vector<1x8x8xf32>
      %99 = tpu.matmul %96, %97, %cst_47 {dimension_numbers = #tpu.dot_dimension_numbers<[2], [2], [1], [1], [0, 0, 0, 1, 1, 1], [0], [0]>} : vector<1x8x8xf32>, vector<1x8x8xf32>, vector<1x8x8xf32> -> vector<1x8x8xf32>
      "tpu.trace_stop"() : () -> ()
      %cst_48 = arith.constant 0.353553385 : f32
      %100 = vector.broadcast %cst_48 : f32 to vector<1x8x8xf32>
      %101 = arith.mulf %99, %100 : vector<1x8x8xf32>
      %cst_49 = arith.constant dense<0xFF800000> : vector<1x8xf32>
      %102 = vector.multi_reduction <maximumf>, %101, %cst_49 [2] : vector<1x8x8xf32> to vector<1x8xf32>
      %103 = vector.shape_cast %102 : vector<1x8xf32> to vector<1x8x1xf32>
      %104 = vector.broadcast %103 : vector<1x8x1xf32> to vector<1x8x8xf32>
      %105 = arith.subf %101, %104 : vector<1x8x8xf32>
      %106 = math.exp %105 : vector<1x8x8xf32>
      %cst_50 = arith.constant dense<0.000000e+00> : vector<1x8xf32>
      %107 = vector.multi_reduction <add>, %106, %cst_50 [2] : vector<1x8x8xf32> to vector<1x8xf32>
      %108 = vector.shape_cast %107 : vector<1x8xf32> to vector<1x8x1xf32>
      %109 = tpu.reciprocal %108 : vector<1x8x1xf32> -> vector<1x8x1xf32>
      %110 = vector.broadcast %109 : vector<1x8x1xf32> to vector<1x8x8xf32>
      %111 = arith.mulf %106, %110 : vector<1x8x8xf32>
      "tpu.trace_start"() <{level = 10 : i32, message = "bqk,bkd->bqd"}> : () -> ()
      %cst_51 = arith.constant dense<0.000000e+00> : vector<1x8x8xf32>
      %112 = tpu.matmul %111, %98, %cst_51 {dimension_numbers = #tpu.dot_dimension_numbers<[2], [1], [1], [2], [0, 0, 0, 1, 1, 2], [0], [0]>} : vector<1x8x8xf32>, vector<1x8x8xf32>, vector<1x8x8xf32> -> vector<1x8x8xf32>
      "tpu.trace_stop"() : () -> ()
      %113 = vector.shape_cast %112 : vector<1x8x8xf32> to vector<8x8xf32>
      %c0_52 = arith.constant 0 : index
      %c16 = arith.constant 16 : index
      %114 = vector.load %arg18[%c0_52, %c16] : memref<8x32xf32, #tpu.memory_space<vmem>>, vector<8x8xf32>
      tpu.vector_store %arg18[%c0_52, %c16], %113 {strides = array<i32>} : memref<8x32xf32, #tpu.memory_space<vmem>>, vector<8x8xf32>,
      %115 = vector.extract_strided_slice %55 {offsets = [0, 0, 24], sizes = [1, 8, 8], strides = [1, 1, 1]} : vector<1x8x32xf32> to vector<1x8x8xf32>
      %116 = vector.extract_strided_slice %56 {offsets = [0, 0, 24], sizes = [1, 8, 8], strides = [1, 1, 1]} : vector<1x8x32xf32> to vector<1x8x8xf32>
      %117 = vector.extract_strided_slice %57 {offsets = [0, 0, 24], sizes = [1, 8, 8], strides = [1, 1, 1]} : vector<1x8x32xf32> to vector<1x8x8xf32>
      "tpu.trace_start"() <{level = 10 : i32, message = "bqd,bkd->bqk"}> : () -> ()
      %cst_53 = arith.constant dense<0.000000e+00> : vector<1x8x8xf32>
      %118 = tpu.matmul %115, %116, %cst_53 {dimension_numbers = #tpu.dot_dimension_numbers<[2], [2], [1], [1], [0, 0, 0, 1, 1, 1], [0], [0]>} : vector<1x8x8xf32>, vector<1x8x8xf32>, vector<1x8x8xf32> -> vector<1x8x8xf32>
      "tpu.trace_stop"() : () -> ()
      %cst_54 = arith.constant 0.353553385 : f32
      %119 = vector.broadcast %cst_54 : f32 to vector<1x8x8xf32>
      %120 = arith.mulf %118, %119 : vector<1x8x8xf32>
      %cst_55 = arith.constant dense<0xFF800000> : vector<1x8xf32>
      %121 = vector.multi_reduction <maximumf>, %120, %cst_55 [2] : vector<1x8x8xf32> to vector<1x8xf32>
      %122 = vector.shape_cast %121 : vector<1x8xf32> to vector<1x8x1xf32>
      %123 = vector.broadcast %122 : vector<1x8x1xf32> to vector<1x8x8xf32>
      %124 = arith.subf %120, %123 : vector<1x8x8xf32>
      %125 = math.exp %124 : vector<1x8x8xf32>
      %cst_56 = arith.constant dense<0.000000e+00> : vector<1x8xf32>
      %126 = vector.multi_reduction <add>, %125, %cst_56 [2] : vector<1x8x8xf32> to vector<1x8xf32>
      %127 = vector.shape_cast %126 : vector<1x8xf32> to vector<1x8x1xf32>
      %128 = tpu.reciprocal %127 : vector<1x8x1xf32> -> vector<1x8x1xf32>
      %129 = vector.broadcast %128 : vector<1x8x1xf32> to vector<1x8x8xf32>
      %130 = arith.mulf %125, %129 : vector<1x8x8xf32>
      "tpu.trace_start"() <{level = 10 : i32, message = "bqk,bkd->bqd"}> : () -> ()
      %cst_57 = arith.constant dense<0.000000e+00> : vector<1x8x8xf32>
      %131 = tpu.matmul %130, %117, %cst_57 {dimension_numbers = #tpu.dot_dimension_numbers<[2], [1], [1], [2], [0, 0, 0, 1, 1, 2], [0], [0]>} : vector<1x8x8xf32>, vector<1x8x8xf32>, vector<1x8x8xf32> -> vector<1x8x8xf32>
      "tpu.trace_stop"() : () -> ()
      %132 = vector.shape_cast %131 : vector<1x8x8xf32> to vector<8x8xf32>
      %c0_58 = arith.constant 0 : index
      %c24 = arith.constant 24 : index
      %133 = vector.load %arg18[%c0_58, %c24] : memref<8x32xf32, #tpu.memory_space<vmem>>, vector<8x8xf32>
      tpu.vector_store %arg18[%c0_58, %c24], %132 {strides = array<i32>} : memref<8x32xf32, #tpu.memory_space<vmem>>, vector<8x8xf32>,
      %c0_59 = arith.constant 0 : index
      %c0_60 = arith.constant 0 : index
      %134 = vector.load %arg18[%c0_59, %c0_60] : memref<8x32xf32, #tpu.memory_space<vmem>>, vector<8x32xf32>
      %c0_61 = arith.constant 0 : index
      %c0_62 = arith.constant 0 : index
      %135 = vector.load %arg7[%c0_61, %c0_62] : memref<32x32xf32, #tpu.memory_space<vmem>>, vector<32x32xf32>
      %cst_63 = arith.constant dense<0.000000e+00> : vector<8x32xf32>
      %136 = tpu.matmul %134, %135, %cst_63 {dimension_numbers = #tpu.dot_dimension_numbers<[1], [0], [0], [1], [0, 0, 1, 1], [], []>} : vector<8x32xf32>, vector<32x32xf32>, vector<8x32xf32> -> vector<8x32xf32>
      %c0_64 = arith.constant 0 : index
      %c0_65 = arith.constant 0 : index
      %137 = vector.load %arg8[%c0_64, %c0_65] : memref<1x32xf32, #tpu.memory_space<vmem>>, vector<1x32xf32>
      %138 = vector.broadcast %137 : vector<1x32xf32> to vector<8x32xf32>
      %139 = arith.addf %136, %138 : vector<8x32xf32>
      %140 = arith.addf %26, %139 : vector<8x32xf32>
      %c0_66 = arith.constant 0 : index
      %c0_67 = arith.constant 0 : index
      %141 = vector.load %arg16[%c0_66, %c0_67] : memref<8x32xf32, #tpu.memory_space<vmem>>, vector<8x32xf32>
      tpu.vector_store %arg16[%c0_66, %c0_67], %140 {strides = array<i32>} : memref<8x32xf32, #tpu.memory_space<vmem>>, vector<8x32xf32>,
      %c0_68 = arith.constant 0 : index
      %c0_69 = arith.constant 0 : index
      %142 = vector.load %arg9[%c0_68, %c0_69] : memref<1x32xf32, #tpu.memory_space<vmem>>, vector<1x32xf32>
      %c0_70 = arith.constant 0 : index
      %c0_71 = arith.constant 0 : index
      %143 = vector.load %arg10[%c0_70, %c0_71] : memref<1x32xf32, #tpu.memory_space<vmem>>, vector<1x32xf32>
      %cst_72 = arith.constant dense<0.000000e+00> : vector<8xf32>
      %144 = vector.multi_reduction <add>, %140, %cst_72 [1] : vector<8x32xf32> to vector<8xf32>
      %145 = vector.shape_cast %144 : vector<8xf32> to vector<8x1xf32>
      %cst_73 = arith.constant 3.200000e+01 : f32
      %146 = vector.broadcast %cst_73 : f32 to vector<8x1xf32>
      %147 = arith.divf %145, %146 : vector<8x1xf32>
      %148 = vector.broadcast %147 : vector<8x1xf32> to vector<8x32xf32>
      %149 = arith.subf %140, %148 : vector<8x32xf32>
      %150 = arith.mulf %149, %149 : vector<8x32xf32>
      %cst_74 = arith.constant dense<0.000000e+00> : vector<8xf32>
      %151 = vector.multi_reduction <add>, %150, %cst_74 [1] : vector<8x32xf32> to vector<8xf32>
      %152 = vector.shape_cast %151 : vector<8xf32> to vector<8x1xf32>
      %cst_75 = arith.constant 3.200000e+01 : f32
      %153 = vector.broadcast %cst_75 : f32 to vector<8x1xf32>
      %154 = arith.divf %152, %153 : vector<8x1xf32>
      %cst_76 = arith.constant 9.99999996E-13 : f32
      %155 = vector.broadcast %cst_76 : f32 to vector<8x1xf32>
      %156 = arith.addf %154, %155 : vector<8x1xf32>
      %157 = math.rsqrt %156 : vector<8x1xf32>
      %158 = vector.broadcast %157 : vector<8x1xf32> to vector<8x32xf32>
      %159 = arith.mulf %149, %158 : vector<8x32xf32>
      %160 = vector.broadcast %142 : vector<1x32xf32> to vector<8x32xf32>
      %161 = arith.mulf %159, %160 : vector<8x32xf32>
      %162 = vector.broadcast %143 : vector<1x32xf32> to vector<8x32xf32>
      %163 = arith.addf %161, %162 : vector<8x32xf32>
      %c0_77 = arith.constant 0 : index
      %c0_78 = arith.constant 0 : index
      %164 = vector.load %arg17[%c0_77, %c0_78] : memref<8x32xf32, #tpu.memory_space<vmem>>, vector<8x32xf32>
      tpu.vector_store %arg17[%c0_77, %c0_78], %163 {strides = array<i32>} : memref<8x32xf32, #tpu.memory_space<vmem>>, vector<8x32xf32>,
      %cst_79 = arith.constant 0.000000e+00 : f32
      %165 = vector.broadcast %cst_79 : f32 to vector<8x32xf32>
      %c0_80 = arith.constant 0 : index
      %c0_81 = arith.constant 0 : index
      %166 = vector.load %arg18[%c0_80, %c0_81] : memref<8x32xf32, #tpu.memory_space<vmem>>, vector<8x32xf32>
      tpu.vector_store %arg18[%c0_80, %c0_81], %165 {strides = array<i32>} : memref<8x32xf32, #tpu.memory_space<vmem>>, vector<8x32xf32>,
    } else {
    }
    %c0 = arith.constant 0 : index
    %c0_1 = arith.constant 0 : index
    %3 = vector.load %arg17[%c0, %c0_1] : memref<8x32xf32, #tpu.memory_space<vmem>>, vector<8x32xf32>
    %c0_2 = arith.constant 0 : index
    %c0_3 = arith.constant 0 : index
    %4 = vector.load %arg12[%c0_2, %c0_3] : memref<32x128xf32, #tpu.memory_space<vmem>>, vector<32x128xf32>
    %cst = arith.constant dense<0.000000e+00> : vector<8x128xf32>
    %5 = tpu.matmul %3, %4, %cst {dimension_numbers = #tpu.dot_dimension_numbers<[1], [0], [0], [1], [0, 0, 1, 1], [], []>} : vector<8x32xf32>, vector<32x128xf32>, vector<8x128xf32> -> vector<8x128xf32>
    %c0_4 = arith.constant 0 : index
    %c0_5 = arith.constant 0 : index
    %6 = vector.load %arg13[%c0_4, %c0_5] : memref<1x128xf32, #tpu.memory_space<vmem>>, vector<1x128xf32>
    %7 = vector.broadcast %6 : vector<1x128xf32> to vector<8x128xf32>
    %8 = arith.addf %5, %7 : vector<8x128xf32>
    %cst_6 = arith.constant 1.702000e+00 : f32
    %9 = vector.broadcast %cst_6 : f32 to vector<8x128xf32>
    %10 = arith.mulf %9, %8 : vector<8x128xf32>
    %11 = arith.negf %10 : vector<8x128xf32>
    %12 = math.exp %11 : vector<8x128xf32>
    %cst_7 = arith.constant 1.000000e+00 : f32
    %13 = vector.broadcast %cst_7 : f32 to vector<8x128xf32>
    %14 = arith.addf %13, %12 : vector<8x128xf32>
    %15 = arith.divf %13, %14 : vector<8x128xf32>
    %16 = arith.mulf %8, %15 : vector<8x128xf32>
    %c0_8 = arith.constant 0 : index
    %c0_9 = arith.constant 0 : index
    %17 = vector.load %arg18[%c0_8, %c0_9] : memref<8x32xf32, #tpu.memory_space<vmem>>, vector<8x32xf32>
    %c0_10 = arith.constant 0 : index
    %c0_11 = arith.constant 0 : index
    %18 = vector.load %arg14[%c0_10, %c0_11] : memref<128x32xf32, #tpu.memory_space<vmem>>, vector<128x32xf32>
    %cst_12 = arith.constant dense<0.000000e+00> : vector<8x32xf32>
    %19 = tpu.matmul %16, %18, %cst_12 {dimension_numbers = #tpu.dot_dimension_numbers<[1], [0], [0], [1], [0, 0, 1, 1], [], []>} : vector<8x128xf32>, vector<128x32xf32>, vector<8x32xf32> -> vector<8x32xf32>
    %20 = arith.addf %17, %19 : vector<8x32xf32>
    %c0_13 = arith.constant 0 : index
    %c0_14 = arith.constant 0 : index
    %21 = vector.load %arg18[%c0_13, %c0_14] : memref<8x32xf32, #tpu.memory_space<vmem>>, vector<8x32xf32>
    tpu.vector_store %arg18[%c0_13, %c0_14], %20 {strides = array<i32>} : memref<8x32xf32, #tpu.memory_space<vmem>>, vector<8x32xf32>,
    %c0_i32_15 = arith.constant 0 : i32
    %22 = arith.cmpi eq, %arg1, %c0_i32_15 : i32
    %23 = arith.extui %22 : i1 to i32
    %c0_i32_16 = arith.constant 0 : i32
    %24 = arith.cmpi ne, %23, %c0_i32_16 : i32
    scf.if %24 {
      %c0_17 = arith.constant 0 : index
      %c0_18 = arith.constant 0 : index
      %25 = vector.load %arg16[%c0_17, %c0_18] : memref<8x32xf32, #tpu.memory_space<vmem>>, vector<8x32xf32>
      %c0_19 = arith.constant 0 : index
      %c0_20 = arith.constant 0 : index
      %26 = vector.load %arg18[%c0_19, %c0_20] : memref<8x32xf32, #tpu.memory_space<vmem>>, vector<8x32xf32>
      %27 = arith.addf %25, %26 : vector<8x32xf32>
      %c0_21 = arith.constant 0 : index
      %c0_22 = arith.constant 0 : index
      %28 = vector.load %arg11[%c0_21, %c0_22] : memref<1x32xf32, #tpu.memory_space<vmem>>, vector<1x32xf32>
      %29 = vector.broadcast %28 : vector<1x32xf32> to vector<8x32xf32>
      %30 = arith.addf %27, %29 : vector<8x32xf32>
      %31 = vector.shape_cast %30 : vector<8x32xf32> to vector<1x8x32xf32>
      %c0_23 = arith.constant 0 : index
      %c0_24 = arith.constant 0 : index
      %c0_25 = arith.constant 0 : index
      %32 = vector.load %arg15[%c0_23, %c0_24, %c0_25] : memref<1x8x32xf32, #tpu.memory_space<vmem>>, vector<1x8x32xf32>
      tpu.vector_store %arg15[%c0_23, %c0_24, %c0_25], %31 {strides = array<i32>} : memref<1x8x32xf32, #tpu.memory_space<vmem>>, vector<1x8x32xf32>,
    } else {
    }
    return
  }
  func.func @transform_0(%arg0: i32, %arg1: i32) -> (i32, i32, i32) {
    %c0_i32 = arith.constant 0 : i32
    %c0_i32_0 = arith.constant 0 : i32
    %c0_i32_1 = arith.constant 0 : i32
    return %arg0, %c0_i32, %c0_i32_0 : i32, i32, i32
  }
  func.func @transform_1(%arg0: i32, %arg1: i32) -> (i32, i32) {
    %c0_i32 = arith.constant 0 : i32
    %c0_i32_0 = arith.constant 0 : i32
    %c0_i32_1 = arith.constant 0 : i32
    return %c0_i32, %c0_i32_0 : i32, i32
  }
  func.func @transform_2(%arg0: i32, %arg1: i32) -> (i32, i32) {
    %c0_i32 = arith.constant 0 : i32
    %c0_i32_0 = arith.constant 0 : i32
    %c0_i32_1 = arith.constant 0 : i32
    return %c0_i32, %c0_i32_0 : i32, i32
  }
  func.func @transform_3(%arg0: i32, %arg1: i32) -> (i32, i32) {
    %c0_i32 = arith.constant 0 : i32
    %c0_i32_0 = arith.constant 0 : i32
    %c0_i32_1 = arith.constant 0 : i32
    return %c0_i32, %c0_i32_0 : i32, i32
  }
  func.func @transform_4(%arg0: i32, %arg1: i32) -> (i32, i32) {
    %c0_i32 = arith.constant 0 : i32
    %c0_i32_0 = arith.constant 0 : i32
    %c0_i32_1 = arith.constant 0 : i32
    return %c0_i32, %c0_i32_0 : i32, i32
  }
  func.func @transform_5(%arg0: i32, %arg1: i32) -> (i32, i32) {
    %c0_i32 = arith.constant 0 : i32
    %c0_i32_0 = arith.constant 0 : i32
    %c0_i32_1 = arith.constant 0 : i32
    return %c0_i32, %c0_i32_0 : i32, i32
  }
  func.func @transform_6(%arg0: i32, %arg1: i32) -> (i32, i32) {
    %c0_i32 = arith.constant 0 : i32
    %c0_i32_0 = arith.constant 0 : i32
    %c0_i32_1 = arith.constant 0 : i32
    return %c0_i32, %c0_i32_0 : i32, i32
  }
  func.func @transform_7(%arg0: i32, %arg1: i32) -> (i32, i32) {
    %c0_i32 = arith.constant 0 : i32
    %c0_i32_0 = arith.constant 0 : i32
    %c0_i32_1 = arith.constant 0 : i32
    return %c0_i32, %c0_i32_0 : i32, i32
  }
  func.func @transform_8(%arg0: i32, %arg1: i32) -> (i32, i32) {
    %c0_i32 = arith.constant 0 : i32
    %c0_i32_0 = arith.constant 0 : i32
    %c0_i32_1 = arith.constant 0 : i32
    return %c0_i32, %c0_i32_0 : i32, i32
  }
  func.func @transform_9(%arg0: i32, %arg1: i32) -> (i32, i32) {
    %c0_i32 = arith.constant 0 : i32
    %c0_i32_0 = arith.constant 0 : i32
    %c0_i32_1 = arith.constant 0 : i32
    return %c0_i32, %c0_i32_0 : i32, i32
  }
  func.func @transform_10(%arg0: i32, %arg1: i32) -> (i32, i32) {
    %c0_i32 = arith.constant 0 : i32
    %c0_i32_0 = arith.constant 0 : i32
    return %c0_i32, %arg1 : i32, i32
  }
  func.func @transform_11(%arg0: i32, %arg1: i32) -> (i32, i32) {
    %c0_i32 = arith.constant 0 : i32
    %c0_i32_0 = arith.constant 0 : i32
    return %c0_i32, %arg1 : i32, i32
  }
  func.func @transform_12(%arg0: i32, %arg1: i32) -> (i32, i32) {
    %c0_i32 = arith.constant 0 : i32
    %c0_i32_0 = arith.constant 0 : i32
    return %arg1, %c0_i32 : i32, i32
  }
  func.func @transform_13(%arg0: i32, %arg1: i32) -> (i32, i32, i32) {
    %c0_i32 = arith.constant 0 : i32
    %c0_i32_0 = arith.constant 0 : i32
    %c0_i32_1 = arith.constant 0 : i32
    return %arg0, %c0_i32, %c0_i32_0 : i32, i32, i32
  }
}

</mosaic_0001>

<llo_original>
// kernel: tpu_custom_call.1
$region0: #{tpu_custom_call.1}
  #allocation0 [shape = 'u32[]', space=smem, size = 0x4, offset = 0x4, fixed_abs, tag = 'smem constant byte address 0x4 - core index']
  #allocation1 [shape = 'u32[144,128]{1,0:T(1,128)}', space=vmem, size = 0x12000, scoped, tag = 'internal scratch']
  #allocation2 [shape = 'f32[8,32]{1,0:T(8,128)}', space=vmem, size = 0x1000, scoped, tag = 'scratch operand']
  #allocation3 [shape = 'f32[8,32]{1,0:T(8,128)}', space=vmem, size = 0x1000, scoped, tag = 'scratch operand']
  #allocation4 [shape = 'f32[8,32]{1,0:T(8,128)}', space=vmem, size = 0x1000, scoped, tag = 'scratch operand']
  %s0 = inlined_call_operand.vmem [shape: f32[2,8,32], index: 0, kind: input, shape index: {}]
  %s1 = inlined_call_operand.vmem [shape: f32[1,32], index: 1, kind: input, shape index: {}]
  %s2 = inlined_call_operand.vmem [shape: f32[1,32], index: 2, kind: input, shape index: {}]
  %s3 = inlined_call_operand.vmem [shape: f32[32,96], index: 3, kind: input, shape index: {}]
  %s4 = inlined_call_operand.vmem [shape: f32[1,96], index: 4, kind: input, shape index: {}]
  %s5 = inlined_call_operand.vmem [shape: f32[32,32], index: 5, kind: input, shape index: {}]
  %s6 = inlined_call_operand.vmem [shape: f32[1,32], index: 6, kind: input, shape index: {}]
  %s7 = inlined_call_operand.vmem [shape: f32[1,32], index: 7, kind: input, shape index: {}]
  %s8 = inlined_call_operand.vmem [shape: f32[1,32], index: 8, kind: input, shape index: {}]
  %s9 = inlined_call_operand.vmem [shape: f32[1,32], index: 9, kind: input, shape index: {}]
  %s10 = inlined_call_operand.vmem [shape: f32[32,128], index: 10, kind: input, shape index: {}]
  %s11 = inlined_call_operand.vmem [shape: f32[1,128], index: 11, kind: input, shape index: {}]
  %s12 = inlined_call_operand.vmem [shape: f32[128,32], index: 12, kind: input, shape index: {}]
  %s13 = inlined_call_operand.hbm [shape: f32[2,8,32], index: 13, kind: output, shape index: {}]
  %s14 = sld [smem:[#allocation0]]
  $region93: #{tpu_custom_call.1} parent=0
    _
  %s16 = ssub.s32 1, %s14
  %s17 = scalar_select 0, %s16, %s14
  $region1: #{tpu_custom_call.1} parent=0
    #allocation5 [shape = 'u8[8192]{0}', space=vmem, size = 0x2000, scoped, tag = 'output window, operand 0']
    #allocation6 [shape = 's32[2]{0}', space=sflag, size = 0x8, scoped, tag = 'scoped memory for tpu_custom_call.1']
    %18 = vsyncpa [#allocation6], 0
    %s19 = scalar_lea.sflag [#allocation6], 1
    %20 = vsyncpa %s19, 0
    loop: start=0, step=1, limit=4
    $region2: #{tpu_custom_call.1} parent=1 // loop_pre_header
      _
    $region3: #{tpu_custom_call.1} parent=1 // loop_header
      %s22 = sphi 0, %s26
      %p23 = scmp.ge.s32.totalorder %s22, 4
      %s29 = sphi 0, %s41
      %s30 = sphi 0, %s37
      %s31 = sphi 0, %s29
      %s32 = sphi 0, %s30
      %s33 = sphi 0, %s31
      %s34 = sphi 0, %s32
      %s44 = sphi 0, %s46
      %s47 = sphi 0, %s44
      %s48 = sphi 0, %s47
      %s64 = sphi 0, %s48
      %s68 = sphi 0, %s68
      %s70 = sphi 0, %s68
      %s71 = sphi 0, %s70
      %s85 = sphi 0, %s71
      %s89 = sphi 0, %s89
      %s91 = sphi 0, %s89
      %s92 = sphi 0, %s91
      %s106 = sphi 0, %s92
      %s110 = sphi 0, %s110
      %s112 = sphi 0, %s110
      %s113 = sphi 0, %s112
      %s127 = sphi 0, %s113
      %s131 = sphi 0, %s131
      %s133 = sphi 0, %s131
      %s134 = sphi 0, %s133
      %s148 = sphi 0, %s134
      %s152 = sphi 0, %s152
      %s154 = sphi 0, %s152
      %s155 = sphi 0, %s154
      %s169 = sphi 0, %s155
      %s173 = sphi 0, %s173
      %s175 = sphi 0, %s173
      %s176 = sphi 0, %s175
      %s190 = sphi 0, %s176
      %s194 = sphi 0, %s194
      %s196 = sphi 0, %s194
      %s197 = sphi 0, %s196
      %s211 = sphi 0, %s197
      %s215 = sphi 0, %s215
      %s217 = sphi 0, %s215
      %s218 = sphi 0, %s217
      %s232 = sphi 0, %s218
      %s236 = sphi 0, %s236
      %s238 = sphi 0, %s236
      %s239 = sphi 0, %s238
      %s253 = sphi 0, %s239
      %s259 = sphi 0, %s261
      %s262 = sphi 0, %s259
      %s263 = sphi 0, %s262
      %s279 = sphi 0, %s263
      %s285 = sphi 0, %s287
      %s288 = sphi 0, %s285
      %s289 = sphi 0, %s288
      %s305 = sphi 0, %s289
      %s311 = sphi 0, %s313
      %s314 = sphi 0, %s311
      %s315 = sphi 0, %s314
      %s331 = sphi 0, %s315
      %s337 = sphi 0, %s339
      %s340 = sphi 0, %s337
      %s341 = sphi 0, %s340
      %s357 = sphi 0, %s341
    $region4: #{tpu_custom_call.1} parent=1 // loop_header_branch
      %25 = sbr.rel (%p23) target = $region8
    $region5: #{tpu_custom_call.1} parent=1 // loop_body
      %s27 = ssub.s32 %s22, 1
      %s28 = ssub.s32 %s22, 2
      %s35 = sadd.s32 1, %s30
      %p36 = scmp.ge.s32.totalorder %s35, 1
      %s37 = scalar_select %p36, 0, %s35
      %s38 = sadd.s32 1, %s29
      %s39 = scalar_select %p36, %s38, %s29
      %p40 = scmp.ge.s32.totalorder %s39, 2
      %s41 = scalar_select %p40, 0, %s39
      %s42 = ssub.s32 %s29, %s41
      %p43 = scmp.eq.s32.totalorder %s42, 0
      %s45 = sadd.s32 %s44, 1
      %s46 = scalar_select %p43, %s44, %s45
      %p49 = pneg %p43
      %p50 = scmp.eq.s32.totalorder %s22, 1
      %p51 = por %p49, %p50
      %p52 = scmp.ne.s32.totalorder %s44, %s47
      %p53 = scmp.eq.s32.totalorder %s22, 0
      %p54 = por %p52, %p53
      %p55 = scmp.ne.s32.totalorder %s44, %s47
      %p56 = scmp.eq.s32.totalorder %s27, 1
      %p57 = por %p55, %p56
      %p58 = scmp.ne.s32.totalorder %s47, %s48
      %p59 = scmp.eq.s32.totalorder %s27, 0
      %p60 = por %p58, %p59
      %p61 = scmp.ne.s32.totalorder %s47, %s48
      %p62 = scmp.eq.s32.totalorder %s28, 1
      %p63 = por %p61, %p62
      %p65 = scmp.ne.s32.totalorder %s48, %s64
      %p66 = scmp.eq.s32.totalorder %s28, 0
      %p67 = por %p65, %p66
      %s69 = sadd.s32 %s68, 1
      %p72 = scmp.eq.s32.totalorder %s22, 1
      %p73 = scmp.ne.s32.totalorder %s68, %s70
      %p74 = scmp.eq.s32.totalorder %s22, 0
      %p75 = por %p73, %p74
      %p76 = scmp.ne.s32.totalorder %s68, %s70
      %p77 = scmp.eq.s32.totalorder %s27, 1
      %p78 = por %p76, %p77
      %p79 = scmp.ne.s32.totalorder %s70, %s71
      %p80 = scmp.eq.s32.totalorder %s27, 0
      %p81 = por %p79, %p80
      %p82 = scmp.ne.s32.totalorder %s70, %s71
      %p83 = scmp.eq.s32.totalorder %s28, 1
      %p84 = por %p82, %p83
      %p86 = scmp.ne.s32.totalorder %s71, %s85
      %p87 = scmp.eq.s32.totalorder %s28, 0
      %p88 = por %p86, %p87
      %s90 = sadd.s32 %s89, 1
      %p93 = scmp.eq.s32.totalorder %s22, 1
      %p94 = scmp.ne.s32.totalorder %s89, %s91
      %p95 = scmp.eq.s32.totalorder %s22, 0
      %p96 = por %p94, %p95
      %p97 = scmp.ne.s32.totalorder %s89, %s91
      %p98 = scmp.eq.s32.totalorder %s27, 1
      %p99 = por %p97, %p98
      %p100 = scmp.ne.s32.totalorder %s91, %s92
      %p101 = scmp.eq.s32.totalorder %s27, 0
      %p102 = por %p100, %p101
      %p103 = scmp.ne.s32.totalorder %s91, %s92
      %p104 = scmp.eq.s32.totalorder %s28, 1
      %p105 = por %p103, %p104
      %p107 = scmp.ne.s32.totalorder %s92, %s106
      %p108 = scmp.eq.s32.totalorder %s28, 0
      %p109 = por %p107, %p108
      %s111 = sadd.s32 %s110, 1
      %p114 = scmp.eq.s32.totalorder %s22, 1
      %p115 = scmp.ne.s32.totalorder %s110, %s112
      %p116 = scmp.eq.s32.totalorder %s22, 0
      %p117 = por %p115, %p116
      %p118 = scmp.ne.s32.totalorder %s110, %s112
      %p119 = scmp.eq.s32.totalorder %s27, 1
      %p120 = por %p118, %p119
      %p121 = scmp.ne.s32.totalorder %s112, %s113
      %p122 = scmp.eq.s32.totalorder %s27, 0
      %p123 = por %p121, %p122
      %p124 = scmp.ne.s32.totalorder %s112, %s113
      %p125 = scmp.eq.s32.totalorder %s28, 1
      %p126 = por %p124, %p125
      %p128 = scmp.ne.s32.totalorder %s113, %s127
      %p129 = scmp.eq.s32.totalorder %s28, 0
      %p130 = por %p128, %p129
      %s132 = sadd.s32 %s131, 1
      %p135 = scmp.eq.s32.totalorder %s22, 1
      %p136 = scmp.ne.s32.totalorder %s131, %s133
      %p137 = scmp.eq.s32.totalorder %s22, 0
      %p138 = por %p136, %p137
      %p139 = scmp.ne.s32.totalorder %s131, %s133
      %p140 = scmp.eq.s32.totalorder %s27, 1
      %p141 = por %p139, %p140
      %p142 = scmp.ne.s32.totalorder %s133, %s134
      %p143 = scmp.eq.s32.totalorder %s27, 0
      %p144 = por %p142, %p143
      %p145 = scmp.ne.s32.totalorder %s133, %s134
      %p146 = scmp.eq.s32.totalorder %s28, 1
      %p147 = por %p145, %p146
      %p149 = scmp.ne.s32.totalorder %s134, %s148
      %p150 = scmp.eq.s32.totalorder %s28, 0
      %p151 = por %p149, %p150
      %s153 = sadd.s32 %s152, 1
      %p156 = scmp.eq.s32.totalorder %s22, 1
      %p157 = scmp.ne.s32.totalorder %s152, %s154
      %p158 = scmp.eq.s32.totalorder %s22, 0
      %p159 = por %p157, %p158
      %p160 = scmp.ne.s32.totalorder %s152, %s154
      %p161 = scmp.eq.s32.totalorder %s27, 1
      %p162 = por %p160, %p161
      %p163 = scmp.ne.s32.totalorder %s154, %s155
      %p164 = scmp.eq.s32.totalorder %s27, 0
      %p165 = por %p163, %p164
      %p166 = scmp.ne.s32.totalorder %s154, %s155
      %p167 = scmp.eq.s32.totalorder %s28, 1
      %p168 = por %p166, %p167
      %p170 = scmp.ne.s32.totalorder %s155, %s169
      %p171 = scmp.eq.s32.totalorder %s28, 0
      %p172 = por %p170, %p171
      %s174 = sadd.s32 %s173, 1
      %p177 = scmp.eq.s32.totalorder %s22, 1
      %p178 = scmp.ne.s32.totalorder %s173, %s175
      %p179 = scmp.eq.s32.totalorder %s22, 0
      %p180 = por %p178, %p179
      %p181 = scmp.ne.s32.totalorder %s173, %s175
      %p182 = scmp.eq.s32.totalorder %s27, 1
      %p183 = por %p181, %p182
      %p184 = scmp.ne.s32.totalorder %s175, %s176
      %p185 = scmp.eq.s32.totalorder %s27, 0
      %p186 = por %p184, %p185
      %p187 = scmp.ne.s32.totalorder %s175, %s176
      %p188 = scmp.eq.s32.totalorder %s28, 1
      %p189 = por %p187, %p188
      %p191 = scmp.ne.s32.totalorder %s176, %s190
      %p192 = scmp.eq.s32.totalorder %s28, 0
      %p193 = por %p191, %p192
      %s195 = sadd.s32 %s194, 1
      %p198 = scmp.eq.s32.totalorder %s22, 1
      %p199 = scmp.ne.s32.totalorder %s194, %s196
      %p200 = scmp.eq.s32.totalorder %s22, 0
      %p201 = por %p199, %p200
      %p202 = scmp.ne.s32.totalorder %s194, %s196
      %p203 = scmp.eq.s32.totalorder %s27, 1
      %p204 = por %p202, %p203
      %p205 = scmp.ne.s32.totalorder %s196, %s197
      %p206 = scmp.eq.s32.totalorder %s27, 0
      %p207 = por %p205, %p206
      %p208 = scmp.ne.s32.totalorder %s196, %s197
      %p209 = scmp.eq.s32.totalorder %s28, 1
      %p210 = por %p208, %p209
      %p212 = scmp.ne.s32.totalorder %s197, %s211
      %p213 = scmp.eq.s32.totalorder %s28, 0
      %p214 = por %p212, %p213
      %s216 = sadd.s32 %s215, 1
      %p219 = scmp.eq.s32.totalorder %s22, 1
      %p220 = scmp.ne.s32.totalorder %s215, %s217
      %p221 = scmp.eq.s32.totalorder %s22, 0
      %p222 = por %p220, %p221
      %p223 = scmp.ne.s32.totalorder %s215, %s217
      %p224 = scmp.eq.s32.totalorder %s27, 1
      %p225 = por %p223, %p224
      %p226 = scmp.ne.s32.totalorder %s217, %s218
      %p227 = scmp.eq.s32.totalorder %s27, 0
      %p228 = por %p226, %p227
      %p229 = scmp.ne.s32.totalorder %s217, %s218
      %p230 = scmp.eq.s32.totalorder %s28, 1
      %p231 = por %p229, %p230
      %p233 = scmp.ne.s32.totalorder %s218, %s232
      %p234 = scmp.eq.s32.totalorder %s28, 0
      %p235 = por %p233, %p234
      %s237 = sadd.s32 %s236, 1
      %p240 = scmp.eq.s32.totalorder %s22, 1
      %p241 = scmp.ne.s32.totalorder %s236, %s238
      %p242 = scmp.eq.s32.totalorder %s22, 0
      %p243 = por %p241, %p242
      %p244 = scmp.ne.s32.totalorder %s236, %s238
      %p245 = scmp.eq.s32.totalorder %s27, 1
      %p246 = por %p244, %p245
      %p247 = scmp.ne.s32.totalorder %s238, %s239
      %p248 = scmp.eq.s32.totalorder %s27, 0
      %p249 = por %p247, %p248
      %p250 = scmp.ne.s32.totalorder %s238, %s239
      %p251 = scmp.eq.s32.totalorder %s28, 1
      %p252 = por %p250, %p251
      %p254 = scmp.ne.s32.totalorder %s239, %s253
      %p255 = scmp.eq.s32.totalorder %s28, 0
      %p256 = por %p254, %p255
      %s257 = ssub.s32 %s30, %s37
      %p258 = scmp.eq.s32.totalorder %s257, 0
      %s260 = sadd.s32 %s259, 1
      %s261 = scalar_select %p258, %s259, %s260
      %p264 = pneg %p258
      %p265 = scmp.eq.s32.totalorder %s22, 1
      %p266 = por %p264, %p265
      %p267 = scmp.ne.s32.totalorder %s259, %s262
      %p268 = scmp.eq.s32.totalorder %s22, 0
      %p269 = por %p267, %p268
      %p270 = scmp.ne.s32.totalorder %s259, %s262
      %p271 = scmp.eq.s32.totalorder %s27, 1
      %p272 = por %p270, %p271
      %p273 = scmp.ne.s32.totalorder %s262, %s263
      %p274 = scmp.eq.s32.totalorder %s27, 0
      %p275 = por %p273, %p274
      %p276 = scmp.ne.s32.totalorder %s262, %s263
      %p277 = scmp.eq.s32.totalorder %s28, 1
      %p278 = por %p276, %p277
      %p280 = scmp.ne.s32.totalorder %s263, %s279
      %p281 = scmp.eq.s32.totalorder %s28, 0
      %p282 = por %p280, %p281
      %s283 = ssub.s32 %s30, %s37
      %p284 = scmp.eq.s32.totalorder %s283, 0
      %s286 = sadd.s32 %s285, 1
      %s287 = scalar_select %p284, %s285, %s286
      %p290 = pneg %p284
      %p291 = scmp.eq.s32.totalorder %s22, 1
      %p292 = por %p290, %p291
      %p293 = scmp.ne.s32.totalorder %s285, %s288
      %p294 = scmp.eq.s32.totalorder %s22, 0
      %p295 = por %p293, %p294
      %p296 = scmp.ne.s32.totalorder %s285, %s288
      %p297 = scmp.eq.s32.totalorder %s27, 1
      %p298 = por %p296, %p297
      %p299 = scmp.ne.s32.totalorder %s288, %s289
      %p300 = scmp.eq.s32.totalorder %s27, 0
      %p301 = por %p299, %p300
      %p302 = scmp.ne.s32.totalorder %s288, %s289
      %p303 = scmp.eq.s32.totalorder %s28, 1
      %p304 = por %p302, %p303
      %p306 = scmp.ne.s32.totalorder %s289, %s305
      %p307 = scmp.eq.s32.totalorder %s28, 0
      %p308 = por %p306, %p307
      %s309 = ssub.s32 %s30, %s37
      %p310 = scmp.eq.s32.totalorder %s309, 0
      %s312 = sadd.s32 %s311, 1
      %s313 = scalar_select %p310, %s311, %s312
      %p316 = pneg %p310
      %p317 = scmp.eq.s32.totalorder %s22, 1
      %p318 = por %p316, %p317
      %p319 = scmp.ne.s32.totalorder %s311, %s314
      %p320 = scmp.eq.s32.totalorder %s22, 0
      %p321 = por %p319, %p320
      %p322 = scmp.ne.s32.totalorder %s311, %s314
      %p323 = scmp.eq.s32.totalorder %s27, 1
      %p324 = por %p322, %p323
      %p325 = scmp.ne.s32.totalorder %s314, %s315
      %p326 = scmp.eq.s32.totalorder %s27, 0
      %p327 = por %p325, %p326
      %p328 = scmp.ne.s32.totalorder %s314, %s315
      %p329 = scmp.eq.s32.totalorder %s28, 1
      %p330 = por %p328, %p329
      %p332 = scmp.ne.s32.totalorder %s315, %s331
      %p333 = scmp.eq.s32.totalorder %s28, 0
      %p334 = por %p332, %p333
      %s335 = ssub.s32 %s29, %s41
      %p336 = scmp.eq.s32.totalorder %s335, 0
      %s338 = sadd.s32 %s337, 1
      %s339 = scalar_select %p336, %s337, %s338
      %p342 = pneg %p336
      %p343 = scmp.eq.s32.totalorder %s22, 1
      %p344 = por %p342, %p343
      %p345 = scmp.ne.s32.totalorder %s337, %s340
      %p346 = scmp.eq.s32.totalorder %s22, 0
      %p347 = por %p345, %p346
      %p348 = scmp.ne.s32.totalorder %s337, %s340
      %p349 = scmp.eq.s32.totalorder %s27, 1
      %p350 = por %p348, %p349
      %p351 = scmp.ne.s32.totalorder %s340, %s341
      %p352 = scmp.eq.s32.totalorder %s27, 0
      %p353 = por %p351, %p352
      %p354 = scmp.ne.s32.totalorder %s340, %s341
      %p355 = scmp.eq.s32.totalorder %s28, 1
      %p356 = por %p354, %p355
      %p358 = scmp.ne.s32.totalorder %s341, %s357
      %p359 = scmp.eq.s32.totalorder %s28, 0
      %p360 = por %p358, %p359
      %p361 = scmp.le.s32.totalorder 1, %s22
      %p362 = scmp.lt.s32.totalorder %s22, 3
      %p363 = pnand %p361, %p362
      %p364 = pneg %p363
      // Predicated region
      $region9: #{tpu_custom_call.1} parent=5 // pred_check
        _
      $region10: #{tpu_custom_call.1} parent=5 // pred_check_branch
        %366 = sbr.rel (%p363) target = $region12
      $region11: #{tpu_custom_call.1} parent=5 // pred_region
        %s367 = ssub.s32 %s22, 1
        // Predicated region
        $region13: #{tpu_custom_call.1} parent=11 // pred_check
          %p368 = pneg %p81
        $region14: #{tpu_custom_call.1} parent=11 // pred_check_branch
          %370 = sbr.rel (%p368) target = $region16
        $region15: #{tpu_custom_call.1} parent=11 // pred_region
          _
        $region16: #{tpu_custom_call.1} parent=11 // pred_fallthru
          _
        // Predicated region
        $region17: #{tpu_custom_call.1} parent=11 // pred_check
          %p371 = pneg %p102
        $region18: #{tpu_custom_call.1} parent=11 // pred_check_branch
          %373 = sbr.rel (%p371) target = $region20
        $region19: #{tpu_custom_call.1} parent=11 // pred_region
          _
        $region20: #{tpu_custom_call.1} parent=11 // pred_fallthru
          _
        // Predicated region
        $region21: #{tpu_custom_call.1} parent=11 // pred_check
          %p374 = pneg %p123
        $region22: #{tpu_custom_call.1} parent=11 // pred_check_branch
          %376 = sbr.rel (%p374) target = $region24
        $region23: #{tpu_custom_call.1} parent=11 // pred_region
          _
        $region24: #{tpu_custom_call.1} parent=11 // pred_fallthru
          _
        // Predicated region
        $region25: #{tpu_custom_call.1} parent=11 // pred_check
          %p377 = pneg %p144
        $region26: #{tpu_custom_call.1} parent=11 // pred_check_branch
          %379 = sbr.rel (%p377) target = $region28
        $region27: #{tpu_custom_call.1} parent=11 // pred_region
          _
        $region28: #{tpu_custom_call.1} parent=11 // pred_fallthru
          _
        // Predicated region
        $region29: #{tpu_custom_call.1} parent=11 // pred_check
          %p380 = pneg %p165
        $region30: #{tpu_custom_call.1} parent=11 // pred_check_branch
          %382 = sbr.rel (%p380) target = $region32
        $region31: #{tpu_custom_call.1} parent=11 // pred_region
          _
        $region32: #{tpu_custom_call.1} parent=11 // pred_fallthru
          _
        // Predicated region
        $region33: #{tpu_custom_call.1} parent=11 // pred_check
          %p383 = pneg %p186
        $region34: #{tpu_custom_call.1} parent=11 // pred_check_branch
          %385 = sbr.rel (%p383) target = $region36
        $region35: #{tpu_custom_call.1} parent=11 // pred_region
          _
        $region36: #{tpu_custom_call.1} parent=11 // pred_fallthru
          _
        // Predicated region
        $region37: #{tpu_custom_call.1} parent=11 // pred_check
          %p386 = pneg %p207
        $region38: #{tpu_custom_call.1} parent=11 // pred_check_branch
          %388 = sbr.rel (%p386) target = $region40
        $region39: #{tpu_custom_call.1} parent=11 // pred_region
          _
        $region40: #{tpu_custom_call.1} parent=11 // pred_fallthru
          _
        // Predicated region
        $region41: #{tpu_custom_call.1} parent=11 // pred_check
          %p389 = pneg %p228
        $region42: #{tpu_custom_call.1} parent=11 // pred_check_branch
          %391 = sbr.rel (%p389) target = $region44
        $region43: #{tpu_custom_call.1} parent=11 // pred_region
          _
        $region44: #{tpu_custom_call.1} parent=11 // pred_fallthru
          _
        // Predicated region
        $region45: #{tpu_custom_call.1} parent=11 // pred_check
          %p392 = pneg %p249
        $region46: #{tpu_custom_call.1} parent=11 // pred_check_branch
          %394 = sbr.rel (%p392) target = $region48
        $region47: #{tpu_custom_call.1} parent=11 // pred_region
          _
        $region48: #{tpu_custom_call.1} parent=11 // pred_fallthru
          _
        // Predicated region
        $region49: #{tpu_custom_call.1} parent=11 // pred_check
          %p395 = pneg %p275
        $region50: #{tpu_custom_call.1} parent=11 // pred_check_branch
          %397 = sbr.rel (%p395) target = $region52
        $region51: #{tpu_custom_call.1} parent=11 // pred_region
          %p398 = scmp.lt.s32.totalorder %s32, 0
          %s399 = scalar_select %p398, %s32, 0
          %s400 = smul.addr %s399, 8
          %s401 = scalar_lea.vmem %s10, %s400
        $region52: #{tpu_custom_call.1} parent=11 // pred_fallthru
          _
        // Predicated region
        $region53: #{tpu_custom_call.1} parent=11 // pred_check
          %p402 = pneg %p301
        $region54: #{tpu_custom_call.1} parent=11 // pred_check_branch
          %404 = sbr.rel (%p402) target = $region56
        $region55: #{tpu_custom_call.1} parent=11 // pred_region
          %p405 = scmp.lt.s32.totalorder %s32, 0
          %s406 = scalar_select %p405, %s32, 0
          %s407 = scalar_lea.vmem %s11, %s406
        $region56: #{tpu_custom_call.1} parent=11 // pred_fallthru
          _
        // Predicated region
        $region57: #{tpu_custom_call.1} parent=11 // pred_check
          %p408 = pneg %p327
        $region58: #{tpu_custom_call.1} parent=11 // pred_check_branch
          %410 = sbr.rel (%p408) target = $region60
        $region59: #{tpu_custom_call.1} parent=11 // pred_region
          %s411 = smul.u32 16, %s32
          %p412 = scmp.lt.s32.totalorder %s411, 15
          %s413 = scalar_select %p412, %s411, 15
          %s414 = smul.addr %s413, 8
          %s415 = scalar_lea.vmem %s12, %s414
          %s416 = smul.u32 16, %s32
        $region60: #{tpu_custom_call.1} parent=11 // pred_fallthru
          _
      $region12: #{tpu_custom_call.1} parent=5 // pred_fallthru
        _
      %p417 = scmp.lt.s32.totalorder %s22, 2
      // Predicated region
      $region61: #{tpu_custom_call.1} parent=5 // pred_check
        %p418 = pneg %p417
      $region62: #{tpu_custom_call.1} parent=5 // pred_check_branch
        %420 = sbr.rel (%p418) target = $region64
      $region63: #{tpu_custom_call.1} parent=5 // pred_region
        // Predicated region
        $region65: #{tpu_custom_call.1} parent=63 // pred_check
          %p421 = pneg %p54
        $region66: #{tpu_custom_call.1} parent=63 // pred_check_branch
          %423 = sbr.rel (%p421) target = $region68
        $region67: #{tpu_custom_call.1} parent=63 // pred_region
          %p424 = scmp.lt.s32.totalorder %s29, 1
          %s425 = scalar_select %p424, %s29, 1
          %s426 = smul.addr %s425, 8
          %s427 = scalar_lea.vmem %s0, %s426
        $region68: #{tpu_custom_call.1} parent=63 // pred_fallthru
          _
      $region64: #{tpu_custom_call.1} parent=5 // pred_fallthru
        _
      %p428 = scmp.le.s32.totalorder 1, %s22
      %p429 = scmp.lt.s32.totalorder %s22, 3
      %p430 = pnand %p428, %p429
      %p431 = pneg %p430
      // Predicated region
      $region69: #{tpu_custom_call.1} parent=5 // pred_check
        _
      $region70: #{tpu_custom_call.1} parent=5 // pred_check_branch
        %433 = sbr.rel (%p430) target = $region72
      $region71: #{tpu_custom_call.1} parent=5 // pred_region
        %s434 = ssub.s32 %s22, 1
        %p435 = scmp.lt.s32.totalorder %s31, 1
        %s436 = scalar_select %p435, %s31, 1
        %s437 = smul.addr %s436, 8
        %s438 = scalar_lea.vmem %s0, %s437
        %p439 = pneg %p60
        %p440 = pneg %p57
        %p441 = pneg %p81
        %p442 = pneg %p78
        %p443 = pneg %p102
        %p444 = pneg %p99
        %p445 = pneg %p123
        %p446 = pneg %p120
        %p447 = pneg %p144
        %p448 = pneg %p141
        %p449 = pneg %p165
        %p450 = pneg %p162
        %p451 = pneg %p186
        %p452 = pneg %p183
        %p453 = pneg %p207
        %p454 = pneg %p204
        %p455 = pneg %p228
        %p456 = pneg %p225
        %p457 = pneg %p249
        %p458 = pneg %p246
        %p459 = scmp.lt.s32.totalorder %s32, 0
        %s460 = scalar_select %p459, %s32, 0
        %s461 = smul.addr %s460, 8
        %s462 = scalar_lea.vmem %s10, %s461
        %p463 = pneg %p275
        %p464 = pneg %p272
        %p465 = scmp.lt.s32.totalorder %s32, 0
        %s466 = scalar_select %p465, %s32, 0
        %s467 = scalar_lea.vmem %s11, %s466
        %p468 = pneg %p301
        %p469 = pneg %p298
        %s470 = smul.u32 16, %s32
        %p471 = scmp.lt.s32.totalorder %s470, 15
        %s472 = scalar_select %p471, %s470, 15
        %s473 = smul.addr %s472, 8
        %s474 = scalar_lea.vmem %s12, %s473
        %p475 = pneg %p327
        %p476 = pneg %p324
        %p477 = pneg %p353
        %p478 = pneg %p350
        %s479 = sand.u32 %s340, 1
        %s480 = scalar_lea.sflag [#allocation6], %s479
        %s481 = sand.u32 %s340, 1
        %s482 = smul.addr %s481, 8
        %s483 = scalar_lea.vmem [#allocation5], %s482
        %p484 = scmp.lt.s32.totalorder %s31, 1
        %s485 = scalar_select %p484, %s31, 1
        %s486 = smul.addr %s485, 8
        %s487 = scalar_lea.vmem %s0, %s486
        %p488 = scmp.lt.s32.totalorder %s32, 0
        %s489 = scalar_select %p488, %s32, 0
        %s490 = smul.addr %s489, 8
        %s491 = scalar_lea.vmem %s10, %s490
        %p492 = scmp.lt.s32.totalorder %s32, 0
        %s493 = scalar_select %p492, %s32, 0
        %s494 = scalar_lea.vmem %s11, %s493
        %s495 = smul.u32 16, %s32
        %p496 = scmp.lt.s32.totalorder %s495, 15
        %s497 = scalar_select %p496, %s495, 15
        %s498 = smul.addr %s497, 8
        %s499 = scalar_lea.vmem %s12, %s498
        %s500 = smul.u32 16, %s32
        %p501 = scmp.eq.s32.totalorder %s32, 0
        // Predicated region
        $region73: #{tpu_custom_call.1} parent=71 // pred_check
          %p502 = pneg %p501
        $region74: #{tpu_custom_call.1} parent=71 // pred_check_branch
          %504 = sbr.rel (%p502) target = $region76
        $region75: #{tpu_custom_call.1} parent=71 // pred_region
          %v505 = vld [vmem:[%s487] sm:$0xff]
          %v506 = vld [vmem:[%s1] sm:$0x1]
          %v507 = vld [vmem:[%s2] sm:$0x1]
          %vm508 = vcmask 261120
          %v509 = vsel %vm508, %v505, 0.0
          %510 = vadd.xlane.f32.xlu0 %v509
          %v511 = vpop.xlane.xlu0 %510
          %v512 = vrcp.pop 32.0
          %v513 = vmul.f32 %v511, %v512
          %v514 = vsub.f32 %v505, %v513
          %v515 = vmul.f32 %v514, %v514
          %v516 = vsel %vm508, %v515, 0.0
          %517 = vadd.xlane.f32.xlu0 %v516
          %v518 = vpop.xlane.xlu0 %517
          %v519 = vmul.f32 %v518, %v512
          %v520 = vadd.f32 %v519, 1e-12
          %v521 = vrsqrt.pop %v520
          %v522 = vmul.f32 %v514, %v521
          %v524 = vlaneseq
          %v525 = vshrl.u32 %v524, 7
          %v526 = vsub.s32 0, %v525
          %v527 = vrot.slane %v506, %v526
          %v529 = vmul.f32 %v522, %v527
          %v531 = vlaneseq
          %v532 = vshrl.u32 %v531, 7
          %v533 = vsub.s32 0, %v532
          %v534 = vrot.slane %v507, %v533
          %v536 = vadd.f32 %v529, %v534
          %v537 = vld [vmem:[%s3] sm:$0xff]
          %v538 = vld [vmem:[%s3 + $0x8] sm:$0xff]
          %v539 = vld [vmem:[%s3 + $0x10] sm:$0xff]
          %v540 = vld [vmem:[%s3 + $0x18] sm:$0xff]
          %v541 = vld [vmem:[%s4] sm:$0x1]
          %v543 = vlaneseq
          %v544 = vshrl.u32 %v543, 7
          %v545 = vsub.s32 0, %v544
          %v546 = vrot.slane %v541, %v545
          %v549 = vsel %vm508, %v536, 0
          %551 = vmatprep.subr.mxu0 0.0
          %552 = vmatpush1.msra.mxu0 %v537
          %553 = vmatprep.subr.mxu0 0.0
          %554 = vmatpush1.msra.mxu0 %v538
          %555 = vmatprep.subr.mxu0 0.0
          %556 = vmatpush1.msra.mxu0 %v539
          %557 = vmatprep.subr.mxu0 0.0
          %558 = vmatpush1.msra.mxu0 %v540
          %559 = vmatprep.subr.mxu0 0.0
          %560 = vmatpush1.msra.mxu0 0.0
          %561 = vmatprep.subr.mxu0 0.0
          %562 = vmatpush1.msra.mxu0 0.0
          %563 = vmatprep.subr.mxu0 0.0
          %564 = vmatpush1.msra.mxu0 0.0
          %565 = vmatprep.subr.mxu0 0.0
          %566 = vmatpush1.msra.mxu0 0.0
          %567 = vmatprep.subr.mxu0 0.0
          %568 = vmatpush1.msra.mxu0 0.0
          %569 = vmatprep.subr.mxu0 0.0
          %570 = vmatpush1.msra.mxu0 0.0
          %571 = vmatprep.subr.mxu0 0.0
          %572 = vmatpush1.msra.mxu0 0.0
          %573 = vmatprep.subr.mxu0 0.0
          %574 = vmatpush1.msra.mxu0 0.0
          %575 = vmatprep.subr.mxu0 0.0
          %576 = vmatpush1.msra.mxu0 0.0
          %577 = vmatprep.subr.mxu0 0.0
          %578 = vmatpush1.msra.mxu0 0.0
          %579 = vmatprep.subr.mxu0 0.0
          %580 = vmatpush1.msra.mxu0 0.0
          %581 = vmatprep.subr.mxu0 0.0
          %582 = vmatpush1.msra.mxu0 0.0
          %583 = vmatprep.subr.mxu0 0.0
          %584 = vmatpush1.msra.mxu0 0.0
          %585 = vmatprep.subr.mxu0 0.0
          %586 = vmatpush1.msra.mxu0 0.0
          %587 = vmatprep.subr.mxu0 0.0
          %588 = vmatpush1.msra.mxu0 0.0
          %589 = vmatprep.subr.mxu0 0.0
          %590 = vmatpush1.msra.mxu0 0.0
          %591 = vmatprep.subr.mxu0 0.0
          %592 = vmatpush1.msra.mxu0 0.0
          %593 = vmatprep.subr.mxu0 0.0
          %594 = vmatpush1.msra.mxu0 0.0
          %595 = vmatprep.subr.mxu0 0.0
          %596 = vmatpush1.msra.mxu0 0.0
          %597 = vmatprep.subr.mxu0 0.0
          %598 = vmatpush1.msra.mxu0 0.0
          %599 = vmatprep.subr.mxu0 0.0
          %600 = vmatpush1.msra.mxu0 0.0
          %601 = vmatprep.subr.mxu0 0.0
          %602 = vmatpush1.msra.mxu0 0.0
          %603 = vmatprep.subr.mxu0 0.0
          %604 = vmatpush1.msra.mxu0 0.0
          %605 = vmatprep.subr.mxu0 0.0
          %606 = vmatpush1.msra.mxu0 0.0
          %607 = vmatprep.subr.mxu0 0.0
          %608 = vmatpush1.msra.mxu0 0.0
          %609 = vmatprep.subr.mxu0 0.0
          %610 = vmatpush1.msra.mxu0 0.0
          %611 = vmatprep.subr.mxu0 0.0
          %612 = vmatpush1.msra.mxu0 0.0
          %613 = vmatprep.subr.mxu0 0.0
          %614 = vmatpush1.msra.mxu0 0.0
          %615 = vmatprep.mubr.f32.mxu0 0.0
          %616 = vmatmul.mubr.f32.gmra.mrb[0].mxu0 %v549
          %v617 = vpop.f32.mrb[0].mxu0
          %v618 = vadd.f32 %v546, %v617
          %v619 = vpop.f32.mrb[0].mxu0
          %620 = vdwg.mxu0
          %622 = vrot.lane.b32.xlu0 %v618, 96
          %v623 = vpop.permute.xlu0 %622
          %vm624 = vcmask 64512
          %v625 = vsel %vm624, %v618, 0
          %v627 = vsel %vm624, %v623, 0
          %629 = vmatprep.subr.mxu0 0.0
          %630 = vmatpush1.xpose.msra.mxu0 %v627
          %631 = vmatprep.subr.mxu0 0.0
          %632 = vmatpush1.xpose.msra.mxu0 0.0
          %633 = vmatprep.subr.mxu0 0.0
          %634 = vmatpush1.xpose.msra.mxu0 0.0
          %635 = vmatprep.subr.mxu0 0.0
          %636 = vmatpush1.xpose.msra.mxu0 0.0
          %637 = vmatprep.subr.mxu0 0.0
          %638 = vmatpush1.xpose.msra.mxu0 0.0
          %639 = vmatprep.subr.mxu0 0.0
          %640 = vmatpush1.xpose.msra.mxu0 0.0
          %641 = vmatprep.subr.mxu0 0.0
          %642 = vmatpush1.xpose.msra.mxu0 0.0
          %643 = vmatprep.subr.mxu0 0.0
          %644 = vmatpush1.xpose.msra.mxu0 0.0
          %645 = vmatprep.subr.mxu0 0.0
          %646 = vmatpush1.xpose.msra.mxu0 0.0
          %647 = vmatprep.subr.mxu0 0.0
          %648 = vmatpush1.xpose.msra.mxu0 0.0
          %649 = vmatprep.subr.mxu0 0.0
          %650 = vmatpush1.xpose.msra.mxu0 0.0
          %651 = vmatprep.subr.mxu0 0.0
          %652 = vmatpush1.xpose.msra.mxu0 0.0
          %653 = vmatprep.subr.mxu0 0.0
          %654 = vmatpush1.xpose.msra.mxu0 0.0
          %655 = vmatprep.subr.mxu0 0.0
          %656 = vmatpush1.xpose.msra.mxu0 0.0
          %657 = vmatprep.subr.mxu0 0.0
          %658 = vmatpush1.xpose.msra.mxu0 0.0
          %659 = vmatprep.subr.mxu0 0.0
          %660 = vmatpush1.xpose.msra.mxu0 0.0
          %661 = vmatprep.subr.mxu0 0.0
          %662 = vmatpush1.xpose.msra.mxu0 0.0
          %663 = vmatprep.subr.mxu0 0.0
          %664 = vmatpush1.xpose.msra.mxu0 0.0
          %665 = vmatprep.subr.mxu0 0.0
          %666 = vmatpush1.xpose.msra.mxu0 0.0
          %667 = vmatprep.subr.mxu0 0.0
          %668 = vmatpush1.xpose.msra.mxu0 0.0
          %669 = vmatprep.subr.mxu0 0.0
          %670 = vmatpush1.xpose.msra.mxu0 0.0
          %671 = vmatprep.subr.mxu0 0.0
          %672 = vmatpush1.xpose.msra.mxu0 0.0
          %673 = vmatprep.subr.mxu0 0.0
          %674 = vmatpush1.xpose.msra.mxu0 0.0
          %675 = vmatprep.subr.mxu0 0.0
          %676 = vmatpush1.xpose.msra.mxu0 0.0
          %677 = vmatprep.subr.mxu0 0.0
          %678 = vmatpush1.xpose.msra.mxu0 0.0
          %679 = vmatprep.subr.mxu0 0.0
          %680 = vmatpush1.xpose.msra.mxu0 0.0
          %681 = vmatprep.subr.mxu0 0.0
          %682 = vmatpush1.xpose.msra.mxu0 0.0
          %683 = vmatprep.subr.mxu0 0.0
          %684 = vmatpush1.xpose.msra.mxu0 0.0
          %685 = vmatprep.subr.mxu0 0.0
          %686 = vmatpush1.xpose.msra.mxu0 0.0
          %687 = vmatprep.subr.mxu0 0.0
          %688 = vmatpush1.xpose.msra.mxu0 0.0
          %689 = vmatprep.subr.mxu0 0.0
          %690 = vmatpush1.xpose.msra.mxu0 0.0
          %691 = vmatprep.subr.mxu0 0.0
          %692 = vmatpush1.xpose.msra.mxu0 0.0
          %693 = vmatprep.mubr.f32.mxu0 0.0
          %694 = vmatmul.mubr.f32.gmra.mrb[0].mxu0 %v625
          %v695 = vpop.f32.mrb[0].mxu0
          %v696 = vadd.f32 0.0, %v695
          %v697 = vpop.f32.mrb[0].mxu0
          %698 = vdwg.mxu0
          %v699 = vmul.f32 %v696, 0.35355338
          %v700 = vsel %vm624, %v699, -inf
          %701 = vmax.xlane.f32.xlu0 %v700
          %v702 = vpop.xlane.xlu0 %701
          %v703 = vsub.f32 %v699, %v702
          %v704 = vmul.f32 %v703, 1.442695
          %v705 = vpow.pop %v704
          %v706 = vsel %vm624, %v705, 0.0
          %707 = vadd.xlane.f32.xlu0 %v706
          %v708 = vpop.xlane.xlu0 %707
          %v709 = vrcp.pop %v708
          %v710 = vmul.f32 %v705, %v709
          %711 = vrot.lane.b32.xlu0 %v618, 64
          %v712 = vpop.permute.xlu0 %711
          %v715 = vsel %vm624, %v710, 0
          %717 = vmatprep.subr.mxu0 0.0
          %718 = vmatpush1.msra.mxu0 %v712
          %719 = vmatprep.subr.mxu0 0.0
          %720 = vmatpush1.msra.mxu0 0.0
          %721 = vmatprep.subr.mxu0 0.0
          %722 = vmatpush1.msra.mxu0 0.0
          %723 = vmatprep.subr.mxu0 0.0
          %724 = vmatpush1.msra.mxu0 0.0
          %725 = vmatprep.subr.mxu0 0.0
          %726 = vmatpush1.msra.mxu0 0.0
          %727 = vmatprep.subr.mxu0 0.0
          %728 = vmatpush1.msra.mxu0 0.0
          %729 = vmatprep.subr.mxu0 0.0
          %730 = vmatpush1.msra.mxu0 0.0
          %731 = vmatprep.subr.mxu0 0.0
          %732 = vmatpush1.msra.mxu0 0.0
          %733 = vmatprep.subr.mxu0 0.0
          %734 = vmatpush1.msra.mxu0 0.0
          %735 = vmatprep.subr.mxu0 0.0
          %736 = vmatpush1.msra.mxu0 0.0
          %737 = vmatprep.subr.mxu0 0.0
          %738 = vmatpush1.msra.mxu0 0.0
          %739 = vmatprep.subr.mxu0 0.0
          %740 = vmatpush1.msra.mxu0 0.0
          %741 = vmatprep.subr.mxu0 0.0
          %742 = vmatpush1.msra.mxu0 0.0
          %743 = vmatprep.subr.mxu0 0.0
          %744 = vmatpush1.msra.mxu0 0.0
          %745 = vmatprep.subr.mxu0 0.0
          %746 = vmatpush1.msra.mxu0 0.0
          %747 = vmatprep.subr.mxu0 0.0
          %748 = vmatpush1.msra.mxu0 0.0
          %749 = vmatprep.subr.mxu0 0.0
          %750 = vmatpush1.msra.mxu0 0.0
          %751 = vmatprep.subr.mxu0 0.0
          %752 = vmatpush1.msra.mxu0 0.0
          %753 = vmatprep.subr.mxu0 0.0
          %754 = vmatpush1.msra.mxu0 0.0
          %755 = vmatprep.subr.mxu0 0.0
          %756 = vmatpush1.msra.mxu0 0.0
          %757 = vmatprep.subr.mxu0 0.0
          %758 = vmatpush1.msra.mxu0 0.0
          %759 = vmatprep.subr.mxu0 0.0
          %760 = vmatpush1.msra.mxu0 0.0
          %761 = vmatprep.subr.mxu0 0.0
          %762 = vmatpush1.msra.mxu0 0.0
          %763 = vmatprep.subr.mxu0 0.0
          %764 = vmatpush1.msra.mxu0 0.0
          %765 = vmatprep.subr.mxu0 0.0
          %766 = vmatpush1.msra.mxu0 0.0
          %767 = vmatprep.subr.mxu0 0.0
          %768 = vmatpush1.msra.mxu0 0.0
          %769 = vmatprep.subr.mxu0 0.0
          %770 = vmatpush1.msra.mxu0 0.0
          %771 = vmatprep.subr.mxu0 0.0
          %772 = vmatpush1.msra.mxu0 0.0
          %773 = vmatprep.subr.mxu0 0.0
          %774 = vmatpush1.msra.mxu0 0.0
          %775 = vmatprep.subr.mxu0 0.0
          %776 = vmatpush1.msra.mxu0 0.0
          %777 = vmatprep.subr.mxu0 0.0
          %778 = vmatpush1.msra.mxu0 0.0
          %779 = vmatprep.subr.mxu0 0.0
          %780 = vmatpush1.msra.mxu0 0.0
          %781 = vmatprep.mubr.f32.mxu0 0.0
          %782 = vmatmul.mubr.f32.gmra.mrb[0].mxu0 %v715
          %v783 = vpop.f32.mrb[0].mxu0
          %v784 = vadd.f32 0.0, %v783
          %v785 = vpop.f32.mrb[0].mxu0
          %786 = vdwg.mxu0
          %787 = vst.msk [vmem:[#allocation4] sm:$0xff] %vm624, %v784
          %788 = vrot.lane.b32.xlu0 %v618, 120
          %v789 = vpop.permute.xlu0 %788
          %790 = vrot.lane.b32.xlu0 %v618, 88
          %v791 = vpop.permute.xlu0 %790
          %v792 = vsel %vm624, %v789, 0
          %v794 = vsel %vm624, %v791, 0
          %796 = vmatprep.subr.mxu0 0.0
          %797 = vmatpush1.xpose.msra.mxu0 %v794
          %798 = vmatprep.subr.mxu0 0.0
          %799 = vmatpush1.xpose.msra.mxu0 0.0
          %800 = vmatprep.subr.mxu0 0.0
          %801 = vmatpush1.xpose.msra.mxu0 0.0
          %802 = vmatprep.subr.mxu0 0.0
          %803 = vmatpush1.xpose.msra.mxu0 0.0
          %804 = vmatprep.subr.mxu0 0.0
          %805 = vmatpush1.xpose.msra.mxu0 0.0
          %806 = vmatprep.subr.mxu0 0.0
          %807 = vmatpush1.xpose.msra.mxu0 0.0
          %808 = vmatprep.subr.mxu0 0.0
          %809 = vmatpush1.xpose.msra.mxu0 0.0
          %810 = vmatprep.subr.mxu0 0.0
          %811 = vmatpush1.xpose.msra.mxu0 0.0
          %812 = vmatprep.subr.mxu0 0.0
          %813 = vmatpush1.xpose.msra.mxu0 0.0
          %814 = vmatprep.subr.mxu0 0.0
          %815 = vmatpush1.xpose.msra.mxu0 0.0
          %816 = vmatprep.subr.mxu0 0.0
          %817 = vmatpush1.xpose.msra.mxu0 0.0
          %818 = vmatprep.subr.mxu0 0.0
          %819 = vmatpush1.xpose.msra.mxu0 0.0
          %820 = vmatprep.subr.mxu0 0.0
          %821 = vmatpush1.xpose.msra.mxu0 0.0
          %822 = vmatprep.subr.mxu0 0.0
          %823 = vmatpush1.xpose.msra.mxu0 0.0
          %824 = vmatprep.subr.mxu0 0.0
          %825 = vmatpush1.xpose.msra.mxu0 0.0
          %826 = vmatprep.subr.mxu0 0.0
          %827 = vmatpush1.xpose.msra.mxu0 0.0
          %828 = vmatprep.subr.mxu0 0.0
          %829 = vmatpush1.xpose.msra.mxu0 0.0
          %830 = vmatprep.subr.mxu0 0.0
          %831 = vmatpush1.xpose.msra.mxu0 0.0
          %832 = vmatprep.subr.mxu0 0.0
          %833 = vmatpush1.xpose.msra.mxu0 0.0
          %834 = vmatprep.subr.mxu0 0.0
          %835 = vmatpush1.xpose.msra.mxu0 0.0
          %836 = vmatprep.subr.mxu0 0.0
          %837 = vmatpush1.xpose.msra.mxu0 0.0
          %838 = vmatprep.subr.mxu0 0.0
          %839 = vmatpush1.xpose.msra.mxu0 0.0
          %840 = vmatprep.subr.mxu0 0.0
          %841 = vmatpush1.xpose.msra.mxu0 0.0
          %842 = vmatprep.subr.mxu0 0.0
          %843 = vmatpush1.xpose.msra.mxu0 0.0
          %844 = vmatprep.subr.mxu0 0.0
          %845 = vmatpush1.xpose.msra.mxu0 0.0
          %846 = vmatprep.subr.mxu0 0.0
          %847 = vmatpush1.xpose.msra.mxu0 0.0
          %848 = vmatprep.subr.mxu0 0.0
          %849 = vmatpush1.xpose.msra.mxu0 0.0
          %850 = vmatprep.subr.mxu0 0.0
          %851 = vmatpush1.xpose.msra.mxu0 0.0
          %852 = vmatprep.subr.mxu0 0.0
          %853 = vmatpush1.xpose.msra.mxu0 0.0
          %854 = vmatprep.subr.mxu0 0.0
          %855 = vmatpush1.xpose.msra.mxu0 0.0
          %856 = vmatprep.subr.mxu0 0.0
          %857 = vmatpush1.xpose.msra.mxu0 0.0
          %858 = vmatprep.subr.mxu0 0.0
          %859 = vmatpush1.xpose.msra.mxu0 0.0
          %860 = vmatprep.mubr.f32.mxu0 0.0
          %861 = vmatmul.mubr.f32.gmra.mrb[0].mxu0 %v792
          %v862 = vpop.f32.mrb[0].mxu0
          %v863 = vadd.f32 0.0, %v862
          %v864 = vpop.f32.mrb[0].mxu0
          %865 = vdwg.mxu0
          %v866 = vmul.f32 %v863, 0.35355338
          %v867 = vsel %vm624, %v866, -inf
          %868 = vmax.xlane.f32.xlu0 %v867
          %v869 = vpop.xlane.xlu0 %868
          %v870 = vsub.f32 %v866, %v869
          %v871 = vmul.f32 %v870, 1.442695
          %v872 = vpow.pop %v871
          %v873 = vsel %vm624, %v872, 0.0
          %874 = vadd.xlane.f32.xlu0 %v873
          %v875 = vpop.xlane.xlu0 %874
          %v876 = vrcp.pop %v875
          %v877 = vmul.f32 %v872, %v876
          %878 = vrot.lane.b32.xlu0 %v618, 56
          %v879 = vpop.permute.xlu0 %878
          %v882 = vsel %vm624, %v877, 0
          %884 = vmatprep.subr.mxu0 0.0
          %885 = vmatpush1.msra.mxu0 %v879
          %886 = vmatprep.subr.mxu0 0.0
          %887 = vmatpush1.msra.mxu0 0.0
          %888 = vmatprep.subr.mxu0 0.0
          %889 = vmatpush1.msra.mxu0 0.0
          %890 = vmatprep.subr.mxu0 0.0
          %891 = vmatpush1.msra.mxu0 0.0
          %892 = vmatprep.subr.mxu0 0.0
          %893 = vmatpush1.msra.mxu0 0.0
          %894 = vmatprep.subr.mxu0 0.0
          %895 = vmatpush1.msra.mxu0 0.0
          %896 = vmatprep.subr.mxu0 0.0
          %897 = vmatpush1.msra.mxu0 0.0
          %898 = vmatprep.subr.mxu0 0.0
          %899 = vmatpush1.msra.mxu0 0.0
          %900 = vmatprep.subr.mxu0 0.0
          %901 = vmatpush1.msra.mxu0 0.0
          %902 = vmatprep.subr.mxu0 0.0
          %903 = vmatpush1.msra.mxu0 0.0
          %904 = vmatprep.subr.mxu0 0.0
          %905 = vmatpush1.msra.mxu0 0.0
          %906 = vmatprep.subr.mxu0 0.0
          %907 = vmatpush1.msra.mxu0 0.0
          %908 = vmatprep.subr.mxu0 0.0
          %909 = vmatpush1.msra.mxu0 0.0
          %910 = vmatprep.subr.mxu0 0.0
          %911 = vmatpush1.msra.mxu0 0.0
          %912 = vmatprep.subr.mxu0 0.0
          %913 = vmatpush1.msra.mxu0 0.0
          %914 = vmatprep.subr.mxu0 0.0
          %915 = vmatpush1.msra.mxu0 0.0
          %916 = vmatprep.subr.mxu0 0.0
          %917 = vmatpush1.msra.mxu0 0.0
          %918 = vmatprep.subr.mxu0 0.0
          %919 = vmatpush1.msra.mxu0 0.0
          %920 = vmatprep.subr.mxu0 0.0
          %921 = vmatpush1.msra.mxu0 0.0
          %922 = vmatprep.subr.mxu0 0.0
          %923 = vmatpush1.msra.mxu0 0.0
          %924 = vmatprep.subr.mxu0 0.0
          %925 = vmatpush1.msra.mxu0 0.0
          %926 = vmatprep.subr.mxu0 0.0
          %927 = vmatpush1.msra.mxu0 0.0
          %928 = vmatprep.subr.mxu0 0.0
          %929 = vmatpush1.msra.mxu0 0.0
          %930 = vmatprep.subr.mxu0 0.0
          %931 = vmatpush1.msra.mxu0 0.0
          %932 = vmatprep.subr.mxu0 0.0
          %933 = vmatpush1.msra.mxu0 0.0
          %934 = vmatprep.subr.mxu0 0.0
          %935 = vmatpush1.msra.mxu0 0.0
          %936 = vmatprep.subr.mxu0 0.0
          %937 = vmatpush1.msra.mxu0 0.0
          %938 = vmatprep.subr.mxu0 0.0
          %939 = vmatpush1.msra.mxu0 0.0
          %940 = vmatprep.subr.mxu0 0.0
          %941 = vmatpush1.msra.mxu0 0.0
          %942 = vmatprep.subr.mxu0 0.0
          %943 = vmatpush1.msra.mxu0 0.0
          %944 = vmatprep.subr.mxu0 0.0
          %945 = vmatpush1.msra.mxu0 0.0
          %946 = vmatprep.subr.mxu0 0.0
          %947 = vmatpush1.msra.mxu0 0.0
          %948 = vmatprep.mubr.f32.mxu0 0.0
          %949 = vmatmul.mubr.f32.gmra.mrb[0].mxu0 %v882
          %v950 = vpop.f32.mrb[0].mxu0
          %v951 = vadd.f32 0.0, %v950
          %v952 = vpop.f32.mrb[0].mxu0
          %953 = vdwg.mxu0
          %955 = vrot.lane.b32.xlu0 %v951, 8
          %v956 = vpop.permute.xlu0 %955
          %vm958 = vcmask 130112
          %959 = vst.msk [vmem:[#allocation4] sm:$0xff] %vm958, %v956
          %960 = vrot.lane.b32.xlu0 %v618, 112
          %v961 = vpop.permute.xlu0 %960
          %962 = vrot.lane.b32.xlu0 %v618, 80
          %v963 = vpop.permute.xlu0 %962
          %v964 = vsel %vm624, %v961, 0
          %v966 = vsel %vm624, %v963, 0
          %968 = vmatprep.subr.mxu0 0.0
          %969 = vmatpush1.xpose.msra.mxu0 %v966
          %970 = vmatprep.subr.mxu0 0.0
          %971 = vmatpush1.xpose.msra.mxu0 0.0
          %972 = vmatprep.subr.mxu0 0.0
          %973 = vmatpush1.xpose.msra.mxu0 0.0
          %974 = vmatprep.subr.mxu0 0.0
          %975 = vmatpush1.xpose.msra.mxu0 0.0
          %976 = vmatprep.subr.mxu0 0.0
          %977 = vmatpush1.xpose.msra.mxu0 0.0
          %978 = vmatprep.subr.mxu0 0.0
          %979 = vmatpush1.xpose.msra.mxu0 0.0
          %980 = vmatprep.subr.mxu0 0.0
          %981 = vmatpush1.xpose.msra.mxu0 0.0
          %982 = vmatprep.subr.mxu0 0.0
          %983 = vmatpush1.xpose.msra.mxu0 0.0
          %984 = vmatprep.subr.mxu0 0.0
          %985 = vmatpush1.xpose.msra.mxu0 0.0
          %986 = vmatprep.subr.mxu0 0.0
          %987 = vmatpush1.xpose.msra.mxu0 0.0
          %988 = vmatprep.subr.mxu0 0.0
          %989 = vmatpush1.xpose.msra.mxu0 0.0
          %990 = vmatprep.subr.mxu0 0.0
          %991 = vmatpush1.xpose.msra.mxu0 0.0
          %992 = vmatprep.subr.mxu0 0.0
          %993 = vmatpush1.xpose.msra.mxu0 0.0
          %994 = vmatprep.subr.mxu0 0.0
          %995 = vmatpush1.xpose.msra.mxu0 0.0
          %996 = vmatprep.subr.mxu0 0.0
          %997 = vmatpush1.xpose.msra.mxu0 0.0
          %998 = vmatprep.subr.mxu0 0.0
          %999 = vmatpush1.xpose.msra.mxu0 0.0
          %1000 = vmatprep.subr.mxu0 0.0
          %1001 = vmatpush1.xpose.msra.mxu0 0.0
          %1002 = vmatprep.subr.mxu0 0.0
          %1003 = vmatpush1.xpose.msra.mxu0 0.0
          %1004 = vmatprep.subr.mxu0 0.0
          %1005 = vmatpush1.xpose.msra.mxu0 0.0
          %1006 = vmatprep.subr.mxu0 0.0
          %1007 = vmatpush1.xpose.msra.mxu0 0.0
          %1008 = vmatprep.subr.mxu0 0.0
          %1009 = vmatpush1.xpose.msra.mxu0 0.0
          %1010 = vmatprep.subr.mxu0 0.0
          %1011 = vmatpush1.xpose.msra.mxu0 0.0
          %1012 = vmatprep.subr.mxu0 0.0
          %1013 = vmatpush1.xpose.msra.mxu0 0.0
          %1014 = vmatprep.subr.mxu0 0.0
          %1015 = vmatpush1.xpose.msra.mxu0 0.0
          %1016 = vmatprep.subr.mxu0 0.0
          %1017 = vmatpush1.xpose.msra.mxu0 0.0
          %1018 = vmatprep.subr.mxu0 0.0
          %1019 = vmatpush1.xpose.msra.mxu0 0.0
          %1020 = vmatprep.subr.mxu0 0.0
          %1021 = vmatpush1.xpose.msra.mxu0 0.0
          %1022 = vmatprep.subr.mxu0 0.0
          %1023 = vmatpush1.xpose.msra.mxu0 0.0
          %1024 = vmatprep.subr.mxu0 0.0
          %1025 = vmatpush1.xpose.msra.mxu0 0.0
          %1026 = vmatprep.subr.mxu0 0.0
          %1027 = vmatpush1.xpose.msra.mxu0 0.0
          %1028 = vmatprep.subr.mxu0 0.0
          %1029 = vmatpush1.xpose.msra.mxu0 0.0
          %1030 = vmatprep.subr.mxu0 0.0
          %1031 = vmatpush1.xpose.msra.mxu0 0.0
          %1032 = vmatprep.mubr.f32.mxu0 0.0
          %1033 = vmatmul.mubr.f32.gmra.mrb[0].mxu0 %v964
          %v1034 = vpop.f32.mrb[0].mxu0
          %v1035 = vadd.f32 0.0, %v1034
          %v1036 = vpop.f32.mrb[0].mxu0
          %1037 = vdwg.mxu0
          %v1038 = vmul.f32 %v1035, 0.35355338
          %v1039 = vsel %vm624, %v1038, -inf
          %1040 = vmax.xlane.f32.xlu0 %v1039
          %v1041 = vpop.xlane.xlu0 %1040
          %v1042 = vsub.f32 %v1038, %v1041
          %v1043 = vmul.f32 %v1042, 1.442695
          %v1044 = vpow.pop %v1043
          %v1045 = vsel %vm624, %v1044, 0.0
          %1046 = vadd.xlane.f32.xlu0 %v1045
          %v1047 = vpop.xlane.xlu0 %1046
          %v1048 = vrcp.pop %v1047
          %v1049 = vmul.f32 %v1044, %v1048
          %1050 = vrot.lane.b32.xlu0 %v618, 48
          %v1051 = vpop.permute.xlu0 %1050
          %v1054 = vsel %vm624, %v1049, 0
          %1056 = vmatprep.subr.mxu0 0.0
          %1057 = vmatpush1.msra.mxu0 %v1051
          %1058 = vmatprep.subr.mxu0 0.0
          %1059 = vmatpush1.msra.mxu0 0.0
          %1060 = vmatprep.subr.mxu0 0.0
          %1061 = vmatpush1.msra.mxu0 0.0
          %1062 = vmatprep.subr.mxu0 0.0
          %1063 = vmatpush1.msra.mxu0 0.0
          %1064 = vmatprep.subr.mxu0 0.0
          %1065 = vmatpush1.msra.mxu0 0.0
          %1066 = vmatprep.subr.mxu0 0.0
          %1067 = vmatpush1.msra.mxu0 0.0
          %1068 = vmatprep.subr.mxu0 0.0
          %1069 = vmatpush1.msra.mxu0 0.0
          %1070 = vmatprep.subr.mxu0 0.0
          %1071 = vmatpush1.msra.mxu0 0.0
          %1072 = vmatprep.subr.mxu0 0.0
          %1073 = vmatpush1.msra.mxu0 0.0
          %1074 = vmatprep.subr.mxu0 0.0
          %1075 = vmatpush1.msra.mxu0 0.0
          %1076 = vmatprep.subr.mxu0 0.0
          %1077 = vmatpush1.msra.mxu0 0.0
          %1078 = vmatprep.subr.mxu0 0.0
          %1079 = vmatpush1.msra.mxu0 0.0
          %1080 = vmatprep.subr.mxu0 0.0
          %1081 = vmatpush1.msra.mxu0 0.0
          %1082 = vmatprep.subr.mxu0 0.0
          %1083 = vmatpush1.msra.mxu0 0.0
          %1084 = vmatprep.subr.mxu0 0.0
          %1085 = vmatpush1.msra.mxu0 0.0
          %1086 = vmatprep.subr.mxu0 0.0
          %1087 = vmatpush1.msra.mxu0 0.0
          %1088 = vmatprep.subr.mxu0 0.0
          %1089 = vmatpush1.msra.mxu0 0.0
          %1090 = vmatprep.subr.mxu0 0.0
          %1091 = vmatpush1.msra.mxu0 0.0
          %1092 = vmatprep.subr.mxu0 0.0
          %1093 = vmatpush1.msra.mxu0 0.0
          %1094 = vmatprep.subr.mxu0 0.0
          %1095 = vmatpush1.msra.mxu0 0.0
          %1096 = vmatprep.subr.mxu0 0.0
          %1097 = vmatpush1.msra.mxu0 0.0
          %1098 = vmatprep.subr.mxu0 0.0
          %1099 = vmatpush1.msra.mxu0 0.0
          %1100 = vmatprep.subr.mxu0 0.0
          %1101 = vmatpush1.msra.mxu0 0.0
          %1102 = vmatprep.subr.mxu0 0.0
          %1103 = vmatpush1.msra.mxu0 0.0
          %1104 = vmatprep.subr.mxu0 0.0
          %1105 = vmatpush1.msra.mxu0 0.0
          %1106 = vmatprep.subr.mxu0 0.0
          %1107 = vmatpush1.msra.mxu0 0.0
          %1108 = vmatprep.subr.mxu0 0.0
          %1109 = vmatpush1.msra.mxu0 0.0
          %1110 = vmatprep.subr.mxu0 0.0
          %1111 = vmatpush1.msra.mxu0 0.0
          %1112 = vmatprep.subr.mxu0 0.0
          %1113 = vmatpush1.msra.mxu0 0.0
          %1114 = vmatprep.subr.mxu0 0.0
          %1115 = vmatpush1.msra.mxu0 0.0
          %1116 = vmatprep.subr.mxu0 0.0
          %1117 = vmatpush1.msra.mxu0 0.0
          %1118 = vmatprep.subr.mxu0 0.0
          %1119 = vmatpush1.msra.mxu0 0.0
          %1120 = vmatprep.mubr.f32.mxu0 0.0
          %1121 = vmatmul.mubr.f32.gmra.mrb[0].mxu0 %v1054
          %v1122 = vpop.f32.mrb[0].mxu0
          %v1123 = vadd.f32 0.0, %v1122
          %v1124 = vpop.f32.mrb[0].mxu0
          %1125 = vdwg.mxu0
          %1127 = vrot.lane.b32.xlu0 %v1123, 16
          %v1128 = vpop.permute.xlu0 %1127
          %vm1130 = vcmask 195712
          %1131 = vst.msk [vmem:[#allocation4] sm:$0xff] %vm1130, %v1128
          %1132 = vrot.lane.b32.xlu0 %v618, 104
          %v1133 = vpop.permute.xlu0 %1132
          %1134 = vrot.lane.b32.xlu0 %v618, 72
          %v1135 = vpop.permute.xlu0 %1134
          %v1136 = vsel %vm624, %v1133, 0
          %v1138 = vsel %vm624, %v1135, 0
          %1140 = vmatprep.subr.mxu0 0.0
          %1141 = vmatpush1.xpose.msra.mxu0 %v1138
          %1142 = vmatprep.subr.mxu0 0.0
          %1143 = vmatpush1.xpose.msra.mxu0 0.0
          %1144 = vmatprep.subr.mxu0 0.0
          %1145 = vmatpush1.xpose.msra.mxu0 0.0
          %1146 = vmatprep.subr.mxu0 0.0
          %1147 = vmatpush1.xpose.msra.mxu0 0.0
          %1148 = vmatprep.subr.mxu0 0.0
          %1149 = vmatpush1.xpose.msra.mxu0 0.0
          %1150 = vmatprep.subr.mxu0 0.0
          %1151 = vmatpush1.xpose.msra.mxu0 0.0
          %1152 = vmatprep.subr.mxu0 0.0
          %1153 = vmatpush1.xpose.msra.mxu0 0.0
          %1154 = vmatprep.subr.mxu0 0.0
          %1155 = vmatpush1.xpose.msra.mxu0 0.0
          %1156 = vmatprep.subr.mxu0 0.0
          %1157 = vmatpush1.xpose.msra.mxu0 0.0
          %1158 = vmatprep.subr.mxu0 0.0
          %1159 = vmatpush1.xpose.msra.mxu0 0.0
          %1160 = vmatprep.subr.mxu0 0.0
          %1161 = vmatpush1.xpose.msra.mxu0 0.0
          %1162 = vmatprep.subr.mxu0 0.0
          %1163 = vmatpush1.xpose.msra.mxu0 0.0
          %1164 = vmatprep.subr.mxu0 0.0
          %1165 = vmatpush1.xpose.msra.mxu0 0.0
          %1166 = vmatprep.subr.mxu0 0.0
          %1167 = vmatpush1.xpose.msra.mxu0 0.0
          %1168 = vmatprep.subr.mxu0 0.0
          %1169 = vmatpush1.xpose.msra.mxu0 0.0
          %1170 = vmatprep.subr.mxu0 0.0
          %1171 = vmatpush1.xpose.msra.mxu0 0.0
          %1172 = vmatprep.subr.mxu0 0.0
          %1173 = vmatpush1.xpose.msra.mxu0 0.0
          %1174 = vmatprep.subr.mxu0 0.0
          %1175 = vmatpush1.xpose.msra.mxu0 0.0
          %1176 = vmatprep.subr.mxu0 0.0
          %1177 = vmatpush1.xpose.msra.mxu0 0.0
          %1178 = vmatprep.subr.mxu0 0.0
          %1179 = vmatpush1.xpose.msra.mxu0 0.0
          %1180 = vmatprep.subr.mxu0 0.0
          %1181 = vmatpush1.xpose.msra.mxu0 0.0
          %1182 = vmatprep.subr.mxu0 0.0
          %1183 = vmatpush1.xpose.msra.mxu0 0.0
          %1184 = vmatprep.subr.mxu0 0.0
          %1185 = vmatpush1.xpose.msra.mxu0 0.0
          %1186 = vmatprep.subr.mxu0 0.0
          %1187 = vmatpush1.xpose.msra.mxu0 0.0
          %1188 = vmatprep.subr.mxu0 0.0
          %1189 = vmatpush1.xpose.msra.mxu0 0.0
          %1190 = vmatprep.subr.mxu0 0.0
          %1191 = vmatpush1.xpose.msra.mxu0 0.0
          %1192 = vmatprep.subr.mxu0 0.0
          %1193 = vmatpush1.xpose.msra.mxu0 0.0
          %1194 = vmatprep.subr.mxu0 0.0
          %1195 = vmatpush1.xpose.msra.mxu0 0.0
          %1196 = vmatprep.subr.mxu0 0.0
          %1197 = vmatpush1.xpose.msra.mxu0 0.0
          %1198 = vmatprep.subr.mxu0 0.0
          %1199 = vmatpush1.xpose.msra.mxu0 0.0
          %1200 = vmatprep.subr.mxu0 0.0
          %1201 = vmatpush1.xpose.msra.mxu0 0.0
          %1202 = vmatprep.subr.mxu0 0.0
          %1203 = vmatpush1.xpose.msra.mxu0 0.0
          %1204 = vmatprep.mubr.f32.mxu0 0.0
          %1205 = vmatmul.mubr.f32.gmra.mrb[0].mxu0 %v1136
          %v1206 = vpop.f32.mrb[0].mxu0
          %v1207 = vadd.f32 0.0, %v1206
          %v1208 = vpop.f32.mrb[0].mxu0
          %1209 = vdwg.mxu0
          %v1210 = vmul.f32 %v1207, 0.35355338
          %v1211 = vsel %vm624, %v1210, -inf
          %1212 = vmax.xlane.f32.xlu0 %v1211
          %v1213 = vpop.xlane.xlu0 %1212
          %v1214 = vsub.f32 %v1210, %v1213
          %v1215 = vmul.f32 %v1214, 1.442695
          %v1216 = vpow.pop %v1215
          %v1217 = vsel %vm624, %v1216, 0.0
          %1218 = vadd.xlane.f32.xlu0 %v1217
          %v1219 = vpop.xlane.xlu0 %1218
          %v1220 = vrcp.pop %v1219
          %v1221 = vmul.f32 %v1216, %v1220
          %1222 = vrot.lane.b32.xlu0 %v618, 40
          %v1223 = vpop.permute.xlu0 %1222
          %v1226 = vsel %vm624, %v1221, 0
          %1228 = vmatprep.subr.mxu0 0.0
          %1229 = vmatpush1.msra.mxu0 %v1223
          %1230 = vmatprep.subr.mxu0 0.0
          %1231 = vmatpush1.msra.mxu0 0.0
          %1232 = vmatprep.subr.mxu0 0.0
          %1233 = vmatpush1.msra.mxu0 0.0
          %1234 = vmatprep.subr.mxu0 0.0
          %1235 = vmatpush1.msra.mxu0 0.0
          %1236 = vmatprep.subr.mxu0 0.0
          %1237 = vmatpush1.msra.mxu0 0.0
          %1238 = vmatprep.subr.mxu0 0.0
          %1239 = vmatpush1.msra.mxu0 0.0
          %1240 = vmatprep.subr.mxu0 0.0
          %1241 = vmatpush1.msra.mxu0 0.0
          %1242 = vmatprep.subr.mxu0 0.0
          %1243 = vmatpush1.msra.mxu0 0.0
          %1244 = vmatprep.subr.mxu0 0.0
          %1245 = vmatpush1.msra.mxu0 0.0
          %1246 = vmatprep.subr.mxu0 0.0
          %1247 = vmatpush1.msra.mxu0 0.0
          %1248 = vmatprep.subr.mxu0 0.0
          %1249 = vmatpush1.msra.mxu0 0.0
          %1250 = vmatprep.subr.mxu0 0.0
          %1251 = vmatpush1.msra.mxu0 0.0
          %1252 = vmatprep.subr.mxu0 0.0
          %1253 = vmatpush1.msra.mxu0 0.0
          %1254 = vmatprep.subr.mxu0 0.0
          %1255 = vmatpush1.msra.mxu0 0.0
          %1256 = vmatprep.subr.mxu0 0.0
          %1257 = vmatpush1.msra.mxu0 0.0
          %1258 = vmatprep.subr.mxu0 0.0
          %1259 = vmatpush1.msra.mxu0 0.0
          %1260 = vmatprep.subr.mxu0 0.0
          %1261 = vmatpush1.msra.mxu0 0.0
          %1262 = vmatprep.subr.mxu0 0.0
          %1263 = vmatpush1.msra.mxu0 0.0
          %1264 = vmatprep.subr.mxu0 0.0
          %1265 = vmatpush1.msra.mxu0 0.0
          %1266 = vmatprep.subr.mxu0 0.0
          %1267 = vmatpush1.msra.mxu0 0.0
          %1268 = vmatprep.subr.mxu0 0.0
          %1269 = vmatpush1.msra.mxu0 0.0
          %1270 = vmatprep.subr.mxu0 0.0
          %1271 = vmatpush1.msra.mxu0 0.0
          %1272 = vmatprep.subr.mxu0 0.0
          %1273 = vmatpush1.msra.mxu0 0.0
          %1274 = vmatprep.subr.mxu0 0.0
          %1275 = vmatpush1.msra.mxu0 0.0
          %1276 = vmatprep.subr.mxu0 0.0
          %1277 = vmatpush1.msra.mxu0 0.0
          %1278 = vmatprep.subr.mxu0 0.0
          %1279 = vmatpush1.msra.mxu0 0.0
          %1280 = vmatprep.subr.mxu0 0.0
          %1281 = vmatpush1.msra.mxu0 0.0
          %1282 = vmatprep.subr.mxu0 0.0
          %1283 = vmatpush1.msra.mxu0 0.0
          %1284 = vmatprep.subr.mxu0 0.0
          %1285 = vmatpush1.msra.mxu0 0.0
          %1286 = vmatprep.subr.mxu0 0.0
          %1287 = vmatpush1.msra.mxu0 0.0
          %1288 = vmatprep.subr.mxu0 0.0
          %1289 = vmatpush1.msra.mxu0 0.0
          %1290 = vmatprep.subr.mxu0 0.0
          %1291 = vmatpush1.msra.mxu0 0.0
          %1292 = vmatprep.mubr.f32.mxu0 0.0
          %1293 = vmatmul.mubr.f32.gmra.mrb[0].mxu0 %v1226
          %v1294 = vpop.f32.mrb[0].mxu0
          %v1295 = vadd.f32 0.0, %v1294
          %v1296 = vpop.f32.mrb[0].mxu0
          %1297 = vdwg.mxu0
          %1299 = vrot.lane.b32.xlu0 %v1295, 24
          %v1300 = vpop.permute.xlu0 %1299
          %vm1302 = vcmask 261312
          %1303 = vst.msk [vmem:[#allocation4] sm:$0xff] %vm1302, %v1300
          %v1304 = vld [vmem:[#allocation4] sm:$0xff]
          %v1305 = vld [vmem:[%s5] sm:$0xff]
          %v1306 = vld [vmem:[%s5 + $0x8] sm:$0xff]
          %v1307 = vld [vmem:[%s5 + $0x10] sm:$0xff]
          %v1308 = vld [vmem:[%s5 + $0x18] sm:$0xff]
          %v1309 = vld [vmem:[%s6] sm:$0x1]
          %v1311 = vlaneseq
          %v1312 = vshrl.u32 %v1311, 7
          %v1313 = vsub.s32 0, %v1312
          %v1314 = vrot.slane %v1309, %v1313
          %v1317 = vsel %vm508, %v1304, 0
          %1319 = vmatprep.subr.mxu0 0.0
          %1320 = vmatpush1.msra.mxu0 %v1305
          %1321 = vmatprep.subr.mxu0 0.0
          %1322 = vmatpush1.msra.mxu0 %v1306
          %1323 = vmatprep.subr.mxu0 0.0
          %1324 = vmatpush1.msra.mxu0 %v1307
          %1325 = vmatprep.subr.mxu0 0.0
          %1326 = vmatpush1.msra.mxu0 %v1308
          %1327 = vmatprep.subr.mxu0 0.0
          %1328 = vmatpush1.msra.mxu0 0.0
          %1329 = vmatprep.subr.mxu0 0.0
          %1330 = vmatpush1.msra.mxu0 0.0
          %1331 = vmatprep.subr.mxu0 0.0
          %1332 = vmatpush1.msra.mxu0 0.0
          %1333 = vmatprep.subr.mxu0 0.0
          %1334 = vmatpush1.msra.mxu0 0.0
          %1335 = vmatprep.subr.mxu0 0.0
          %1336 = vmatpush1.msra.mxu0 0.0
          %1337 = vmatprep.subr.mxu0 0.0
          %1338 = vmatpush1.msra.mxu0 0.0
          %1339 = vmatprep.subr.mxu0 0.0
          %1340 = vmatpush1.msra.mxu0 0.0
          %1341 = vmatprep.subr.mxu0 0.0
          %1342 = vmatpush1.msra.mxu0 0.0
          %1343 = vmatprep.subr.mxu0 0.0
          %1344 = vmatpush1.msra.mxu0 0.0
          %1345 = vmatprep.subr.mxu0 0.0
          %1346 = vmatpush1.msra.mxu0 0.0
          %1347 = vmatprep.subr.mxu0 0.0
          %1348 = vmatpush1.msra.mxu0 0.0
          %1349 = vmatprep.subr.mxu0 0.0
          %1350 = vmatpush1.msra.mxu0 0.0
          %1351 = vmatprep.subr.mxu0 0.0
          %1352 = vmatpush1.msra.mxu0 0.0
          %1353 = vmatprep.subr.mxu0 0.0
          %1354 = vmatpush1.msra.mxu0 0.0
          %1355 = vmatprep.subr.mxu0 0.0
          %1356 = vmatpush1.msra.mxu0 0.0
          %1357 = vmatprep.subr.mxu0 0.0
          %1358 = vmatpush1.msra.mxu0 0.0
          %1359 = vmatprep.subr.mxu0 0.0
          %1360 = vmatpush1.msra.mxu0 0.0
          %1361 = vmatprep.subr.mxu0 0.0
          %1362 = vmatpush1.msra.mxu0 0.0
          %1363 = vmatprep.subr.mxu0 0.0
          %1364 = vmatpush1.msra.mxu0 0.0
          %1365 = vmatprep.subr.mxu0 0.0
          %1366 = vmatpush1.msra.mxu0 0.0
          %1367 = vmatprep.subr.mxu0 0.0
          %1368 = vmatpush1.msra.mxu0 0.0
          %1369 = vmatprep.subr.mxu0 0.0
          %1370 = vmatpush1.msra.mxu0 0.0
          %1371 = vmatprep.subr.mxu0 0.0
          %1372 = vmatpush1.msra.mxu0 0.0
          %1373 = vmatprep.subr.mxu0 0.0
          %1374 = vmatpush1.msra.mxu0 0.0
          %1375 = vmatprep.subr.mxu0 0.0
          %1376 = vmatpush1.msra.mxu0 0.0
          %1377 = vmatprep.subr.mxu0 0.0
          %1378 = vmatpush1.msra.mxu0 0.0
          %1379 = vmatprep.subr.mxu0 0.0
          %1380 = vmatpush1.msra.mxu0 0.0
          %1381 = vmatprep.subr.mxu0 0.0
          %1382 = vmatpush1.msra.mxu0 0.0
          %1383 = vmatprep.mubr.f32.mxu0 0.0
          %1384 = vmatmul.mubr.f32.gmra.mrb[0].mxu0 %v1317
          %v1385 = vpop.f32.mrb[0].mxu0
          %v1386 = vadd.f32 %v1314, %v1385
          %v1387 = vpop.f32.mrb[0].mxu0
          %1388 = vdwg.mxu0
          %v1389 = vadd.f32 %v505, %v1386
          %1390 = vst.msk [vmem:[#allocation2] sm:$0xff] %vm508, %v1389
          %v1391 = vld [vmem:[%s7] sm:$0x1]
          %v1392 = vld [vmem:[%s8] sm:$0x1]
          %v1393 = vsel %vm508, %v1389, 0.0
          %1394 = vadd.xlane.f32.xlu0 %v1393
          %v1395 = vpop.xlane.xlu0 %1394
          %v1396 = vmul.f32 %v1395, %v512
          %v1397 = vsub.f32 %v1389, %v1396
          %v1398 = vmul.f32 %v1397, %v1397
          %v1399 = vsel %vm508, %v1398, 0.0
          %1400 = vadd.xlane.f32.xlu0 %v1399
          %v1401 = vpop.xlane.xlu0 %1400
          %v1402 = vmul.f32 %v1401, %v512
          %v1403 = vadd.f32 %v1402, 1e-12
          %v1404 = vrsqrt.pop %v1403
          %v1405 = vmul.f32 %v1397, %v1404
          %v1407 = vlaneseq
          %v1408 = vshrl.u32 %v1407, 7
          %v1409 = vsub.s32 0, %v1408
          %v1410 = vrot.slane %v1391, %v1409
          %v1412 = vmul.f32 %v1405, %v1410
          %v1414 = vlaneseq
          %v1415 = vshrl.u32 %v1414, 7
          %v1416 = vsub.s32 0, %v1415
          %v1417 = vrot.slane %v1392, %v1416
          %v1419 = vadd.f32 %v1412, %v1417
          %1420 = vst.msk [vmem:[#allocation3] sm:$0xff] %vm508, %v1419
          %1421 = vst.msk [vmem:[#allocation4] sm:$0xff] %vm508, 0.0
        $region76: #{tpu_custom_call.1} parent=71 // pred_fallthru
          _
        %v1422 = vld [vmem:[#allocation3] sm:$0xff]
        %v1423 = vld [vmem:[%s491] sm:$0xff]
        %v1424 = vld [vmem:[%s491 + $0x8] sm:$0xff]
        %v1425 = vld [vmem:[%s491 + $0x10] sm:$0xff]
        %v1426 = vld [vmem:[%s491 + $0x18] sm:$0xff]
        %v1427 = vld [vmem:[%s494] sm:$0x1]
        %v1429 = vlaneseq
        %v1430 = vshrl.u32 %v1429, 7
        %v1431 = vsub.s32 0, %v1430
        %v1432 = vrot.slane %v1427, %v1431
        %vm1434 = vcmask 261120
        %v1436 = vsel %vm1434, %v1422, 0
        %1438 = vmatprep.subr.mxu0 0.0
        %1439 = vmatpush1.msra.mxu0 %v1423
        %1440 = vmatprep.subr.mxu0 0.0
        %1441 = vmatpush1.msra.mxu0 %v1424
        %1442 = vmatprep.subr.mxu0 0.0
        %1443 = vmatpush1.msra.mxu0 %v1425
        %1444 = vmatprep.subr.mxu0 0.0
        %1445 = vmatpush1.msra.mxu0 %v1426
        %1446 = vmatprep.subr.mxu0 0.0
        %1447 = vmatpush1.msra.mxu0 0.0
        %1448 = vmatprep.subr.mxu0 0.0
        %1449 = vmatpush1.msra.mxu0 0.0
        %1450 = vmatprep.subr.mxu0 0.0
        %1451 = vmatpush1.msra.mxu0 0.0
        %1452 = vmatprep.subr.mxu0 0.0
        %1453 = vmatpush1.msra.mxu0 0.0
        %1454 = vmatprep.subr.mxu0 0.0
        %1455 = vmatpush1.msra.mxu0 0.0
        %1456 = vmatprep.subr.mxu0 0.0
        %1457 = vmatpush1.msra.mxu0 0.0
        %1458 = vmatprep.subr.mxu0 0.0
        %1459 = vmatpush1.msra.mxu0 0.0
        %1460 = vmatprep.subr.mxu0 0.0
        %1461 = vmatpush1.msra.mxu0 0.0
        %1462 = vmatprep.subr.mxu0 0.0
        %1463 = vmatpush1.msra.mxu0 0.0
        %1464 = vmatprep.subr.mxu0 0.0
        %1465 = vmatpush1.msra.mxu0 0.0
        %1466 = vmatprep.subr.mxu0 0.0
        %1467 = vmatpush1.msra.mxu0 0.0
        %1468 = vmatprep.subr.mxu0 0.0
        %1469 = vmatpush1.msra.mxu0 0.0
        %1470 = vmatprep.subr.mxu0 0.0
        %1471 = vmatpush1.msra.mxu0 0.0
        %1472 = vmatprep.subr.mxu0 0.0
        %1473 = vmatpush1.msra.mxu0 0.0
        %1474 = vmatprep.subr.mxu0 0.0
        %1475 = vmatpush1.msra.mxu0 0.0
        %1476 = vmatprep.subr.mxu0 0.0
        %1477 = vmatpush1.msra.mxu0 0.0
        %1478 = vmatprep.subr.mxu0 0.0
        %1479 = vmatpush1.msra.mxu0 0.0
        %1480 = vmatprep.subr.mxu0 0.0
        %1481 = vmatpush1.msra.mxu0 0.0
        %1482 = vmatprep.subr.mxu0 0.0
        %1483 = vmatpush1.msra.mxu0 0.0
        %1484 = vmatprep.subr.mxu0 0.0
        %1485 = vmatpush1.msra.mxu0 0.0
        %1486 = vmatprep.subr.mxu0 0.0
        %1487 = vmatpush1.msra.mxu0 0.0
        %1488 = vmatprep.subr.mxu0 0.0
        %1489 = vmatpush1.msra.mxu0 0.0
        %1490 = vmatprep.subr.mxu0 0.0
        %1491 = vmatpush1.msra.mxu0 0.0
        %1492 = vmatprep.subr.mxu0 0.0
        %1493 = vmatpush1.msra.mxu0 0.0
        %1494 = vmatprep.subr.mxu0 0.0
        %1495 = vmatpush1.msra.mxu0 0.0
        %1496 = vmatprep.subr.mxu0 0.0
        %1497 = vmatpush1.msra.mxu0 0.0
        %1498 = vmatprep.subr.mxu0 0.0
        %1499 = vmatpush1.msra.mxu0 0.0
        %1500 = vmatprep.subr.mxu0 0.0
        %1501 = vmatpush1.msra.mxu0 0.0
        %1502 = vmatprep.mubr.f32.mxu0 0.0
        %1503 = vmatmul.mubr.f32.gmra.mrb[0].mxu0 %v1436
        %v1504 = vpop.f32.mrb[0].mxu0
        %v1505 = vadd.f32 %v1432, %v1504
        %v1506 = vpop.f32.mrb[0].mxu0
        %1507 = vdwg.mxu0
        %v1508 = vmul.f32 %v1505, 1.702
        %v1509 = vxor.u32 %v1508, 2147483648
        %v1510 = vmul.f32 %v1509, 1.442695
        %v1511 = vpow.pop %v1510
        %v1512 = vadd.f32 %v1511, 1.0
        %v1513 = vrcp.pop %v1512
        %v1514 = vmul.f32 1.0, %v1513
        %v1515 = vmul.f32 %v1505, %v1514
        %v1516 = vld [vmem:[#allocation4] sm:$0xff]
        %v1517 = vld [vmem:[%s499] sm:$0xff]
        %v1518 = vld [vmem:[%s499 + $0x8] sm:$0xff]
        %v1519 = vld [vmem:[%s499 + $0x10] sm:$0xff]
        %v1520 = vld [vmem:[%s499 + $0x18] sm:$0xff]
        %v1521 = vld [vmem:[%s499 + $0x20] sm:$0xff]
        %v1522 = vld [vmem:[%s499 + $0x28] sm:$0xff]
        %v1523 = vld [vmem:[%s499 + $0x30] sm:$0xff]
        %v1524 = vld [vmem:[%s499 + $0x38] sm:$0xff]
        %v1525 = vld [vmem:[%s499 + $0x40] sm:$0xff]
        %v1526 = vld [vmem:[%s499 + $0x48] sm:$0xff]
        %v1527 = vld [vmem:[%s499 + $0x50] sm:$0xff]
        %v1528 = vld [vmem:[%s499 + $0x58] sm:$0xff]
        %v1529 = vld [vmem:[%s499 + $0x60] sm:$0xff]
        %v1530 = vld [vmem:[%s499 + $0x68] sm:$0xff]
        %v1531 = vld [vmem:[%s499 + $0x70] sm:$0xff]
        %v1532 = vld [vmem:[%s499 + $0x78] sm:$0xff]
        %1533 = vmatprep.subr.mxu0 0.0
        %1534 = vmatpush1.msra.mxu0 %v1517
        %1535 = vmatprep.subr.mxu0 0.0
        %1536 = vmatpush1.msra.mxu0 %v1518
        %1537 = vmatprep.subr.mxu0 0.0
        %1538 = vmatpush1.msra.mxu0 %v1519
        %1539 = vmatprep.subr.mxu0 0.0
        %1540 = vmatpush1.msra.mxu0 %v1520
        %1541 = vmatprep.subr.mxu0 0.0
        %1542 = vmatpush1.msra.mxu0 %v1521
        %1543 = vmatprep.subr.mxu0 0.0
        %1544 = vmatpush1.msra.mxu0 %v1522
        %1545 = vmatprep.subr.mxu0 0.0
        %1546 = vmatpush1.msra.mxu0 %v1523
        %1547 = vmatprep.subr.mxu0 0.0
        %1548 = vmatpush1.msra.mxu0 %v1524
        %1549 = vmatprep.subr.mxu0 0.0
        %1550 = vmatpush1.msra.mxu0 %v1525
        %1551 = vmatprep.subr.mxu0 0.0
        %1552 = vmatpush1.msra.mxu0 %v1526
        %1553 = vmatprep.subr.mxu0 0.0
        %1554 = vmatpush1.msra.mxu0 %v1527
        %1555 = vmatprep.subr.mxu0 0.0
        %1556 = vmatpush1.msra.mxu0 %v1528
        %1557 = vmatprep.subr.mxu0 0.0
        %1558 = vmatpush1.msra.mxu0 %v1529
        %1559 = vmatprep.subr.mxu0 0.0
        %1560 = vmatpush1.msra.mxu0 %v1530
        %1561 = vmatprep.subr.mxu0 0.0
        %1562 = vmatpush1.msra.mxu0 %v1531
        %1563 = vmatprep.subr.mxu0 0.0
        %1564 = vmatpush1.msra.mxu0 %v1532
        %1565 = vmatprep.subr.mxu0 0.0
        %1566 = vmatpush1.msra.mxu0 0.0
        %1567 = vmatprep.subr.mxu0 0.0
        %1568 = vmatpush1.msra.mxu0 0.0
        %1569 = vmatprep.subr.mxu0 0.0
        %1570 = vmatpush1.msra.mxu0 0.0
        %1571 = vmatprep.subr.mxu0 0.0
        %1572 = vmatpush1.msra.mxu0 0.0
        %1573 = vmatprep.subr.mxu0 0.0
        %1574 = vmatpush1.msra.mxu0 0.0
        %1575 = vmatprep.subr.mxu0 0.0
        %1576 = vmatpush1.msra.mxu0 0.0
        %1577 = vmatprep.subr.mxu0 0.0
        %1578 = vmatpush1.msra.mxu0 0.0
        %1579 = vmatprep.subr.mxu0 0.0
        %1580 = vmatpush1.msra.mxu0 0.0
        %1581 = vmatprep.subr.mxu0 0.0
        %1582 = vmatpush1.msra.mxu0 0.0
        %1583 = vmatprep.subr.mxu0 0.0
        %1584 = vmatpush1.msra.mxu0 0.0
        %1585 = vmatprep.subr.mxu0 0.0
        %1586 = vmatpush1.msra.mxu0 0.0
        %1587 = vmatprep.subr.mxu0 0.0
        %1588 = vmatpush1.msra.mxu0 0.0
        %1589 = vmatprep.subr.mxu0 0.0
        %1590 = vmatpush1.msra.mxu0 0.0
        %1591 = vmatprep.subr.mxu0 0.0
        %1592 = vmatpush1.msra.mxu0 0.0
        %1593 = vmatprep.subr.mxu0 0.0
        %1594 = vmatpush1.msra.mxu0 0.0
        %1595 = vmatprep.subr.mxu0 0.0
        %1596 = vmatpush1.msra.mxu0 0.0
        %1597 = vmatprep.mubr.f32.mxu0 0.0
        %1598 = vmatmul.mubr.f32.gmra.mrb[0].mxu0 %v1515
        %v1599 = vpop.f32.mrb[0].mxu0
        %v1600 = vadd.f32 0.0, %v1599
        %v1601 = vpop.f32.mrb[0].mxu0
        %1602 = vdwg.mxu0
        %v1603 = vadd.f32 %v1516, %v1600
        %1604 = vst.msk [vmem:[#allocation4] sm:$0xff] %vm1434, %v1603
        // Predicated region
        $region77: #{tpu_custom_call.1} parent=71 // pred_check
          %p1605 = pneg %p501
        $region78: #{tpu_custom_call.1} parent=71 // pred_check_branch
          %1607 = sbr.rel (%p1605) target = $region80
        $region79: #{tpu_custom_call.1} parent=71 // pred_region
          %v1608 = vld [vmem:[#allocation2] sm:$0xff]
          %v1609 = vld [vmem:[#allocation4] sm:$0xff]
          %v1610 = vadd.f32 %v1608, %v1609
          %v1611 = vld [vmem:[%s9] sm:$0x1]
          %v1613 = vlaneseq
          %v1614 = vshrl.u32 %v1613, 7
          %v1615 = vsub.s32 0, %v1614
          %v1616 = vrot.slane %v1611, %v1615
          %v1618 = vadd.f32 %v1610, %v1616
          %1619 = vst.msk [vmem:[%s483] sm:$0xff] %vm1434, %v1618
        $region80: #{tpu_custom_call.1} parent=71 // pred_fallthru
          _
        %s1620 = sand.u32 %s340, 1
        %s1621 = scalar_lea.sflag [#allocation6], %s1620
        %s1622 = sand.u32 %s340, 1
        %s1623 = smul.addr %s1622, 8
        %s1624 = scalar_lea.vmem [#allocation5], %s1623
        // Predicated region
        $region81: #{tpu_custom_call.1} parent=71 // pred_check
          %p1625 = pneg %p350
        $region82: #{tpu_custom_call.1} parent=71 // pred_check_branch
          %1627 = sbr.rel (%p1625) target = $region84
        $region83: #{tpu_custom_call.1} parent=71 // pred_region
          %s1629 = ssub.s32 128, 128
          %1630 = vsyncadd %s1621, %s1629
          %s1631 = smul.addr %s31, 128
          %s1632 = scalar_lea.hbm %s13, %s1631
          %s1634 = sshll.u32 %s1624, 4
          %s1635 = int_to_ptr.vmem [resolvable:$true] %s1634
          %1637 = dma.vmem_to_hbm [thread:$0]  %s1635, 128, %s1632, %s1621
        $region84: #{tpu_custom_call.1} parent=71 // pred_fallthru
          _
      $region72: #{tpu_custom_call.1} parent=5 // pred_fallthru
        _
      %p1638 = scmp.le.s32.totalorder 2, %s22
      // Predicated region
      $region85: #{tpu_custom_call.1} parent=5 // pred_check
        %p1639 = pneg %p1638
      $region86: #{tpu_custom_call.1} parent=5 // pred_check_branch
        %1641 = sbr.rel (%p1639) target = $region88
      $region87: #{tpu_custom_call.1} parent=5 // pred_region
        %s1642 = ssub.s32 %s22, 2
        // Predicated region
        $region89: #{tpu_custom_call.1} parent=87 // pred_check
          %p1643 = pneg %p356
        $region90: #{tpu_custom_call.1} parent=87 // pred_check_branch
          %1645 = sbr.rel (%p1643) target = $region92
        $region91: #{tpu_custom_call.1} parent=87 // pred_region
          %s1646 = sand.u32 %s341, 1
          %s1647 = scalar_lea.sflag [#allocation6], %s1646
          %s1648 = sand.u32 %s341, 1
          %s1649 = smul.addr %s1648, 8
          %s1650 = scalar_lea.vmem [#allocation5], %s1649
          %1651 = dma.done %s1647, 128
        $region92: #{tpu_custom_call.1} parent=87 // pred_fallthru
          _
      $region88: #{tpu_custom_call.1} parent=5 // pred_fallthru
        _
    $region6: #{tpu_custom_call.1} parent=1 // loop_footer
      %s26 = sadd.s32 1, %s22
    $region7: #{tpu_custom_call.1} parent=1 // loop_footer_branch
      %21 = sbr.rel target = $region3
    $region8: #{tpu_custom_call.1} parent=1 // loop_exit
      _
    %1652 = vsyncpa [#allocation6], 1
    %s1653 = scalar_lea.sflag [#allocation6], 1
    %1654 = vsyncpa %s1653, 1

// kernel: tpu_custom_call.1
$region0: #{tpu_custom_call.1}
  #allocation0 [shape = 'u32[]', space=smem, size = 0x4, offset = 0x4, fixed_abs, tag = 'smem constant byte address 0x4 - core index']
  #allocation1 [shape = 'u32[144,128]{1,0:T(1,128)}', space=vmem, size = 0x12000, scoped, tag = 'internal scratch']
  #allocation2 [shape = 'f32[8,32]{1,0:T(8,128)}', space=vmem, size = 0x1000, scoped, tag = 'scratch operand']
  #allocation3 [shape = 'f32[8,32]{1,0:T(8,128)}', space=vmem, size = 0x1000, scoped, tag = 'scratch operand']
  #allocation4 [shape = 'f32[8,32]{1,0:T(8,128)}', space=vmem, size = 0x1000, scoped, tag = 'scratch operand']
  %s0 = inlined_call_operand.vmem [shape: f32[2,8,32], index: 0, kind: input, shape index: {}]
  %s1 = inlined_call_operand.vmem [shape: f32[1,32], index: 1, kind: input, shape index: {}]
  %s2 = inlined_call_operand.vmem [shape: f32[1,32], index: 2, kind: input, shape index: {}]
  %s3 = inlined_call_operand.vmem [shape: f32[32,96], index: 3, kind: input, shape index: {}]
  %s4 = inlined_call_operand.vmem [shape: f32[1,96], index: 4, kind: input, shape index: {}]
  %s5 = inlined_call_operand.vmem [shape: f32[32,32], index: 5, kind: input, shape index: {}]
  %s6 = inlined_call_operand.vmem [shape: f32[1,32], index: 6, kind: input, shape index: {}]
  %s7 = inlined_call_operand.vmem [shape: f32[1,32], index: 7, kind: input, shape index: {}]
  %s8 = inlined_call_operand.vmem [shape: f32[1,32], index: 8, kind: input, shape index: {}]
  %s9 = inlined_call_operand.vmem [shape: f32[1,32], index: 9, kind: input, shape index: {}]
  %s10 = inlined_call_operand.vmem [shape: f32[32,128], index: 10, kind: input, shape index: {}]
  %s11 = inlined_call_operand.vmem [shape: f32[1,128], index: 11, kind: input, shape index: {}]
  %s12 = inlined_call_operand.vmem [shape: f32[128,32], index: 12, kind: input, shape index: {}]
  %s13 = inlined_call_operand.hbm [shape: f32[2,8,32], index: 13, kind: output, shape index: {}]
  %s14 = sld [smem:[#allocation0]]
  $region93: #{tpu_custom_call.1} parent=0
    _
  %s16 = ssub.s32 1, %s14
  %s17 = scalar_select 0, %s16, %s14
  $region1: #{tpu_custom_call.1} parent=0
    #allocation5 [shape = 'u8[8192]{0}', space=vmem, size = 0x2000, scoped, tag = 'output window, operand 0']
    #allocation6 [shape = 's32[2]{0}', space=sflag, size = 0x8, scoped, tag = 'scoped memory for tpu_custom_call.1']
    %18 = vsyncpa [#allocation6], 0
    %s19 = scalar_lea.sflag [#allocation6], 1
    %20 = vsyncpa %s19, 0
    loop: start=0, step=1, limit=4
    $region2: #{tpu_custom_call.1} parent=1 // loop_pre_header
      _
    $region3: #{tpu_custom_call.1} parent=1 // loop_header
      %s22 = sphi 0, %s26
      %p23 = scmp.ge.s32.totalorder %s22, 4
      %s29 = sphi 0, %s41
      %s30 = sphi 0, %s37
      %s31 = sphi 0, %s29
      %s32 = sphi 0, %s30
      %s33 = sphi 0, %s31
      %s34 = sphi 0, %s32
      %s44 = sphi 0, %s46
      %s47 = sphi 0, %s44
      %s48 = sphi 0, %s47
      %s64 = sphi 0, %s48
      %s68 = sphi 0, %s68
      %s70 = sphi 0, %s68
      %s71 = sphi 0, %s70
      %s85 = sphi 0, %s71
      %s89 = sphi 0, %s89
      %s91 = sphi 0, %s89
      %s92 = sphi 0, %s91
      %s106 = sphi 0, %s92
      %s110 = sphi 0, %s110
      %s112 = sphi 0, %s110
      %s113 = sphi 0, %s112
      %s127 = sphi 0, %s113
      %s131 = sphi 0, %s131
      %s133 = sphi 0, %s131
      %s134 = sphi 0, %s133
      %s148 = sphi 0, %s134
      %s152 = sphi 0, %s152
      %s154 = sphi 0, %s152
      %s155 = sphi 0, %s154
      %s169 = sphi 0, %s155
      %s173 = sphi 0, %s173
      %s175 = sphi 0, %s173
      %s176 = sphi 0, %s175
      %s190 = sphi 0, %s176
      %s194 = sphi 0, %s194
      %s196 = sphi 0, %s194
      %s197 = sphi 0, %s196
      %s211 = sphi 0, %s197
      %s215 = sphi 0, %s215
      %s217 = sphi 0, %s215
      %s218 = sphi 0, %s217
      %s232 = sphi 0, %s218
      %s236 = sphi 0, %s236
      %s238 = sphi 0, %s236
      %s239 = sphi 0, %s238
      %s253 = sphi 0, %s239
      %s259 = sphi 0, %s261
      %s262 = sphi 0, %s259
      %s263 = sphi 0, %s262
      %s279 = sphi 0, %s263
      %s285 = sphi 0, %s287
      %s288 = sphi 0, %s285
      %s289 = sphi 0, %s288
      %s305 = sphi 0, %s289
      %s311 = sphi 0, %s313
      %s314 = sphi 0, %s311
      %s315 = sphi 0, %s314
      %s331 = sphi 0, %s315
      %s337 = sphi 0, %s339
      %s340 = sphi 0, %s337
      %s341 = sphi 0, %s340
      %s357 = sphi 0, %s341
    $region4: #{tpu_custom_call.1} parent=1 // loop_header_branch
      %25 = sbr.rel (%p23) target = $region8
    $region5: #{tpu_custom_call.1} parent=1 // loop_body
      %s27 = ssub.s32 %s22, 1
      %s28 = ssub.s32 %s22, 2
      %s35 = sadd.s32 1, %s30
      %p36 = scmp.ge.s32.totalorder %s35, 1
      %s37 = scalar_select %p36, 0, %s35
      %s38 = sadd.s32 1, %s29
      %s39 = scalar_select %p36, %s38, %s29
      %p40 = scmp.ge.s32.totalorder %s39, 2
      %s41 = scalar_select %p40, 0, %s39
      %s42 = ssub.s32 %s29, %s41
      %p43 = scmp.eq.s32.totalorder %s42, 0
      %s45 = sadd.s32 %s44, 1
      %s46 = scalar_select %p43, %s44, %s45
      %p49 = pneg %p43
      %p50 = scmp.eq.s32.totalorder %s22, 1
      %p51 = por %p49, %p50
      %p52 = scmp.ne.s32.totalorder %s44, %s47
      %p53 = scmp.eq.s32.totalorder %s22, 0
      %p54 = por %p52, %p53
      %p55 = scmp.ne.s32.totalorder %s44, %s47
      %p56 = scmp.eq.s32.totalorder %s27, 1
      %p57 = por %p55, %p56
      %p58 = scmp.ne.s32.totalorder %s47, %s48
      %p59 = scmp.eq.s32.totalorder %s27, 0
      %p60 = por %p58, %p59
      %p61 = scmp.ne.s32.totalorder %s47, %s48
      %p62 = scmp.eq.s32.totalorder %s28, 1
      %p63 = por %p61, %p62
      %p65 = scmp.ne.s32.totalorder %s48, %s64
      %p66 = scmp.eq.s32.totalorder %s28, 0
      %p67 = por %p65, %p66
      %s69 = sadd.s32 %s68, 1
      %p72 = scmp.eq.s32.totalorder %s22, 1
      %p73 = scmp.ne.s32.totalorder %s68, %s70
      %p74 = scmp.eq.s32.totalorder %s22, 0
      %p75 = por %p73, %p74
      %p76 = scmp.ne.s32.totalorder %s68, %s70
      %p77 = scmp.eq.s32.totalorder %s27, 1
      %p78 = por %p76, %p77
      %p79 = scmp.ne.s32.totalorder %s70, %s71
      %p80 = scmp.eq.s32.totalorder %s27, 0
      %p81 = por %p79, %p80
      %p82 = scmp.ne.s32.totalorder %s70, %s71
      %p83 = scmp.eq.s32.totalorder %s28, 1
      %p84 = por %p82, %p83
      %p86 = scmp.ne.s32.totalorder %s71, %s85
      %p87 = scmp.eq.s32.totalorder %s28, 0
      %p88 = por %p86, %p87
      %s90 = sadd.s32 %s89, 1
      %p93 = scmp.eq.s32.totalorder %s22, 1
      %p94 = scmp.ne.s32.totalorder %s89, %s91
      %p95 = scmp.eq.s32.totalorder %s22, 0
      %p96 = por %p94, %p95
      %p97 = scmp.ne.s32.totalorder %s89, %s91
      %p98 = scmp.eq.s32.totalorder %s27, 1
      %p99 = por %p97, %p98
      %p100 = scmp.ne.s32.totalorder %s91, %s92
      %p101 = scmp.eq.s32.totalorder %s27, 0
      %p102 = por %p100, %p101
      %p103 = scmp.ne.s32.totalorder %s91, %s92
      %p104 = scmp.eq.s32.totalorder %s28, 1
      %p105 = por %p103, %p104
      %p107 = scmp.ne.s32.totalorder %s92, %s106
      %p108 = scmp.eq.s32.totalorder %s28, 0
      %p109 = por %p107, %p108
      %s111 = sadd.s32 %s110, 1
      %p114 = scmp.eq.s32.totalorder %s22, 1
      %p115 = scmp.ne.s32.totalorder %s110, %s112
      %p116 = scmp.eq.s32.totalorder %s22, 0
      %p117 = por %p115, %p116
      %p118 = scmp.ne.s32.totalorder %s110, %s112
      %p119 = scmp.eq.s32.totalorder %s27, 1
      %p120 = por %p118, %p119
      %p121 = scmp.ne.s32.totalorder %s112, %s113
      %p122 = scmp.eq.s32.totalorder %s27, 0
      %p123 = por %p121, %p122
      %p124 = scmp.ne.s32.totalorder %s112, %s113
      %p125 = scmp.eq.s32.totalorder %s28, 1
      %p126 = por %p124, %p125
      %p128 = scmp.ne.s32.totalorder %s113, %s127
      %p129 = scmp.eq.s32.totalorder %s28, 0
      %p130 = por %p128, %p129
      %s132 = sadd.s32 %s131, 1
      %p135 = scmp.eq.s32.totalorder %s22, 1
      %p136 = scmp.ne.s32.totalorder %s131, %s133
      %p137 = scmp.eq.s32.totalorder %s22, 0
      %p138 = por %p136, %p137
      %p139 = scmp.ne.s32.totalorder %s131, %s133
      %p140 = scmp.eq.s32.totalorder %s27, 1
      %p141 = por %p139, %p140
      %p142 = scmp.ne.s32.totalorder %s133, %s134
      %p143 = scmp.eq.s32.totalorder %s27, 0
      %p144 = por %p142, %p143
      %p145 = scmp.ne.s32.totalorder %s133, %s134
      %p146 = scmp.eq.s32.totalorder %s28, 1
      %p147 = por %p145, %p146
      %p149 = scmp.ne.s32.totalorder %s134, %s148
      %p150 = scmp.eq.s32.totalorder %s28, 0
      %p151 = por %p149, %p150
      %s153 = sadd.s32 %s152, 1
      %p156 = scmp.eq.s32.totalorder %s22, 1
      %p157 = scmp.ne.s32.totalorder %s152, %s154
      %p158 = scmp.eq.s32.totalorder %s22, 0
      %p159 = por %p157, %p158
      %p160 = scmp.ne.s32.totalorder %s152, %s154
      %p161 = scmp.eq.s32.totalorder %s27, 1
      %p162 = por %p160, %p161
      %p163 = scmp.ne.s32.totalorder %s154, %s155
      %p164 = scmp.eq.s32.totalorder %s27, 0
      %p165 = por %p163, %p164
      %p166 = scmp.ne.s32.totalorder %s154, %s155
      %p167 = scmp.eq.s32.totalorder %s28, 1
      %p168 = por %p166, %p167
      %p170 = scmp.ne.s32.totalorder %s155, %s169
      %p171 = scmp.eq.s32.totalorder %s28, 0
      %p172 = por %p170, %p171
      %s174 = sadd.s32 %s173, 1
      %p177 = scmp.eq.s32.totalorder %s22, 1
      %p178 = scmp.ne.s32.totalorder %s173, %s175
      %p179 = scmp.eq.s32.totalorder %s22, 0
      %p180 = por %p178, %p179
      %p181 = scmp.ne.s32.totalorder %s173, %s175
      %p182 = scmp.eq.s32.totalorder %s27, 1
      %p183 = por %p181, %p182
      %p184 = scmp.ne.s32.totalorder %s175, %s176
      %p185 = scmp.eq.s32.totalorder %s27, 0
      %p186 = por %p184, %p185
      %p187 = scmp.ne.s32.totalorder %s175, %s176
      %p188 = scmp.eq.s32.totalorder %s28, 1
      %p189 = por %p187, %p188
      %p191 = scmp.ne.s32.totalorder %s176, %s190
      %p192 = scmp.eq.s32.totalorder %s28, 0
      %p193 = por %p191, %p192
      %s195 = sadd.s32 %s194, 1
      %p198 = scmp.eq.s32.totalorder %s22, 1
      %p199 = scmp.ne.s32.totalorder %s194, %s196
      %p200 = scmp.eq.s32.totalorder %s22, 0
      %p201 = por %p199, %p200
      %p202 = scmp.ne.s32.totalorder %s194, %s196
      %p203 = scmp.eq.s32.totalorder %s27, 1
      %p204 = por %p202, %p203
      %p205 = scmp.ne.s32.totalorder %s196, %s197
      %p206 = scmp.eq.s32.totalorder %s27, 0
      %p207 = por %p205, %p206
      %p208 = scmp.ne.s32.totalorder %s196, %s197
      %p209 = scmp.eq.s32.totalorder %s28, 1
      %p210 = por %p208, %p209
      %p212 = scmp.ne.s32.totalorder %s197, %s211
      %p213 = scmp.eq.s32.totalorder %s28, 0
      %p214 = por %p212, %p213
      %s216 = sadd.s32 %s215, 1
      %p219 = scmp.eq.s32.totalorder %s22, 1
      %p220 = scmp.ne.s32.totalorder %s215, %s217
      %p221 = scmp.eq.s32.totalorder %s22, 0
      %p222 = por %p220, %p221
      %p223 = scmp.ne.s32.totalorder %s215, %s217
      %p224 = scmp.eq.s32.totalorder %s27, 1
      %p225 = por %p223, %p224
      %p226 = scmp.ne.s32.totalorder %s217, %s218
      %p227 = scmp.eq.s32.totalorder %s27, 0
      %p228 = por %p226, %p227
      %p229 = scmp.ne.s32.totalorder %s217, %s218
      %p230 = scmp.eq.s32.totalorder %s28, 1
      %p231 = por %p229, %p230
      %p233 = scmp.ne.s32.totalorder %s218, %s232
      %p234 = scmp.eq.s32.totalorder %s28, 0
      %p235 = por %p233, %p234
      %s237 = sadd.s32 %s236, 1
      %p240 = scmp.eq.s32.totalorder %s22, 1
      %p241 = scmp.ne.s32.totalorder %s236, %s238
      %p242 = scmp.eq.s32.totalorder %s22, 0
      %p243 = por %p241, %p242
      %p244 = scmp.ne.s32.totalorder %s236, %s238
      %p245 = scmp.eq.s32.totalorder %s27, 1
      %p246 = por %p244, %p245
      %p247 = scmp.ne.s32.totalorder %s238, %s239
      %p248 = scmp.eq.s32.totalorder %s27, 0
      %p249 = por %p247, %p248
      %p250 = scmp.ne.s32.totalorder %s238, %s239
      %p251 = scmp.eq.s32.totalorder %s28, 1
      %p252 = por %p250, %p251
      %p254 = scmp.ne.s32.totalorder %s239, %s253
      %p255 = scmp.eq.s32.totalorder %s28, 0
      %p256 = por %p254, %p255
      %s257 = ssub.s32 %s30, %s37
      %p258 = scmp.eq.s32.totalorder %s257, 0
      %s260 = sadd.s32 %s259, 1
      %s261 = scalar_select %p258, %s259, %s260
      %p264 = pneg %p258
      %p265 = scmp.eq.s32.totalorder %s22, 1
      %p266 = por %p264, %p265
      %p267 = scmp.ne.s32.totalorder %s259, %s262
      %p268 = scmp.eq.s32.totalorder %s22, 0
      %p269 = por %p267, %p268
      %p270 = scmp.ne.s32.totalorder %s259, %s262
      %p271 = scmp.eq.s32.totalorder %s27, 1
      %p272 = por %p270, %p271
      %p273 = scmp.ne.s32.totalorder %s262, %s263
      %p274 = scmp.eq.s32.totalorder %s27, 0
      %p275 = por %p273, %p274
      %p276 = scmp.ne.s32.totalorder %s262, %s263
      %p277 = scmp.eq.s32.totalorder %s28, 1
      %p278 = por %p276, %p277
      %p280 = scmp.ne.s32.totalorder %s263, %s279
      %p281 = scmp.eq.s32.totalorder %s28, 0
      %p282 = por %p280, %p281
      %s283 = ssub.s32 %s30, %s37
      %p284 = scmp.eq.s32.totalorder %s283, 0
      %s286 = sadd.s32 %s285, 1
      %s287 = scalar_select %p284, %s285, %s286
      %p290 = pneg %p284
      %p291 = scmp.eq.s32.totalorder %s22, 1
      %p292 = por %p290, %p291
      %p293 = scmp.ne.s32.totalorder %s285, %s288
      %p294 = scmp.eq.s32.totalorder %s22, 0
      %p295 = por %p293, %p294
      %p296 = scmp.ne.s32.totalorder %s285, %s288
      %p297 = scmp.eq.s32.totalorder %s27, 1
      %p298 = por %p296, %p297
      %p299 = scmp.ne.s32.totalorder %s288, %s289
      %p300 = scmp.eq.s32.totalorder %s27, 0
      %p301 = por %p299, %p300
      %p302 = scmp.ne.s32.totalorder %s288, %s289
      %p303 = scmp.eq.s32.totalorder %s28, 1
      %p304 = por %p302, %p303
      %p306 = scmp.ne.s32.totalorder %s289, %s305
      %p307 = scmp.eq.s32.totalorder %s28, 0
      %p308 = por %p306, %p307
      %s309 = ssub.s32 %s30, %s37
      %p310 = scmp.eq.s32.totalorder %s309, 0
      %s312 = sadd.s32 %s311, 1
      %s313 = scalar_select %p310, %s311, %s312
      %p316 = pneg %p310
      %p317 = scmp.eq.s32.totalorder %s22, 1
      %p318 = por %p316, %p317
      %p319 = scmp.ne.s32.totalorder %s311, %s314
      %p320 = scmp.eq.s32.totalorder %s22, 0
      %p321 = por %p319, %p320
      %p322 = scmp.ne.s32.totalorder %s311, %s314
      %p323 = scmp.eq.s32.totalorder %s27, 1
      %p324 = por %p322, %p323
      %p325 = scmp.ne.s32.totalorder %s314, %s315
      %p326 = scmp.eq.s32.totalorder %s27, 0
      %p327 = por %p325, %p326
      %p328 = scmp.ne.s32.totalorder %s314, %s315
      %p329 = scmp.eq.s32.totalorder %s28, 1
      %p330 = por %p328, %p329
      %p332 = scmp.ne.s32.totalorder %s315, %s331
      %p333 = scmp.eq.s32.totalorder %s28, 0
      %p334 = por %p332, %p333
      %s335 = ssub.s32 %s29, %s41
      %p336 = scmp.eq.s32.totalorder %s335, 0
      %s338 = sadd.s32 %s337, 1
      %s339 = scalar_select %p336, %s337, %s338
      %p342 = pneg %p336
      %p343 = scmp.eq.s32.totalorder %s22, 1
      %p344 = por %p342, %p343
      %p345 = scmp.ne.s32.totalorder %s337, %s340
      %p346 = scmp.eq.s32.totalorder %s22, 0
      %p347 = por %p345, %p346
      %p348 = scmp.ne.s32.totalorder %s337, %s340
      %p349 = scmp.eq.s32.totalorder %s27, 1
      %p350 = por %p348, %p349
      %p351 = scmp.ne.s32.totalorder %s340, %s341
      %p352 = scmp.eq.s32.totalorder %s27, 0
      %p353 = por %p351, %p352
      %p354 = scmp.ne.s32.totalorder %s340, %s341
      %p355 = scmp.eq.s32.totalorder %s28, 1
      %p356 = por %p354, %p355
      %p358 = scmp.ne.s32.totalorder %s341, %s357
      %p359 = scmp.eq.s32.totalorder %s28, 0
      %p360 = por %p358, %p359
      %p361 = scmp.le.s32.totalorder 1, %s22
      %p362 = scmp.lt.s32.totalorder %s22, 3
      %p363 = pnand %p361, %p362
      %p364 = pneg %p363
      // Predicated region
      $region9: #{tpu_custom_call.1} parent=5 // pred_check
        _
      $region10: #{tpu_custom_call.1} parent=5 // pred_check_branch
        %366 = sbr.rel (%p363) target = $region12
      $region11: #{tpu_custom_call.1} parent=5 // pred_region
        %s367 = ssub.s32 %s22, 1
        // Predicated region
        $region13: #{tpu_custom_call.1} parent=11 // pred_check
          %p368 = pneg %p81
        $region14: #{tpu_custom_call.1} parent=11 // pred_check_branch
          %370 = sbr.rel (%p368) target = $region16
        $region15: #{tpu_custom_call.1} parent=11 // pred_region
          _
        $region16: #{tpu_custom_call.1} parent=11 // pred_fallthru
          _
        // Predicated region
        $region17: #{tpu_custom_call.1} parent=11 // pred_check
          %p371 = pneg %p102
        $region18: #{tpu_custom_call.1} parent=11 // pred_check_branch
          %373 = sbr.rel (%p371) target = $region20
        $region19: #{tpu_custom_call.1} parent=11 // pred_region
          _
        $region20: #{tpu_custom_call.1} parent=11 // pred_fallthru
          _
        // Predicated region
        $region21: #{tpu_custom_call.1} parent=11 // pred_check
          %p374 = pneg %p123
        $region22: #{tpu_custom_call.1} parent=11 // pred_check_branch
          %376 = sbr.rel (%p374) target = $region24
        $region23: #{tpu_custom_call.1} parent=11 // pred_region
          _
        $region24: #{tpu_custom_call.1} parent=11 // pred_fallthru
          _
        // Predicated region
        $region25: #{tpu_custom_call.1} parent=11 // pred_check
          %p377 = pneg %p144
        $region26: #{tpu_custom_call.1} parent=11 // pred_check_branch
          %379 = sbr.rel (%p377) target = $region28
        $region27: #{tpu_custom_call.1} parent=11 // pred_region
          _
        $region28: #{tpu_custom_call.1} parent=11 // pred_fallthru
          _
        // Predicated region
        $region29: #{tpu_custom_call.1} parent=11 // pred_check
          %p380 = pneg %p165
        $region30: #{tpu_custom_call.1} parent=11 // pred_check_branch
          %382 = sbr.rel (%p380) target = $region32
        $region31: #{tpu_custom_call.1} parent=11 // pred_region
          _
        $region32: #{tpu_custom_call.1} parent=11 // pred_fallthru
          _
        // Predicated region
        $region33: #{tpu_custom_call.1} parent=11 // pred_check
          %p383 = pneg %p186
        $region34: #{tpu_custom_call.1} parent=11 // pred_check_branch
          %385 = sbr.rel (%p383) target = $region36
        $region35: #{tpu_custom_call.1} parent=11 // pred_region
          _
        $region36: #{tpu_custom_call.1} parent=11 // pred_fallthru
          _
        // Predicated region
        $region37: #{tpu_custom_call.1} parent=11 // pred_check
          %p386 = pneg %p207
        $region38: #{tpu_custom_call.1} parent=11 // pred_check_branch
          %388 = sbr.rel (%p386) target = $region40
        $region39: #{tpu_custom_call.1} parent=11 // pred_region
          _
        $region40: #{tpu_custom_call.1} parent=11 // pred_fallthru
          _
        // Predicated region
        $region41: #{tpu_custom_call.1} parent=11 // pred_check
          %p389 = pneg %p228
        $region42: #{tpu_custom_call.1} parent=11 // pred_check_branch
          %391 = sbr.rel (%p389) target = $region44
        $region43: #{tpu_custom_call.1} parent=11 // pred_region
          _
        $region44: #{tpu_custom_call.1} parent=11 // pred_fallthru
          _
        // Predicated region
        $region45: #{tpu_custom_call.1} parent=11 // pred_check
          %p392 = pneg %p249
        $region46: #{tpu_custom_call.1} parent=11 // pred_check_branch
          %394 = sbr.rel (%p392) target = $region48
        $region47: #{tpu_custom_call.1} parent=11 // pred_region
          _
        $region48: #{tpu_custom_call.1} parent=11 // pred_fallthru
          _
        // Predicated region
        $region49: #{tpu_custom_call.1} parent=11 // pred_check
          %p395 = pneg %p275
        $region50: #{tpu_custom_call.1} parent=11 // pred_check_branch
          %397 = sbr.rel (%p395) target = $region52
        $region51: #{tpu_custom_call.1} parent=11 // pred_region
          %p398 = scmp.lt.s32.totalorder %s32, 0
          %s399 = scalar_select %p398, %s32, 0
          %s400 = smul.addr %s399, 8
          %s401 = scalar_lea.vmem %s10, %s400
        $region52: #{tpu_custom_call.1} parent=11 // pred_fallthru
          _
        // Predicated region
        $region53: #{tpu_custom_call.1} parent=11 // pred_check
          %p402 = pneg %p301
        $region54: #{tpu_custom_call.1} parent=11 // pred_check_branch
          %404 = sbr.rel (%p402) target = $region56
        $region55: #{tpu_custom_call.1} parent=11 // pred_region
          %p405 = scmp.lt.s32.totalorder %s32, 0
          %s406 = scalar_select %p405, %s32, 0
          %s407 = scalar_lea.vmem %s11, %s406
        $region56: #{tpu_custom_call.1} parent=11 // pred_fallthru
          _
        // Predicated region
        $region57: #{tpu_custom_call.1} parent=11 // pred_check
          %p408 = pneg %p327
        $region58: #{tpu_custom_call.1} parent=11 // pred_check_branch
          %410 = sbr.rel (%p408) target = $region60
        $region59: #{tpu_custom_call.1} parent=11 // pred_region
          %s411 = smul.u32 16, %s32
          %p412 = scmp.lt.s32.totalorder %s411, 15
          %s413 = scalar_select %p412, %s411, 15
          %s414 = smul.addr %s413, 8
          %s415 = scalar_lea.vmem %s12, %s414
          %s416 = smul.u32 16, %s32
        $region60: #{tpu_custom_call.1} parent=11 // pred_fallthru
          _
      $region12: #{tpu_custom_call.1} parent=5 // pred_fallthru
        _
      %p417 = scmp.lt.s32.totalorder %s22, 2
      // Predicated region
      $region61: #{tpu_custom_call.1} parent=5 // pred_check
        %p418 = pneg %p417
      $region62: #{tpu_custom_call.1} parent=5 // pred_check_branch
        %420 = sbr.rel (%p418) target = $region64
      $region63: #{tpu_custom_call.1} parent=5 // pred_region
        // Predicated region
        $region65: #{tpu_custom_call.1} parent=63 // pred_check
          %p421 = pneg %p54
        $region66: #{tpu_custom_call.1} parent=63 // pred_check_branch
          %423 = sbr.rel (%p421) target = $region68
        $region67: #{tpu_custom_call.1} parent=63 // pred_region
          %p424 = scmp.lt.s32.totalorder %s29, 1
          %s425 = scalar_select %p424, %s29, 1
          %s426 = smul.addr %s425, 8
          %s427 = scalar_lea.vmem %s0, %s426
        $region68: #{tpu_custom_call.1} parent=63 // pred_fallthru
          _
      $region64: #{tpu_custom_call.1} parent=5 // pred_fallthru
        _
      %p428 = scmp.le.s32.totalorder 1, %s22
      %p429 = scmp.lt.s32.totalorder %s22, 3
      %p430 = pnand %p428, %p429
      %p431 = pneg %p430
      // Predicated region
      $region69: #{tpu_custom_call.1} parent=5 // pred_check
        _
      $region70: #{tpu_custom_call.1} parent=5 // pred_check_branch
        %433 = sbr.rel (%p430) target = $region72
      $region71: #{tpu_custom_call.1} parent=5 // pred_region
        %s434 = ssub.s32 %s22, 1
        %p435 = scmp.lt.s32.totalorder %s31, 1
        %s436 = scalar_select %p435, %s31, 1
        %s437 = smul.addr %s436, 8
        %s438 = scalar_lea.vmem %s0, %s437
        %p439 = pneg %p60
        %p440 = pneg %p57
        %p441 = pneg %p81
        %p442 = pneg %p78
        %p443 = pneg %p102
        %p444 = pneg %p99
        %p445 = pneg %p123
        %p446 = pneg %p120
        %p447 = pneg %p144
        %p448 = pneg %p141
        %p449 = pneg %p165
        %p450 = pneg %p162
        %p451 = pneg %p186
        %p452 = pneg %p183
        %p453 = pneg %p207
        %p454 = pneg %p204
        %p455 = pneg %p228
        %p456 = pneg %p225
        %p457 = pneg %p249
        %p458 = pneg %p246
        %p459 = scmp.lt.s32.totalorder %s32, 0
        %s460 = scalar_select %p459, %s32, 0
        %s461 = smul.addr %s460, 8
        %s462 = scalar_lea.vmem %s10, %s461
        %p463 = pneg %p275
        %p464 = pneg %p272
        %p465 = scmp.lt.s32.totalorder %s32, 0
        %s466 = scalar_select %p465, %s32, 0
        %s467 = scalar_lea.vmem %s11, %s466
        %p468 = pneg %p301
        %p469 = pneg %p298
        %s470 = smul.u32 16, %s32
        %p471 = scmp.lt.s32.totalorder %s470, 15
        %s472 = scalar_select %p471, %s470, 15
        %s473 = smul.addr %s472, 8
        %s474 = scalar_lea.vmem %s12, %s473
        %p475 = pneg %p327
        %p476 = pneg %p324
        %p477 = pneg %p353
        %p478 = pneg %p350
        %s479 = sand.u32 %s340, 1
        %s480 = scalar_lea.sflag [#allocation6], %s479
        %s481 = sand.u32 %s340, 1
        %s482 = smul.addr %s481, 8
        %s483 = scalar_lea.vmem [#allocation5], %s482
        %p484 = scmp.lt.s32.totalorder %s31, 1
        %s485 = scalar_select %p484, %s31, 1
        %s486 = smul.addr %s485, 8
        %s487 = scalar_lea.vmem %s0, %s486
        %p488 = scmp.lt.s32.totalorder %s32, 0
        %s489 = scalar_select %p488, %s32, 0
        %s490 = smul.addr %s489, 8
        %s491 = scalar_lea.vmem %s10, %s490
        %p492 = scmp.lt.s32.totalorder %s32, 0
        %s493 = scalar_select %p492, %s32, 0
        %s494 = scalar_lea.vmem %s11, %s493
        %s495 = smul.u32 16, %s32
        %p496 = scmp.lt.s32.totalorder %s495, 15
        %s497 = scalar_select %p496, %s495, 15
        %s498 = smul.addr %s497, 8
        %s499 = scalar_lea.vmem %s12, %s498
        %s500 = smul.u32 16, %s32
        %p501 = scmp.eq.s32.totalorder %s32, 0
        // Predicated region
        $region73: #{tpu_custom_call.1} parent=71 // pred_check
          %p502 = pneg %p501
        $region74: #{tpu_custom_call.1} parent=71 // pred_check_branch
          %504 = sbr.rel (%p502) target = $region76
        $region75: #{tpu_custom_call.1} parent=71 // pred_region
          %v505 = vld [vmem:[%s487] sm:$0xff]
          %v506 = vld [vmem:[%s1] sm:$0x1]
          %v507 = vld [vmem:[%s2] sm:$0x1]
          %vm508 = vcmask 261120
          %v509 = vsel %vm508, %v505, 0.0
          %510 = vadd.xlane.f32.xlu0 %v509
          %v511 = vpop.xlane.xlu0 %510
          %v512 = vrcp.pop 32.0
          %v513 = vmul.f32 %v511, %v512
          %v514 = vsub.f32 %v505, %v513
          %v515 = vmul.f32 %v514, %v514
          %v516 = vsel %vm508, %v515, 0.0
          %517 = vadd.xlane.f32.xlu0 %v516
          %v518 = vpop.xlane.xlu0 %517
          %v519 = vmul.f32 %v518, %v512
          %v520 = vadd.f32 %v519, 1e-12
          %v521 = vrsqrt.pop %v520
          %v522 = vmul.f32 %v514, %v521
          %v524 = vlaneseq
          %v525 = vshrl.u32 %v524, 7
          %v526 = vsub.s32 0, %v525
          %v527 = vrot.slane %v506, %v526
          %v529 = vmul.f32 %v522, %v527
          %v531 = vlaneseq
          %v532 = vshrl.u32 %v531, 7
          %v533 = vsub.s32 0, %v532
          %v534 = vrot.slane %v507, %v533
          %v536 = vadd.f32 %v529, %v534
          %v537 = vld [vmem:[%s3] sm:$0xff]
          %v538 = vld [vmem:[%s3 + $0x8] sm:$0xff]
          %v539 = vld [vmem:[%s3 + $0x10] sm:$0xff]
          %v540 = vld [vmem:[%s3 + $0x18] sm:$0xff]
          %v541 = vld [vmem:[%s4] sm:$0x1]
          %v543 = vlaneseq
          %v544 = vshrl.u32 %v543, 7
          %v545 = vsub.s32 0, %v544
          %v546 = vrot.slane %v541, %v545
          %v549 = vsel %vm508, %v536, 0
          %551 = vmatprep.subr.mxu0 0.0
          %552 = vmatpush1.msra.mxu0 %v537
          %553 = vmatprep.subr.mxu0 0.0
          %554 = vmatpush1.msra.mxu0 %v538
          %555 = vmatprep.subr.mxu0 0.0
          %556 = vmatpush1.msra.mxu0 %v539
          %557 = vmatprep.subr.mxu0 0.0
          %558 = vmatpush1.msra.mxu0 %v540
          %559 = vmatprep.subr.mxu0 0.0
          %560 = vmatpush1.msra.mxu0 0.0
          %561 = vmatprep.subr.mxu0 0.0
          %562 = vmatpush1.msra.mxu0 0.0
          %563 = vmatprep.subr.mxu0 0.0
          %564 = vmatpush1.msra.mxu0 0.0
          %565 = vmatprep.subr.mxu0 0.0
          %566 = vmatpush1.msra.mxu0 0.0
          %567 = vmatprep.subr.mxu0 0.0
          %568 = vmatpush1.msra.mxu0 0.0
          %569 = vmatprep.subr.mxu0 0.0
          %570 = vmatpush1.msra.mxu0 0.0
          %571 = vmatprep.subr.mxu0 0.0
          %572 = vmatpush1.msra.mxu0 0.0
          %573 = vmatprep.subr.mxu0 0.0
          %574 = vmatpush1.msra.mxu0 0.0
          %575 = vmatprep.subr.mxu0 0.0
          %576 = vmatpush1.msra.mxu0 0.0
          %577 = vmatprep.subr.mxu0 0.0
          %578 = vmatpush1.msra.mxu0 0.0
          %579 = vmatprep.subr.mxu0 0.0
          %580 = vmatpush1.msra.mxu0 0.0
          %581 = vmatprep.subr.mxu0 0.0
          %582 = vmatpush1.msra.mxu0 0.0
          %583 = vmatprep.subr.mxu0 0.0
          %584 = vmatpush1.msra.mxu0 0.0
          %585 = vmatprep.subr.mxu0 0.0
          %586 = vmatpush1.msra.mxu0 0.0
          %587 = vmatprep.subr.mxu0 0.0
          %588 = vmatpush1.msra.mxu0 0.0
          %589 = vmatprep.subr.mxu0 0.0
          %590 = vmatpush1.msra.mxu0 0.0
          %591 = vmatprep.subr.mxu0 0.0
          %592 = vmatpush1.msra.mxu0 0.0
          %593 = vmatprep.subr.mxu0 0.0
          %594 = vmatpush1.msra.mxu0 0.0
          %595 = vmatprep.subr.mxu0 0.0
          %596 = vmatpush1.msra.mxu0 0.0
          %597 = vmatprep.subr.mxu0 0.0
          %598 = vmatpush1.msra.mxu0 0.0
          %599 = vmatprep.subr.mxu0 0.0
          %600 = vmatpush1.msra.mxu0 0.0
          %601 = vmatprep.subr.mxu0 0.0
          %602 = vmatpush1.msra.mxu0 0.0
          %603 = vmatprep.subr.mxu0 0.0
          %604 = vmatpush1.msra.mxu0 0.0
          %605 = vmatprep.subr.mxu0 0.0
          %606 = vmatpush1.msra.mxu0 0.0
          %607 = vmatprep.subr.mxu0 0.0
          %608 = vmatpush1.msra.mxu0 0.0
          %609 = vmatprep.subr.mxu0 0.0
          %610 = vmatpush1.msra.mxu0 0.0
          %611 = vmatprep.subr.mxu0 0.0
          %612 = vmatpush1.msra.mxu0 0.0
          %613 = vmatprep.subr.mxu0 0.0
          %614 = vmatpush1.msra.mxu0 0.0
          %615 = vmatprep.mubr.f32.mxu0 0.0
          %616 = vmatmul.mubr.f32.gmra.mrb[0].mxu0 %v549
          %v617 = vpop.f32.mrb[0].mxu0
          %v618 = vadd.f32 %v546, %v617
          %v619 = vpop.f32.mrb[0].mxu0
          %620 = vdwg.mxu0
          %622 = vrot.lane.b32.xlu0 %v618, 96
          %v623 = vpop.permute.xlu0 %622
          %vm624 = vcmask 64512
          %v625 = vsel %vm624, %v618, 0
          %v627 = vsel %vm624, %v623, 0
          %629 = vmatprep.subr.mxu0 0.0
          %630 = vmatpush1.xpose.msra.mxu0 %v627
          %631 = vmatprep.subr.mxu0 0.0
          %632 = vmatpush1.xpose.msra.mxu0 0.0
          %633 = vmatprep.subr.mxu0 0.0
          %634 = vmatpush1.xpose.msra.mxu0 0.0
          %635 = vmatprep.subr.mxu0 0.0
          %636 = vmatpush1.xpose.msra.mxu0 0.0
          %637 = vmatprep.subr.mxu0 0.0
          %638 = vmatpush1.xpose.msra.mxu0 0.0
          %639 = vmatprep.subr.mxu0 0.0
          %640 = vmatpush1.xpose.msra.mxu0 0.0
          %641 = vmatprep.subr.mxu0 0.0
          %642 = vmatpush1.xpose.msra.mxu0 0.0
          %643 = vmatprep.subr.mxu0 0.0
          %644 = vmatpush1.xpose.msra.mxu0 0.0
          %645 = vmatprep.subr.mxu0 0.0
          %646 = vmatpush1.xpose.msra.mxu0 0.0
          %647 = vmatprep.subr.mxu0 0.0
          %648 = vmatpush1.xpose.msra.mxu0 0.0
          %649 = vmatprep.subr.mxu0 0.0
          %650 = vmatpush1.xpose.msra.mxu0 0.0
          %651 = vmatprep.subr.mxu0 0.0
          %652 = vmatpush1.xpose.msra.mxu0 0.0
          %653 = vmatprep.subr.mxu0 0.0
          %654 = vmatpush1.xpose.msra.mxu0 0.0
          %655 = vmatprep.subr.mxu0 0.0
          %656 = vmatpush1.xpose.msra.mxu0 0.0
          %657 = vmatprep.subr.mxu0 0.0
          %658 = vmatpush1.xpose.msra.mxu0 0.0
          %659 = vmatprep.subr.mxu0 0.0
          %660 = vmatpush1.xpose.msra.mxu0 0.0
          %661 = vmatprep.subr.mxu0 0.0
          %662 = vmatpush1.xpose.msra.mxu0 0.0
          %663 = vmatprep.subr.mxu0 0.0
          %664 = vmatpush1.xpose.msra.mxu0 0.0
          %665 = vmatprep.subr.mxu0 0.0
          %666 = vmatpush1.xpose.msra.mxu0 0.0
          %667 = vmatprep.subr.mxu0 0.0
          %668 = vmatpush1.xpose.msra.mxu0 0.0
          %669 = vmatprep.subr.mxu0 0.0
          %670 = vmatpush1.xpose.msra.mxu0 0.0
          %671 = vmatprep.subr.mxu0 0.0
          %672 = vmatpush1.xpose.msra.mxu0 0.0
          %673 = vmatprep.subr.mxu0 0.0
          %674 = vmatpush1.xpose.msra.mxu0 0.0
          %675 = vmatprep.subr.mxu0 0.0
          %676 = vmatpush1.xpose.msra.mxu0 0.0
          %677 = vmatprep.subr.mxu0 0.0
          %678 = vmatpush1.xpose.msra.mxu0 0.0
          %679 = vmatprep.subr.mxu0 0.0
          %680 = vmatpush1.xpose.msra.mxu0 0.0
          %681 = vmatprep.subr.mxu0 0.0
          %682 = vmatpush1.xpose.msra.mxu0 0.0
          %683 = vmatprep.subr.mxu0 0.0
          %684 = vmatpush1.xpose.msra.mxu0 0.0
          %685 = vmatprep.subr.mxu0 0.0
          %686 = vmatpush1.xpose.msra.mxu0 0.0
          %687 = vmatprep.subr.mxu0 0.0
          %688 = vmatpush1.xpose.msra.mxu0 0.0
          %689 = vmatprep.subr.mxu0 0.0
          %690 = vmatpush1.xpose.msra.mxu0 0.0
          %691 = vmatprep.subr.mxu0 0.0
          %692 = vmatpush1.xpose.msra.mxu0 0.0
          %693 = vmatprep.mubr.f32.mxu0 0.0
          %694 = vmatmul.mubr.f32.gmra.mrb[0].mxu0 %v625
          %v695 = vpop.f32.mrb[0].mxu0
          %v696 = vadd.f32 0.0, %v695
          %v697 = vpop.f32.mrb[0].mxu0
          %698 = vdwg.mxu0
          %v699 = vmul.f32 %v696, 0.35355338
          %v700 = vsel %vm624, %v699, -inf
          %701 = vmax.xlane.f32.xlu0 %v700
          %v702 = vpop.xlane.xlu0 %701
          %v703 = vsub.f32 %v699, %v702
          %v704 = vmul.f32 %v703, 1.442695
          %v705 = vpow.pop %v704
          %v706 = vsel %vm624, %v705, 0.0
          %707 = vadd.xlane.f32.xlu0 %v706
          %v708 = vpop.xlane.xlu0 %707
          %v709 = vrcp.pop %v708
          %v710 = vmul.f32 %v705, %v709
          %711 = vrot.lane.b32.xlu0 %v618, 64
          %v712 = vpop.permute.xlu0 %711
          %v715 = vsel %vm624, %v710, 0
          %717 = vmatprep.subr.mxu0 0.0
          %718 = vmatpush1.msra.mxu0 %v712
          %719 = vmatprep.subr.mxu0 0.0
          %720 = vmatpush1.msra.mxu0 0.0
          %721 = vmatprep.subr.mxu0 0.0
          %722 = vmatpush1.msra.mxu0 0.0
          %723 = vmatprep.subr.mxu0 0.0
          %724 = vmatpush1.msra.mxu0 0.0
          %725 = vmatprep.subr.mxu0 0.0
          %726 = vmatpush1.msra.mxu0 0.0
          %727 = vmatprep.subr.mxu0 0.0
          %728 = vmatpush1.msra.mxu0 0.0
          %729 = vmatprep.subr.mxu0 0.0
          %730 = vmatpush1.msra.mxu0 0.0
          %731 = vmatprep.subr.mxu0 0.0
          %732 = vmatpush1.msra.mxu0 0.0
          %733 = vmatprep.subr.mxu0 0.0
          %734 = vmatpush1.msra.mxu0 0.0
          %735 = vmatprep.subr.mxu0 0.0
          %736 = vmatpush1.msra.mxu0 0.0
          %737 = vmatprep.subr.mxu0 0.0
          %738 = vmatpush1.msra.mxu0 0.0
          %739 = vmatprep.subr.mxu0 0.0
          %740 = vmatpush1.msra.mxu0 0.0
          %741 = vmatprep.subr.mxu0 0.0
          %742 = vmatpush1.msra.mxu0 0.0
          %743 = vmatprep.subr.mxu0 0.0
          %744 = vmatpush1.msra.mxu0 0.0
          %745 = vmatprep.subr.mxu0 0.0
          %746 = vmatpush1.msra.mxu0 0.0
          %747 = vmatprep.subr.mxu0 0.0
          %748 = vmatpush1.msra.mxu0 0.0
          %749 = vmatprep.subr.mxu0 0.0
          %750 = vmatpush1.msra.mxu0 0.0
          %751 = vmatprep.subr.mxu0 0.0
          %752 = vmatpush1.msra.mxu0 0.0
          %753 = vmatprep.subr.mxu0 0.0
          %754 = vmatpush1.msra.mxu0 0.0
          %755 = vmatprep.subr.mxu0 0.0
          %756 = vmatpush1.msra.mxu0 0.0
          %757 = vmatprep.subr.mxu0 0.0
          %758 = vmatpush1.msra.mxu0 0.0
          %759 = vmatprep.subr.mxu0 0.0
          %760 = vmatpush1.msra.mxu0 0.0
          %761 = vmatprep.subr.mxu0 0.0
          %762 = vmatpush1.msra.mxu0 0.0
          %763 = vmatprep.subr.mxu0 0.0
          %764 = vmatpush1.msra.mxu0 0.0
          %765 = vmatprep.subr.mxu0 0.0
          %766 = vmatpush1.msra.mxu0 0.0
          %767 = vmatprep.subr.mxu0 0.0
          %768 = vmatpush1.msra.mxu0 0.0
          %769 = vmatprep.subr.mxu0 0.0
          %770 = vmatpush1.msra.mxu0 0.0
          %771 = vmatprep.subr.mxu0 0.0
          %772 = vmatpush1.msra.mxu0 0.0
          %773 = vmatprep.subr.mxu0 0.0
          %774 = vmatpush1.msra.mxu0 0.0
          %775 = vmatprep.subr.mxu0 0.0
          %776 = vmatpush1.msra.mxu0 0.0
          %777 = vmatprep.subr.mxu0 0.0
          %778 = vmatpush1.msra.mxu0 0.0
          %779 = vmatprep.subr.mxu0 0.0
          %780 = vmatpush1.msra.mxu0 0.0
          %781 = vmatprep.mubr.f32.mxu0 0.0
          %782 = vmatmul.mubr.f32.gmra.mrb[0].mxu0 %v715
          %v783 = vpop.f32.mrb[0].mxu0
          %v784 = vadd.f32 0.0, %v783
          %v785 = vpop.f32.mrb[0].mxu0
          %786 = vdwg.mxu0
          %787 = vst.msk [vmem:[#allocation4] sm:$0xff] %vm624, %v784
          %788 = vrot.lane.b32.xlu0 %v618, 120
          %v789 = vpop.permute.xlu0 %788
          %790 = vrot.lane.b32.xlu0 %v618, 88
          %v791 = vpop.permute.xlu0 %790
          %v792 = vsel %vm624, %v789, 0
          %v794 = vsel %vm624, %v791, 0
          %796 = vmatprep.subr.mxu0 0.0
          %797 = vmatpush1.xpose.msra.mxu0 %v794
          %798 = vmatprep.subr.mxu0 0.0
          %799 = vmatpush1.xpose.msra.mxu0 0.0
          %800 = vmatprep.subr.mxu0 0.0
          %801 = vmatpush1.xpose.msra.mxu0 0.0
          %802 = vmatprep.subr.mxu0 0.0
          %803 = vmatpush1.xpose.msra.mxu0 0.0
          %804 = vmatprep.subr.mxu0 0.0
          %805 = vmatpush1.xpose.msra.mxu0 0.0
          %806 = vmatprep.subr.mxu0 0.0
          %807 = vmatpush1.xpose.msra.mxu0 0.0
          %808 = vmatprep.subr.mxu0 0.0
          %809 = vmatpush1.xpose.msra.mxu0 0.0
          %810 = vmatprep.subr.mxu0 0.0
          %811 = vmatpush1.xpose.msra.mxu0 0.0
          %812 = vmatprep.subr.mxu0 0.0
          %813 = vmatpush1.xpose.msra.mxu0 0.0
          %814 = vmatprep.subr.mxu0 0.0
          %815 = vmatpush1.xpose.msra.mxu0 0.0
          %816 = vmatprep.subr.mxu0 0.0
          %817 = vmatpush1.xpose.msra.mxu0 0.0
          %818 = vmatprep.subr.mxu0 0.0
          %819 = vmatpush1.xpose.msra.mxu0 0.0
          %820 = vmatprep.subr.mxu0 0.0
          %821 = vmatpush1.xpose.msra.mxu0 0.0
          %822 = vmatprep.subr.mxu0 0.0
          %823 = vmatpush1.xpose.msra.mxu0 0.0
          %824 = vmatprep.subr.mxu0 0.0
          %825 = vmatpush1.xpose.msra.mxu0 0.0
          %826 = vmatprep.subr.mxu0 0.0
          %827 = vmatpush1.xpose.msra.mxu0 0.0
          %828 = vmatprep.subr.mxu0 0.0
          %829 = vmatpush1.xpose.msra.mxu0 0.0
          %830 = vmatprep.subr.mxu0 0.0
          %831 = vmatpush1.xpose.msra.mxu0 0.0
          %832 = vmatprep.subr.mxu0 0.0
          %833 = vmatpush1.xpose.msra.mxu0 0.0
          %834 = vmatprep.subr.mxu0 0.0
          %835 = vmatpush1.xpose.msra.mxu0 0.0
          %836 = vmatprep.subr.mxu0 0.0
          %837 = vmatpush1.xpose.msra.mxu0 0.0
          %838 = vmatprep.subr.mxu0 0.0
          %839 = vmatpush1.xpose.msra.mxu0 0.0
          %840 = vmatprep.subr.mxu0 0.0
          %841 = vmatpush1.xpose.msra.mxu0 0.0
          %842 = vmatprep.subr.mxu0 0.0
          %843 = vmatpush1.xpose.msra.mxu0 0.0
          %844 = vmatprep.subr.mxu0 0.0
          %845 = vmatpush1.xpose.msra.mxu0 0.0
          %846 = vmatprep.subr.mxu0 0.0
          %847 = vmatpush1.xpose.msra.mxu0 0.0
          %848 = vmatprep.subr.mxu0 0.0
          %849 = vmatpush1.xpose.msra.mxu0 0.0
          %850 = vmatprep.subr.mxu0 0.0
          %851 = vmatpush1.xpose.msra.mxu0 0.0
          %852 = vmatprep.subr.mxu0 0.0
          %853 = vmatpush1.xpose.msra.mxu0 0.0
          %854 = vmatprep.subr.mxu0 0.0
          %855 = vmatpush1.xpose.msra.mxu0 0.0
          %856 = vmatprep.subr.mxu0 0.0
          %857 = vmatpush1.xpose.msra.mxu0 0.0
          %858 = vmatprep.subr.mxu0 0.0
          %859 = vmatpush1.xpose.msra.mxu0 0.0
          %860 = vmatprep.mubr.f32.mxu0 0.0
          %861 = vmatmul.mubr.f32.gmra.mrb[0].mxu0 %v792
          %v862 = vpop.f32.mrb[0].mxu0
          %v863 = vadd.f32 0.0, %v862
          %v864 = vpop.f32.mrb[0].mxu0
          %865 = vdwg.mxu0
          %v866 = vmul.f32 %v863, 0.35355338
          %v867 = vsel %vm624, %v866, -inf
          %868 = vmax.xlane.f32.xlu0 %v867
          %v869 = vpop.xlane.xlu0 %868
          %v870 = vsub.f32 %v866, %v869
          %v871 = vmul.f32 %v870, 1.442695
          %v872 = vpow.pop %v871
          %v873 = vsel %vm624, %v872, 0.0
          %874 = vadd.xlane.f32.xlu0 %v873
          %v875 = vpop.xlane.xlu0 %874
          %v876 = vrcp.pop %v875
          %v877 = vmul.f32 %v872, %v876
          %878 = vrot.lane.b32.xlu0 %v618, 56
          %v879 = vpop.permute.xlu0 %878
          %v882 = vsel %vm624, %v877, 0
          %884 = vmatprep.subr.mxu0 0.0
          %885 = vmatpush1.msra.mxu0 %v879
          %886 = vmatprep.subr.mxu0 0.0
          %887 = vmatpush1.msra.mxu0 0.0
          %888 = vmatprep.subr.mxu0 0.0
          %889 = vmatpush1.msra.mxu0 0.0
          %890 = vmatprep.subr.mxu0 0.0
          %891 = vmatpush1.msra.mxu0 0.0
          %892 = vmatprep.subr.mxu0 0.0
          %893 = vmatpush1.msra.mxu0 0.0
          %894 = vmatprep.subr.mxu0 0.0
          %895 = vmatpush1.msra.mxu0 0.0
          %896 = vmatprep.subr.mxu0 0.0
          %897 = vmatpush1.msra.mxu0 0.0
          %898 = vmatprep.subr.mxu0 0.0
          %899 = vmatpush1.msra.mxu0 0.0
          %900 = vmatprep.subr.mxu0 0.0
          %901 = vmatpush1.msra.mxu0 0.0
          %902 = vmatprep.subr.mxu0 0.0
          %903 = vmatpush1.msra.mxu0 0.0
          %904 = vmatprep.subr.mxu0 0.0
          %905 = vmatpush1.msra.mxu0 0.0
          %906 = vmatprep.subr.mxu0 0.0
          %907 = vmatpush1.msra.mxu0 0.0
          %908 = vmatprep.subr.mxu0 0.0
          %909 = vmatpush1.msra.mxu0 0.0
          %910 = vmatprep.subr.mxu0 0.0
          %911 = vmatpush1.msra.mxu0 0.0
          %912 = vmatprep.subr.mxu0 0.0
          %913 = vmatpush1.msra.mxu0 0.0
          %914 = vmatprep.subr.mxu0 0.0
          %915 = vmatpush1.msra.mxu0 0.0
          %916 = vmatprep.subr.mxu0 0.0
          %917 = vmatpush1.msra.mxu0 0.0
          %918 = vmatprep.subr.mxu0 0.0
          %919 = vmatpush1.msra.mxu0 0.0
          %920 = vmatprep.subr.mxu0 0.0
          %921 = vmatpush1.msra.mxu0 0.0
          %922 = vmatprep.subr.mxu0 0.0
          %923 = vmatpush1.msra.mxu0 0.0
          %924 = vmatprep.subr.mxu0 0.0
          %925 = vmatpush1.msra.mxu0 0.0
          %926 = vmatprep.subr.mxu0 0.0
          %927 = vmatpush1.msra.mxu0 0.0
          %928 = vmatprep.subr.mxu0 0.0
          %929 = vmatpush1.msra.mxu0 0.0
          %930 = vmatprep.subr.mxu0 0.0
          %931 = vmatpush1.msra.mxu0 0.0
          %932 = vmatprep.subr.mxu0 0.0
          %933 = vmatpush1.msra.mxu0 0.0
          %934 = vmatprep.subr.mxu0 0.0
          %935 = vmatpush1.msra.mxu0 0.0
          %936 = vmatprep.subr.mxu0 0.0
          %937 = vmatpush1.msra.mxu0 0.0
          %938 = vmatprep.subr.mxu0 0.0
          %939 = vmatpush1.msra.mxu0 0.0
          %940 = vmatprep.subr.mxu0 0.0
          %941 = vmatpush1.msra.mxu0 0.0
          %942 = vmatprep.subr.mxu0 0.0
          %943 = vmatpush1.msra.mxu0 0.0
          %944 = vmatprep.subr.mxu0 0.0
          %945 = vmatpush1.msra.mxu0 0.0
          %946 = vmatprep.subr.mxu0 0.0
          %947 = vmatpush1.msra.mxu0 0.0
          %948 = vmatprep.mubr.f32.mxu0 0.0
          %949 = vmatmul.mubr.f32.gmra.mrb[0].mxu0 %v882
          %v950 = vpop.f32.mrb[0].mxu0
          %v951 = vadd.f32 0.0, %v950
          %v952 = vpop.f32.mrb[0].mxu0
          %953 = vdwg.mxu0
          %955 = vrot.lane.b32.xlu0 %v951, 8
          %v956 = vpop.permute.xlu0 %955
          %vm958 = vcmask 130112
          %959 = vst.msk [vmem:[#allocation4] sm:$0xff] %vm958, %v956
          %960 = vrot.lane.b32.xlu0 %v618, 112
          %v961 = vpop.permute.xlu0 %960
          %962 = vrot.lane.b32.xlu0 %v618, 80
          %v963 = vpop.permute.xlu0 %962
          %v964 = vsel %vm624, %v961, 0
          %v966 = vsel %vm624, %v963, 0
          %968 = vmatprep.subr.mxu0 0.0
          %969 = vmatpush1.xpose.msra.mxu0 %v966
          %970 = vmatprep.subr.mxu0 0.0
          %971 = vmatpush1.xpose.msra.mxu0 0.0
          %972 = vmatprep.subr.mxu0 0.0
          %973 = vmatpush1.xpose.msra.mxu0 0.0
          %974 = vmatprep.subr.mxu0 0.0
          %975 = vmatpush1.xpose.msra.mxu0 0.0
          %976 = vmatprep.subr.mxu0 0.0
          %977 = vmatpush1.xpose.msra.mxu0 0.0
          %978 = vmatprep.subr.mxu0 0.0
          %979 = vmatpush1.xpose.msra.mxu0 0.0
          %980 = vmatprep.subr.mxu0 0.0
          %981 = vmatpush1.xpose.msra.mxu0 0.0
          %982 = vmatprep.subr.mxu0 0.0
          %983 = vmatpush1.xpose.msra.mxu0 0.0
          %984 = vmatprep.subr.mxu0 0.0
          %985 = vmatpush1.xpose.msra.mxu0 0.0
          %986 = vmatprep.subr.mxu0 0.0
          %987 = vmatpush1.xpose.msra.mxu0 0.0
          %988 = vmatprep.subr.mxu0 0.0
          %989 = vmatpush1.xpose.msra.mxu0 0.0
          %990 = vmatprep.subr.mxu0 0.0
          %991 = vmatpush1.xpose.msra.mxu0 0.0
          %992 = vmatprep.subr.mxu0 0.0
          %993 = vmatpush1.xpose.msra.mxu0 0.0
          %994 = vmatprep.subr.mxu0 0.0
          %995 = vmatpush1.xpose.msra.mxu0 0.0
          %996 = vmatprep.subr.mxu0 0.0
          %997 = vmatpush1.xpose.msra.mxu0 0.0
          %998 = vmatprep.subr.mxu0 0.0
          %999 = vmatpush1.xpose.msra.mxu0 0.0
          %1000 = vmatprep.subr.mxu0 0.0
          %1001 = vmatpush1.xpose.msra.mxu0 0.0
          %1002 = vmatprep.subr.mxu0 0.0
          %1003 = vmatpush1.xpose.msra.mxu0 0.0
          %1004 = vmatprep.subr.mxu0 0.0
          %1005 = vmatpush1.xpose.msra.mxu0 0.0
          %1006 = vmatprep.subr.mxu0 0.0
          %1007 = vmatpush1.xpose.msra.mxu0 0.0
          %1008 = vmatprep.subr.mxu0 0.0
          %1009 = vmatpush1.xpose.msra.mxu0 0.0
          %1010 = vmatprep.subr.mxu0 0.0
          %1011 = vmatpush1.xpose.msra.mxu0 0.0
          %1012 = vmatprep.subr.mxu0 0.0
          %1013 = vmatpush1.xpose.msra.mxu0 0.0
          %1014 = vmatprep.subr.mxu0 0.0
          %1015 = vmatpush1.xpose.msra.mxu0 0.0
          %1016 = vmatprep.subr.mxu0 0.0
          %1017 = vmatpush1.xpose.msra.mxu0 0.0
          %1018 = vmatprep.subr.mxu0 0.0
          %1019 = vmatpush1.xpose.msra.mxu0 0.0
          %1020 = vmatprep.subr.mxu0 0.0
          %1021 = vmatpush1.xpose.msra.mxu0 0.0
          %1022 = vmatprep.subr.mxu0 0.0
          %1023 = vmatpush1.xpose.msra.mxu0 0.0
          %1024 = vmatprep.subr.mxu0 0.0
          %1025 = vmatpush1.xpose.msra.mxu0 0.0
          %1026 = vmatprep.subr.mxu0 0.0
          %1027 = vmatpush1.xpose.msra.mxu0 0.0
          %1028 = vmatprep.subr.mxu0 0.0
          %1029 = vmatpush1.xpose.msra.mxu0 0.0
          %1030 = vmatprep.subr.mxu0 0.0
          %1031 = vmatpush1.xpose.msra.mxu0 0.0
          %1032 = vmatprep.mubr.f32.mxu0 0.0
          %1033 = vmatmul.mubr.f32.gmra.mrb[0].mxu0 %v964
          %v1034 = vpop.f32.mrb[0].mxu0
          %v1035 = vadd.f32 0.0, %v1034
          %v1036 = vpop.f32.mrb[0].mxu0
          %1037 = vdwg.mxu0
          %v1038 = vmul.f32 %v1035, 0.35355338
          %v1039 = vsel %vm624, %v1038, -inf
          %1040 = vmax.xlane.f32.xlu0 %v1039
          %v1041 = vpop.xlane.xlu0 %1040
          %v1042 = vsub.f32 %v1038, %v1041
          %v1043 = vmul.f32 %v1042, 1.442695
          %v1044 = vpow.pop %v1043
          %v1045 = vsel %vm624, %v1044, 0.0
          %1046 = vadd.xlane.f32.xlu0 %v1045
          %v1047 = vpop.xlane.xlu0 %1046
          %v1048 = vrcp.pop %v1047
          %v1049 = vmul.f32 %v1044, %v1048
          %1050 = vrot.lane.b32.xlu0 %v618, 48
          %v1051 = vpop.permute.xlu0 %1050
          %v1054 = vsel %vm624, %v1049, 0
          %1056 = vmatprep.subr.mxu0 0.0
          %1057 = vmatpush1.msra.mxu0 %v1051
          %1058 = vmatprep.subr.mxu0 0.0
          %1059 = vmatpush1.msra.mxu0 0.0
          %1060 = vmatprep.subr.mxu0 0.0
          %1061 = vmatpush1.msra.mxu0 0.0
          %1062 = vmatprep.subr.mxu0 0.0
          %1063 = vmatpush1.msra.mxu0 0.0
          %1064 = vmatprep.subr.mxu0 0.0
          %1065 = vmatpush1.msra.mxu0 0.0
          %1066 = vmatprep.subr.mxu0 0.0
          %1067 = vmatpush1.msra.mxu0 0.0
          %1068 = vmatprep.subr.mxu0 0.0
          %1069 = vmatpush1.msra.mxu0 0.0
          %1070 = vmatprep.subr.mxu0 0.0
          %1071 = vmatpush1.msra.mxu0 0.0
          %1072 = vmatprep.subr.mxu0 0.0
          %1073 = vmatpush1.msra.mxu0 0.0
          %1074 = vmatprep.subr.mxu0 0.0
          %1075 = vmatpush1.msra.mxu0 0.0
          %1076 = vmatprep.subr.mxu0 0.0
          %1077 = vmatpush1.msra.mxu0 0.0
          %1078 = vmatprep.subr.mxu0 0.0
          %1079 = vmatpush1.msra.mxu0 0.0
          %1080 = vmatprep.subr.mxu0 0.0
          %1081 = vmatpush1.msra.mxu0 0.0
          %1082 = vmatprep.subr.mxu0 0.0
          %1083 = vmatpush1.msra.mxu0 0.0
          %1084 = vmatprep.subr.mxu0 0.0
          %1085 = vmatpush1.msra.mxu0 0.0
          %1086 = vmatprep.subr.mxu0 0.0
          %1087 = vmatpush1.msra.mxu0 0.0
          %1088 = vmatprep.subr.mxu0 0.0
          %1089 = vmatpush1.msra.mxu0 0.0
          %1090 = vmatprep.subr.mxu0 0.0
          %1091 = vmatpush1.msra.mxu0 0.0
          %1092 = vmatprep.subr.mxu0 0.0
          %1093 = vmatpush1.msra.mxu0 0.0
          %1094 = vmatprep.subr.mxu0 0.0
          %1095 = vmatpush1.msra.mxu0 0.0
          %1096 = vmatprep.subr.mxu0 0.0
          %1097 = vmatpush1.msra.mxu0 0.0
          %1098 = vmatprep.subr.mxu0 0.0
          %1099 = vmatpush1.msra.mxu0 0.0
          %1100 = vmatprep.subr.mxu0 0.0
          %1101 = vmatpush1.msra.mxu0 0.0
          %1102 = vmatprep.subr.mxu0 0.0
          %1103 = vmatpush1.msra.mxu0 0.0
          %1104 = vmatprep.subr.mxu0 0.0
          %1105 = vmatpush1.msra.mxu0 0.0
          %1106 = vmatprep.subr.mxu0 0.0
          %1107 = vmatpush1.msra.mxu0 0.0
          %1108 = vmatprep.subr.mxu0 0.0
          %1109 = vmatpush1.msra.mxu0 0.0
          %1110 = vmatprep.subr.mxu0 0.0
          %1111 = vmatpush1.msra.mxu0 0.0
          %1112 = vmatprep.subr.mxu0 0.0
          %1113 = vmatpush1.msra.mxu0 0.0
          %1114 = vmatprep.subr.mxu0 0.0
          %1115 = vmatpush1.msra.mxu0 0.0
          %1116 = vmatprep.subr.mxu0 0.0
          %1117 = vmatpush1.msra.mxu0 0.0
          %1118 = vmatprep.subr.mxu0 0.0
          %1119 = vmatpush1.msra.mxu0 0.0
          %1120 = vmatprep.mubr.f32.mxu0 0.0
          %1121 = vmatmul.mubr.f32.gmra.mrb[0].mxu0 %v1054
          %v1122 = vpop.f32.mrb[0].mxu0
          %v1123 = vadd.f32 0.0, %v1122
          %v1124 = vpop.f32.mrb[0].mxu0
          %1125 = vdwg.mxu0
          %1127 = vrot.lane.b32.xlu0 %v1123, 16
          %v1128 = vpop.permute.xlu0 %1127
          %vm1130 = vcmask 195712
          %1131 = vst.msk [vmem:[#allocation4] sm:$0xff] %vm1130, %v1128
          %1132 = vrot.lane.b32.xlu0 %v618, 104
          %v1133 = vpop.permute.xlu0 %1132
          %1134 = vrot.lane.b32.xlu0 %v618, 72
          %v1135 = vpop.permute.xlu0 %1134
          %v1136 = vsel %vm624, %v1133, 0
          %v1138 = vsel %vm624, %v1135, 0
          %1140 = vmatprep.subr.mxu0 0.0
          %1141 = vmatpush1.xpose.msra.mxu0 %v1138
          %1142 = vmatprep.subr.mxu0 0.0
          %1143 = vmatpush1.xpose.msra.mxu0 0.0
          %1144 = vmatprep.subr.mxu0 0.0
          %1145 = vmatpush1.xpose.msra.mxu0 0.0
          %1146 = vmatprep.subr.mxu0 0.0
          %1147 = vmatpush1.xpose.msra.mxu0 0.0
          %1148 = vmatprep.subr.mxu0 0.0
          %1149 = vmatpush1.xpose.msra.mxu0 0.0
          %1150 = vmatprep.subr.mxu0 0.0
          %1151 = vmatpush1.xpose.msra.mxu0 0.0
          %1152 = vmatprep.subr.mxu0 0.0
          %1153 = vmatpush1.xpose.msra.mxu0 0.0
          %1154 = vmatprep.subr.mxu0 0.0
          %1155 = vmatpush1.xpose.msra.mxu0 0.0
          %1156 = vmatprep.subr.mxu0 0.0
          %1157 = vmatpush1.xpose.msra.mxu0 0.0
          %1158 = vmatprep.subr.mxu0 0.0
          %1159 = vmatpush1.xpose.msra.mxu0 0.0
          %1160 = vmatprep.subr.mxu0 0.0
          %1161 = vmatpush1.xpose.msra.mxu0 0.0
          %1162 = vmatprep.subr.mxu0 0.0
          %1163 = vmatpush1.xpose.msra.mxu0 0.0
          %1164 = vmatprep.subr.mxu0 0.0
          %1165 = vmatpush1.xpose.msra.mxu0 0.0
          %1166 = vmatprep.subr.mxu0 0.0
          %1167 = vmatpush1.xpose.msra.mxu0 0.0
          %1168 = vmatprep.subr.mxu0 0.0
          %1169 = vmatpush1.xpose.msra.mxu0 0.0
          %1170 = vmatprep.subr.mxu0 0.0
          %1171 = vmatpush1.xpose.msra.mxu0 0.0
          %1172 = vmatprep.subr.mxu0 0.0
          %1173 = vmatpush1.xpose.msra.mxu0 0.0
          %1174 = vmatprep.subr.mxu0 0.0
          %1175 = vmatpush1.xpose.msra.mxu0 0.0
          %1176 = vmatprep.subr.mxu0 0.0
          %1177 = vmatpush1.xpose.msra.mxu0 0.0
          %1178 = vmatprep.subr.mxu0 0.0
          %1179 = vmatpush1.xpose.msra.mxu0 0.0
          %1180 = vmatprep.subr.mxu0 0.0
          %1181 = vmatpush1.xpose.msra.mxu0 0.0
          %1182 = vmatprep.subr.mxu0 0.0
          %1183 = vmatpush1.xpose.msra.mxu0 0.0
          %1184 = vmatprep.subr.mxu0 0.0
          %1185 = vmatpush1.xpose.msra.mxu0 0.0
          %1186 = vmatprep.subr.mxu0 0.0
          %1187 = vmatpush1.xpose.msra.mxu0 0.0
          %1188 = vmatprep.subr.mxu0 0.0
          %1189 = vmatpush1.xpose.msra.mxu0 0.0
          %1190 = vmatprep.subr.mxu0 0.0
          %1191 = vmatpush1.xpose.msra.mxu0 0.0
          %1192 = vmatprep.subr.mxu0 0.0
          %1193 = vmatpush1.xpose.msra.mxu0 0.0
          %1194 = vmatprep.subr.mxu0 0.0
          %1195 = vmatpush1.xpose.msra.mxu0 0.0
          %1196 = vmatprep.subr.mxu0 0.0
          %1197 = vmatpush1.xpose.msra.mxu0 0.0
          %1198 = vmatprep.subr.mxu0 0.0
          %1199 = vmatpush1.xpose.msra.mxu0 0.0
          %1200 = vmatprep.subr.mxu0 0.0
          %1201 = vmatpush1.xpose.msra.mxu0 0.0
          %1202 = vmatprep.subr.mxu0 0.0
          %1203 = vmatpush1.xpose.msra.mxu0 0.0
          %1204 = vmatprep.mubr.f32.mxu0 0.0
          %1205 = vmatmul.mubr.f32.gmra.mrb[0].mxu0 %v1136
          %v1206 = vpop.f32.mrb[0].mxu0
          %v1207 = vadd.f32 0.0, %v1206
          %v1208 = vpop.f32.mrb[0].mxu0
          %1209 = vdwg.mxu0
          %v1210 = vmul.f32 %v1207, 0.35355338
          %v1211 = vsel %vm624, %v1210, -inf
          %1212 = vmax.xlane.f32.xlu0 %v1211
          %v1213 = vpop.xlane.xlu0 %1212
          %v1214 = vsub.f32 %v1210, %v1213
          %v1215 = vmul.f32 %v1214, 1.442695
          %v1216 = vpow.pop %v1215
          %v1217 = vsel %vm624, %v1216, 0.0
          %1218 = vadd.xlane.f32.xlu0 %v1217
          %v1219 = vpop.xlane.xlu0 %1218
          %v1220 = vrcp.pop %v1219
          %v1221 = vmul.f32 %v1216, %v1220
          %1222 = vrot.lane.b32.xlu0 %v618, 40
          %v1223 = vpop.permute.xlu0 %1222
          %v1226 = vsel %vm624, %v1221, 0
          %1228 = vmatprep.subr.mxu0 0.0
          %1229 = vmatpush1.msra.mxu0 %v1223
          %1230 = vmatprep.subr.mxu0 0.0
          %1231 = vmatpush1.msra.mxu0 0.0
          %1232 = vmatprep.subr.mxu0 0.0
          %1233 = vmatpush1.msra.mxu0 0.0
          %1234 = vmatprep.subr.mxu0 0.0
          %1235 = vmatpush1.msra.mxu0 0.0
          %1236 = vmatprep.subr.mxu0 0.0
          %1237 = vmatpush1.msra.mxu0 0.0
          %1238 = vmatprep.subr.mxu0 0.0
          %1239 = vmatpush1.msra.mxu0 0.0
          %1240 = vmatprep.subr.mxu0 0.0
          %1241 = vmatpush1.msra.mxu0 0.0
          %1242 = vmatprep.subr.mxu0 0.0
          %1243 = vmatpush1.msra.mxu0 0.0
          %1244 = vmatprep.subr.mxu0 0.0
          %1245 = vmatpush1.msra.mxu0 0.0
          %1246 = vmatprep.subr.mxu0 0.0
          %1247 = vmatpush1.msra.mxu0 0.0
          %1248 = vmatprep.subr.mxu0 0.0
          %1249 = vmatpush1.msra.mxu0 0.0
          %1250 = vmatprep.subr.mxu0 0.0
          %1251 = vmatpush1.msra.mxu0 0.0
          %1252 = vmatprep.subr.mxu0 0.0
          %1253 = vmatpush1.msra.mxu0 0.0
          %1254 = vmatprep.subr.mxu0 0.0
          %1255 = vmatpush1.msra.mxu0 0.0
          %1256 = vmatprep.subr.mxu0 0.0
          %1257 = vmatpush1.msra.mxu0 0.0
          %1258 = vmatprep.subr.mxu0 0.0
          %1259 = vmatpush1.msra.mxu0 0.0
          %1260 = vmatprep.subr.mxu0 0.0
          %1261 = vmatpush1.msra.mxu0 0.0
          %1262 = vmatprep.subr.mxu0 0.0
          %1263 = vmatpush1.msra.mxu0 0.0
          %1264 = vmatprep.subr.mxu0 0.0
          %1265 = vmatpush1.msra.mxu0 0.0
          %1266 = vmatprep.subr.mxu0 0.0
          %1267 = vmatpush1.msra.mxu0 0.0
          %1268 = vmatprep.subr.mxu0 0.0
          %1269 = vmatpush1.msra.mxu0 0.0
          %1270 = vmatprep.subr.mxu0 0.0
          %1271 = vmatpush1.msra.mxu0 0.0
          %1272 = vmatprep.subr.mxu0 0.0
          %1273 = vmatpush1.msra.mxu0 0.0
          %1274 = vmatprep.subr.mxu0 0.0
          %1275 = vmatpush1.msra.mxu0 0.0
          %1276 = vmatprep.subr.mxu0 0.0
          %1277 = vmatpush1.msra.mxu0 0.0
          %1278 = vmatprep.subr.mxu0 0.0
          %1279 = vmatpush1.msra.mxu0 0.0
          %1280 = vmatprep.subr.mxu0 0.0
          %1281 = vmatpush1.msra.mxu0 0.0
          %1282 = vmatprep.subr.mxu0 0.0
          %1283 = vmatpush1.msra.mxu0 0.0
          %1284 = vmatprep.subr.mxu0 0.0
          %1285 = vmatpush1.msra.mxu0 0.0
          %1286 = vmatprep.subr.mxu0 0.0
          %1287 = vmatpush1.msra.mxu0 0.0
          %1288 = vmatprep.subr.mxu0 0.0
          %1289 = vmatpush1.msra.mxu0 0.0
          %1290 = vmatprep.subr.mxu0 0.0
          %1291 = vmatpush1.msra.mxu0 0.0
          %1292 = vmatprep.mubr.f32.mxu0 0.0
          %1293 = vmatmul.mubr.f32.gmra.mrb[0].mxu0 %v1226
          %v1294 = vpop.f32.mrb[0].mxu0
          %v1295 = vadd.f32 0.0, %v1294
          %v1296 = vpop.f32.mrb[0].mxu0
          %1297 = vdwg.mxu0
          %1299 = vrot.lane.b32.xlu0 %v1295, 24
          %v1300 = vpop.permute.xlu0 %1299
          %vm1302 = vcmask 261312
          %1303 = vst.msk [vmem:[#allocation4] sm:$0xff] %vm1302, %v1300
          %v1304 = vld [vmem:[#allocation4] sm:$0xff]
          %v1305 = vld [vmem:[%s5] sm:$0xff]
          %v1306 = vld [vmem:[%s5 + $0x8] sm:$0xff]
          %v1307 = vld [vmem:[%s5 + $0x10] sm:$0xff]
          %v1308 = vld [vmem:[%s5 + $0x18] sm:$0xff]
          %v1309 = vld [vmem:[%s6] sm:$0x1]
          %v1311 = vlaneseq
          %v1312 = vshrl.u32 %v1311, 7
          %v1313 = vsub.s32 0, %v1312
          %v1314 = vrot.slane %v1309, %v1313
          %v1317 = vsel %vm508, %v1304, 0
          %1319 = vmatprep.subr.mxu0 0.0
          %1320 = vmatpush1.msra.mxu0 %v1305
          %1321 = vmatprep.subr.mxu0 0.0
          %1322 = vmatpush1.msra.mxu0 %v1306
          %1323 = vmatprep.subr.mxu0 0.0
          %1324 = vmatpush1.msra.mxu0 %v1307
          %1325 = vmatprep.subr.mxu0 0.0
          %1326 = vmatpush1.msra.mxu0 %v1308
          %1327 = vmatprep.subr.mxu0 0.0
          %1328 = vmatpush1.msra.mxu0 0.0
          %1329 = vmatprep.subr.mxu0 0.0
          %1330 = vmatpush1.msra.mxu0 0.0
          %1331 = vmatprep.subr.mxu0 0.0
          %1332 = vmatpush1.msra.mxu0 0.0
          %1333 = vmatprep.subr.mxu0 0.0
          %1334 = vmatpush1.msra.mxu0 0.0
          %1335 = vmatprep.subr.mxu0 0.0
          %1336 = vmatpush1.msra.mxu0 0.0
          %1337 = vmatprep.subr.mxu0 0.0
          %1338 = vmatpush1.msra.mxu0 0.0
          %1339 = vmatprep.subr.mxu0 0.0
          %1340 = vmatpush1.msra.mxu0 0.0
          %1341 = vmatprep.subr.mxu0 0.0
          %1342 = vmatpush1.msra.mxu0 0.0
          %1343 = vmatprep.subr.mxu0 0.0
          %1344 = vmatpush1.msra.mxu0 0.0
          %1345 = vmatprep.subr.mxu0 0.0
          %1346 = vmatpush1.msra.mxu0 0.0
          %1347 = vmatprep.subr.mxu0 0.0
          %1348 = vmatpush1.msra.mxu0 0.0
          %1349 = vmatprep.subr.mxu0 0.0
          %1350 = vmatpush1.msra.mxu0 0.0
          %1351 = vmatprep.subr.mxu0 0.0
          %1352 = vmatpush1.msra.mxu0 0.0
          %1353 = vmatprep.subr.mxu0 0.0
          %1354 = vmatpush1.msra.mxu0 0.0
          %1355 = vmatprep.subr.mxu0 0.0
          %1356 = vmatpush1.msra.mxu0 0.0
          %1357 = vmatprep.subr.mxu0 0.0
          %1358 = vmatpush1.msra.mxu0 0.0
          %1359 = vmatprep.subr.mxu0 0.0
          %1360 = vmatpush1.msra.mxu0 0.0
          %1361 = vmatprep.subr.mxu0 0.0
          %1362 = vmatpush1.msra.mxu0 0.0
          %1363 = vmatprep.subr.mxu0 0.0
          %1364 = vmatpush1.msra.mxu0 0.0
          %1365 = vmatprep.subr.mxu0 0.0
          %1366 = vmatpush1.msra.mxu0 0.0
          %1367 = vmatprep.subr.mxu0 0.0
          %1368 = vmatpush1.msra.mxu0 0.0
          %1369 = vmatprep.subr.mxu0 0.0
          %1370 = vmatpush1.msra.mxu0 0.0
          %1371 = vmatprep.subr.mxu0 0.0
          %1372 = vmatpush1.msra.mxu0 0.0
          %1373 = vmatprep.subr.mxu0 0.0
          %1374 = vmatpush1.msra.mxu0 0.0
          %1375 = vmatprep.subr.mxu0 0.0
          %1376 = vmatpush1.msra.mxu0 0.0
          %1377 = vmatprep.subr.mxu0 0.0
          %1378 = vmatpush1.msra.mxu0 0.0
          %1379 = vmatprep.subr.mxu0 0.0
          %1380 = vmatpush1.msra.mxu0 0.0
          %1381 = vmatprep.subr.mxu0 0.0
          %1382 = vmatpush1.msra.mxu0 0.0
          %1383 = vmatprep.mubr.f32.mxu0 0.0
          %1384 = vmatmul.mubr.f32.gmra.mrb[0].mxu0 %v1317
          %v1385 = vpop.f32.mrb[0].mxu0
          %v1386 = vadd.f32 %v1314, %v1385
          %v1387 = vpop.f32.mrb[0].mxu0
          %1388 = vdwg.mxu0
          %v1389 = vadd.f32 %v505, %v1386
          %1390 = vst.msk [vmem:[#allocation2] sm:$0xff] %vm508, %v1389
          %v1391 = vld [vmem:[%s7] sm:$0x1]
          %v1392 = vld [vmem:[%s8] sm:$0x1]
          %v1393 = vsel %vm508, %v1389, 0.0
          %1394 = vadd.xlane.f32.xlu0 %v1393
          %v1395 = vpop.xlane.xlu0 %1394
          %v1396 = vmul.f32 %v1395, %v512
          %v1397 = vsub.f32 %v1389, %v1396
          %v1398 = vmul.f32 %v1397, %v1397
          %v1399 = vsel %vm508, %v1398, 0.0
          %1400 = vadd.xlane.f32.xlu0 %v1399
          %v1401 = vpop.xlane.xlu0 %1400
          %v1402 = vmul.f32 %v1401, %v512
          %v1403 = vadd.f32 %v1402, 1e-12
          %v1404 = vrsqrt.pop %v1403
          %v1405 = vmul.f32 %v1397, %v1404
          %v1407 = vlaneseq
          %v1408 = vshrl.u32 %v1407, 7
          %v1409 = vsub.s32 0, %v1408
          %v1410 = vrot.slane %v1391, %v1409
          %v1412 = vmul.f32 %v1405, %v1410
          %v1414 = vlaneseq
          %v1415 = vshrl.u32 %v1414, 7
          %v1416 = vsub.s32 0, %v1415
          %v1417 = vrot.slane %v1392, %v1416
          %v1419 = vadd.f32 %v1412, %v1417
          %1420 = vst.msk [vmem:[#allocation3] sm:$0xff] %vm508, %v1419
          %1421 = vst.msk [vmem:[#allocation4] sm:$0xff] %vm508, 0.0
        $region76: #{tpu_custom_call.1} parent=71 // pred_fallthru
          _
        %v1422 = vld [vmem:[#allocation3] sm:$0xff]
        %v1423 = vld [vmem:[%s491] sm:$0xff]
        %v1424 = vld [vmem:[%s491 + $0x8] sm:$0xff]
        %v1425 = vld [vmem:[%s491 + $0x10] sm:$0xff]
        %v1426 = vld [vmem:[%s491 + $0x18] sm:$0xff]
        %v1427 = vld [vmem:[%s494] sm:$0x1]
        %v1429 = vlaneseq
        %v1430 = vshrl.u32 %v1429, 7
        %v1431 = vsub.s32 0, %v1430
        %v1432 = vrot.slane %v1427, %v1431
        %vm1434 = vcmask 261120
        %v1436 = vsel %vm1434, %v1422, 0
        %1438 = vmatprep.subr.mxu0 0.0
        %1439 = vmatpush1.msra.mxu0 %v1423
        %1440 = vmatprep.subr.mxu0 0.0
        %1441 = vmatpush1.msra.mxu0 %v1424
        %1442 = vmatprep.subr.mxu0 0.0
        %1443 = vmatpush1.msra.mxu0 %v1425
        %1444 = vmatprep.subr.mxu0 0.0
        %1445 = vmatpush1.msra.mxu0 %v1426
        %1446 = vmatprep.subr.mxu0 0.0
        %1447 = vmatpush1.msra.mxu0 0.0
        %1448 = vmatprep.subr.mxu0 0.0
        %1449 = vmatpush1.msra.mxu0 0.0
        %1450 = vmatprep.subr.mxu0 0.0
        %1451 = vmatpush1.msra.mxu0 0.0
        %1452 = vmatprep.subr.mxu0 0.0
        %1453 = vmatpush1.msra.mxu0 0.0
        %1454 = vmatprep.subr.mxu0 0.0
        %1455 = vmatpush1.msra.mxu0 0.0
        %1456 = vmatprep.subr.mxu0 0.0
        %1457 = vmatpush1.msra.mxu0 0.0
        %1458 = vmatprep.subr.mxu0 0.0
        %1459 = vmatpush1.msra.mxu0 0.0
        %1460 = vmatprep.subr.mxu0 0.0
        %1461 = vmatpush1.msra.mxu0 0.0
        %1462 = vmatprep.subr.mxu0 0.0
        %1463 = vmatpush1.msra.mxu0 0.0
        %1464 = vmatprep.subr.mxu0 0.0
        %1465 = vmatpush1.msra.mxu0 0.0
        %1466 = vmatprep.subr.mxu0 0.0
        %1467 = vmatpush1.msra.mxu0 0.0
        %1468 = vmatprep.subr.mxu0 0.0
        %1469 = vmatpush1.msra.mxu0 0.0
        %1470 = vmatprep.subr.mxu0 0.0
        %1471 = vmatpush1.msra.mxu0 0.0
        %1472 = vmatprep.subr.mxu0 0.0
        %1473 = vmatpush1.msra.mxu0 0.0
        %1474 = vmatprep.subr.mxu0 0.0
        %1475 = vmatpush1.msra.mxu0 0.0
        %1476 = vmatprep.subr.mxu0 0.0
        %1477 = vmatpush1.msra.mxu0 0.0
        %1478 = vmatprep.subr.mxu0 0.0
        %1479 = vmatpush1.msra.mxu0 0.0
        %1480 = vmatprep.subr.mxu0 0.0
        %1481 = vmatpush1.msra.mxu0 0.0
        %1482 = vmatprep.subr.mxu0 0.0
        %1483 = vmatpush1.msra.mxu0 0.0
        %1484 = vmatprep.subr.mxu0 0.0
        %1485 = vmatpush1.msra.mxu0 0.0
        %1486 = vmatprep.subr.mxu0 0.0
        %1487 = vmatpush1.msra.mxu0 0.0
        %1488 = vmatprep.subr.mxu0 0.0
        %1489 = vmatpush1.msra.mxu0 0.0
        %1490 = vmatprep.subr.mxu0 0.0
        %1491 = vmatpush1.msra.mxu0 0.0
        %1492 = vmatprep.subr.mxu0 0.0
        %1493 = vmatpush1.msra.mxu0 0.0
        %1494 = vmatprep.subr.mxu0 0.0
        %1495 = vmatpush1.msra.mxu0 0.0
        %1496 = vmatprep.subr.mxu0 0.0
        %1497 = vmatpush1.msra.mxu0 0.0
        %1498 = vmatprep.subr.mxu0 0.0
        %1499 = vmatpush1.msra.mxu0 0.0
        %1500 = vmatprep.subr.mxu0 0.0
        %1501 = vmatpush1.msra.mxu0 0.0
        %1502 = vmatprep.mubr.f32.mxu0 0.0
        %1503 = vmatmul.mubr.f32.gmra.mrb[0].mxu0 %v1436
        %v1504 = vpop.f32.mrb[0].mxu0
        %v1505 = vadd.f32 %v1432, %v1504
        %v1506 = vpop.f32.mrb[0].mxu0
        %1507 = vdwg.mxu0
        %v1508 = vmul.f32 %v1505, 1.702
        %v1509 = vxor.u32 %v1508, 2147483648
        %v1510 = vmul.f32 %v1509, 1.442695
        %v1511 = vpow.pop %v1510
        %v1512 = vadd.f32 %v1511, 1.0
        %v1513 = vrcp.pop %v1512
        %v1514 = vmul.f32 1.0, %v1513
        %v1515 = vmul.f32 %v1505, %v1514
        %v1516 = vld [vmem:[#allocation4] sm:$0xff]
        %v1517 = vld [vmem:[%s499] sm:$0xff]
        %v1518 = vld [vmem:[%s499 + $0x8] sm:$0xff]
        %v1519 = vld [vmem:[%s499 + $0x10] sm:$0xff]
        %v1520 = vld [vmem:[%s499 + $0x18] sm:$0xff]
        %v1521 = vld [vmem:[%s499 + $0x20] sm:$0xff]
        %v1522 = vld [vmem:[%s499 + $0x28] sm:$0xff]
        %v1523 = vld [vmem:[%s499 + $0x30] sm:$0xff]
        %v1524 = vld [vmem:[%s499 + $0x38] sm:$0xff]
        %v1525 = vld [vmem:[%s499 + $0x40] sm:$0xff]
        %v1526 = vld [vmem:[%s499 + $0x48] sm:$0xff]
        %v1527 = vld [vmem:[%s499 + $0x50] sm:$0xff]
        %v1528 = vld [vmem:[%s499 + $0x58] sm:$0xff]
        %v1529 = vld [vmem:[%s499 + $0x60] sm:$0xff]
        %v1530 = vld [vmem:[%s499 + $0x68] sm:$0xff]
        %v1531 = vld [vmem:[%s499 + $0x70] sm:$0xff]
        %v1532 = vld [vmem:[%s499 + $0x78] sm:$0xff]
        %1533 = vmatprep.subr.mxu0 0.0
        %1534 = vmatpush1.msra.mxu0 %v1517
        %1535 = vmatprep.subr.mxu0 0.0
        %1536 = vmatpush1.msra.mxu0 %v1518
        %1537 = vmatprep.subr.mxu0 0.0
        %1538 = vmatpush1.msra.mxu0 %v1519
        %1539 = vmatprep.subr.mxu0 0.0
        %1540 = vmatpush1.msra.mxu0 %v1520
        %1541 = vmatprep.subr.mxu0 0.0
        %1542 = vmatpush1.msra.mxu0 %v1521
        %1543 = vmatprep.subr.mxu0 0.0
        %1544 = vmatpush1.msra.mxu0 %v1522
        %1545 = vmatprep.subr.mxu0 0.0
        %1546 = vmatpush1.msra.mxu0 %v1523
        %1547 = vmatprep.subr.mxu0 0.0
        %1548 = vmatpush1.msra.mxu0 %v1524
        %1549 = vmatprep.subr.mxu0 0.0
        %1550 = vmatpush1.msra.mxu0 %v1525
        %1551 = vmatprep.subr.mxu0 0.0
        %1552 = vmatpush1.msra.mxu0 %v1526
        %1553 = vmatprep.subr.mxu0 0.0
        %1554 = vmatpush1.msra.mxu0 %v1527
        %1555 = vmatprep.subr.mxu0 0.0
        %1556 = vmatpush1.msra.mxu0 %v1528
        %1557 = vmatprep.subr.mxu0 0.0
        %1558 = vmatpush1.msra.mxu0 %v1529
        %1559 = vmatprep.subr.mxu0 0.0
        %1560 = vmatpush1.msra.mxu0 %v1530
        %1561 = vmatprep.subr.mxu0 0.0
        %1562 = vmatpush1.msra.mxu0 %v1531
        %1563 = vmatprep.subr.mxu0 0.0
        %1564 = vmatpush1.msra.mxu0 %v1532
        %1565 = vmatprep.subr.mxu0 0.0
        %1566 = vmatpush1.msra.mxu0 0.0
        %1567 = vmatprep.subr.mxu0 0.0
        %1568 = vmatpush1.msra.mxu0 0.0
        %1569 = vmatprep.subr.mxu0 0.0
        %1570 = vmatpush1.msra.mxu0 0.0
        %1571 = vmatprep.subr.mxu0 0.0
        %1572 = vmatpush1.msra.mxu0 0.0
        %1573 = vmatprep.subr.mxu0 0.0
        %1574 = vmatpush1.msra.mxu0 0.0
        %1575 = vmatprep.subr.mxu0 0.0
        %1576 = vmatpush1.msra.mxu0 0.0
        %1577 = vmatprep.subr.mxu0 0.0
        %1578 = vmatpush1.msra.mxu0 0.0
        %1579 = vmatprep.subr.mxu0 0.0
        %1580 = vmatpush1.msra.mxu0 0.0
        %1581 = vmatprep.subr.mxu0 0.0
        %1582 = vmatpush1.msra.mxu0 0.0
        %1583 = vmatprep.subr.mxu0 0.0
        %1584 = vmatpush1.msra.mxu0 0.0
        %1585 = vmatprep.subr.mxu0 0.0
        %1586 = vmatpush1.msra.mxu0 0.0
        %1587 = vmatprep.subr.mxu0 0.0
        %1588 = vmatpush1.msra.mxu0 0.0
        %1589 = vmatprep.subr.mxu0 0.0
        %1590 = vmatpush1.msra.mxu0 0.0
        %1591 = vmatprep.subr.mxu0 0.0
        %1592 = vmatpush1.msra.mxu0 0.0
        %1593 = vmatprep.subr.mxu0 0.0
        %1594 = vmatpush1.msra.mxu0 0.0
        %1595 = vmatprep.subr.mxu0 0.0
        %1596 = vmatpush1.msra.mxu0 0.0
        %1597 = vmatprep.mubr.f32.mxu0 0.0
        %1598 = vmatmul.mubr.f32.gmra.mrb[0].mxu0 %v1515
        %v1599 = vpop.f32.mrb[0].mxu0
        %v1600 = vadd.f32 0.0, %v1599
        %v1601 = vpop.f32.mrb[0].mxu0
        %1602 = vdwg.mxu0
        %v1603 = vadd.f32 %v1516, %v1600
        %1604 = vst.msk [vmem:[#allocation4] sm:$0xff] %vm1434, %v1603
        // Predicated region
        $region77: #{tpu_custom_call.1} parent=71 // pred_check
          %p1605 = pneg %p501
        $region78: #{tpu_custom_call.1} parent=71 // pred_check_branch
          %1607 = sbr.rel (%p1605) target = $region80
        $region79: #{tpu_custom_call.1} parent=71 // pred_region
          %v1608 = vld [vmem:[#allocation2] sm:$0xff]
          %v1609 = vld [vmem:[#allocation4] sm:$0xff]
          %v1610 = vadd.f32 %v1608, %v1609
          %v1611 = vld [vmem:[%s9] sm:$0x1]
          %v1613 = vlaneseq
          %v1614 = vshrl.u32 %v1613, 7
          %v1615 = vsub.s32 0, %v1614
          %v1616 = vrot.slane %v1611, %v1615
          %v1618 = vadd.f32 %v1610, %v1616
          %1619 = vst.msk [vmem:[%s483] sm:$0xff] %vm1434, %v1618
        $region80: #{tpu_custom_call.1} parent=71 // pred_fallthru
          _
        %s1620 = sand.u32 %s340, 1
        %s1621 = scalar_lea.sflag [#allocation6], %s1620
        %s1622 = sand.u32 %s340, 1
        %s1623 = smul.addr %s1622, 8
        %s1624 = scalar_lea.vmem [#allocation5], %s1623
        // Predicated region
        $region81: #{tpu_custom_call.1} parent=71 // pred_check
          %p1625 = pneg %p350
        $region82: #{tpu_custom_call.1} parent=71 // pred_check_branch
          %1627 = sbr.rel (%p1625) target = $region84
        $region83: #{tpu_custom_call.1} parent=71 // pred_region
          %s1629 = ssub.s32 128, 128
          %1630 = vsyncadd %s1621, %s1629
          %s1631 = smul.addr %s31, 128
          %s1632 = scalar_lea.hbm %s13, %s1631
          %s1634 = sshll.u32 %s1624, 4
          %s1635 = int_to_ptr.vmem [resolvable:$true] %s1634
          %1637 = dma.vmem_to_hbm [thread:$0]  %s1635, 128, %s1632, %s1621
        $region84: #{tpu_custom_call.1} parent=71 // pred_fallthru
          _
      $region72: #{tpu_custom_call.1} parent=5 // pred_fallthru
        _
      %p1638 = scmp.le.s32.totalorder 2, %s22
      // Predicated region
      $region85: #{tpu_custom_call.1} parent=5 // pred_check
        %p1639 = pneg %p1638
      $region86: #{tpu_custom_call.1} parent=5 // pred_check_branch
        %1641 = sbr.rel (%p1639) target = $region88
      $region87: #{tpu_custom_call.1} parent=5 // pred_region
        %s1642 = ssub.s32 %s22, 2
        // Predicated region
        $region89: #{tpu_custom_call.1} parent=87 // pred_check
          %p1643 = pneg %p356
        $region90: #{tpu_custom_call.1} parent=87 // pred_check_branch
          %1645 = sbr.rel (%p1643) target = $region92
        $region91: #{tpu_custom_call.1} parent=87 // pred_region
          %s1646 = sand.u32 %s341, 1
          %s1647 = scalar_lea.sflag [#allocation6], %s1646
          %s1648 = sand.u32 %s341, 1
          %s1649 = smul.addr %s1648, 8
          %s1650 = scalar_lea.vmem [#allocation5], %s1649
          %1651 = dma.done %s1647, 128
        $region92: #{tpu_custom_call.1} parent=87 // pred_fallthru
          _
      $region88: #{tpu_custom_call.1} parent=5 // pred_fallthru
        _
    $region6: #{tpu_custom_call.1} parent=1 // loop_footer
      %s26 = sadd.s32 1, %s22
    $region7: #{tpu_custom_call.1} parent=1 // loop_footer_branch
      %21 = sbr.rel target = $region3
    $region8: #{tpu_custom_call.1} parent=1 // loop_exit
      _
    %1652 = vsyncpa [#allocation6], 1
    %s1653 = scalar_lea.sflag [#allocation6], 1
    %1654 = vsyncpa %s1653, 1

</llo_original>
